<compile_context>
chip_gen: v6e
topology: v6e:2x2x1
jax: 0.10.0
libtpu: 0.0.40
codegen_flags: <defaults>
</compile_context>

<pallas_src>
import jax
import jax.numpy as jnp
from jax.experimental import pallas as pl
from jax.experimental.pallas import tpu as pltpu


def _round_up(x, m):
    return -(-x // m) * m


def _fused_mlp_kernel(x_ref, w1_ref, b1_ref, w2_ref, b2_ref, w3_ref, b3_ref,
                      o_ref, h1_ref):
    """Fused 3-layer MLP head.

    Grid axis 0 streams K-tiles of the layer-1 weight (and the matching x
    chunk); layer-1 partial products accumulate into the resident f32
    scratch h1_ref.  At the last K step the (tiny) layer-2 and layer-3
    matmuls + bias/ReLU run entirely out of VMEM and the lane-padded logits
    are written once.
    """
    k = pl.program_id(0)

    @pl.when(k == 0)
    def _():
        h1_ref[...] = jnp.zeros_like(h1_ref)

    # Layer-1 partial product: x[:, k*tk:(k+1)*tk] @ W1[k*tk:(k+1)*tk, :]
    h1_ref[...] += jnp.dot(x_ref[...], w1_ref[...],
                           preferred_element_type=jnp.float32)

    @pl.when(k == pl.num_programs(0) - 1)
    def _():
        h1 = jnp.maximum(h1_ref[...] + b1_ref[...], 0.0)               # (B, N1)
        h2 = jnp.dot(h1, w2_ref[...], preferred_element_type=jnp.float32)
        h2 = jnp.maximum(h2 + b2_ref[...], 0.0)                        # (B, N2)
        out = jnp.dot(h2, w3_ref[...], preferred_element_type=jnp.float32)
        o_ref[...] = (out + b3_ref[...]).astype(o_ref.dtype)           # (B, N3p)


def prepare_params(params):
    """One-time parameter preprocessing (hoisted out of the per-call path).

    Pads the final layer to a full 128-lane width (unmasked output stores,
    no per-call weight padding) and reshapes biases to 2-D rows.
    """
    # TODO(synk): fused path assumes depth=1 (3 Linear layers), as instantiated.
    assert len(params) == 3, "fused kernel expects the depth=1 layer stack"
    (w1, b1), (w2, b2), (w3, b3) = params
    nc = w3.shape[1]
    n3p = _round_up(nc, 128)
    w3_p = jnp.pad(w3, ((0, 0), (0, n3p - nc)))
    b3_p = jnp.pad(b3, ((0, n3p - nc),))
    prepared = (w1, b1.reshape(1, -1), w2, b2.reshape(1, -1),
                w3_p, b3_p.reshape(1, -1))
    return prepared, nc


def caffenet_discriminator_forward(x, prepared, num_classes, *, tk=1024):
    """Fused forward for the depth=1 config (exactly 3 Linear layers)."""
    w1, b1, w2, b2, w3, b3 = prepared

    batch, K1 = x.shape
    N1 = w1.shape[1]
    N2 = w2.shape[1]
    N3p = w3.shape[1]
    assert w1.shape[0] == K1 and w2.shape[0] == N1 and w3.shape[0] == N2

    # K tile for streaming the big layer-1 weight (4 MB f32 chunks at tk=1024).
    if K1 % tk != 0:
        tk = K1
    nk = K1 // tk

    flops = 2 * batch * (K1 * N1 + N1 * N2 + N2 * N3p)
    bytes_accessed = 4 * (batch * K1 + K1 * N1 + N1 + N1 * N2 + N2
                          + N2 * N3p + N3p + batch * N3p)

    out_p = pl.pallas_call(
        _fused_mlp_kernel,
        out_shape=jax.ShapeDtypeStruct((batch, N3p), x.dtype),
        grid_spec=pltpu.PrefetchScalarGridSpec(
            num_scalar_prefetch=0,
            grid=(nk,),
            in_specs=[
                pl.BlockSpec((batch, tk), lambda k: (0, k)),   # x K-chunk (8 KB)
                pl.BlockSpec((tk, N1), lambda k: (k, 0)),      # W1 (streamed)
                pl.BlockSpec((1, N1), lambda k: (0, 0)),       # b1
                pl.BlockSpec((N1, N2), lambda k: (0, 0)),      # W2 (resident)
                pl.BlockSpec((1, N2), lambda k: (0, 0)),       # b2
                pl.BlockSpec((N2, N3p), lambda k: (0, 0)),     # W3 (resident, lane-padded)
                pl.BlockSpec((1, N3p), lambda k: (0, 0)),      # b3
            ],
            out_specs=pl.BlockSpec((batch, N3p), lambda k: (0, 0)),
            scratch_shapes=[pltpu.VMEM((batch, N1), jnp.float32)],   # hidden1 acc
        ),
        compiler_params=pltpu.CompilerParams(
            # Single sequential K axis carrying the h1 accumulator.
            # TODO(synk): on v7x this forgoes the 2-TensorCore weight split;
            # fusion (1 launch, no activation round-trips) wins at this size.
            dimension_semantics=("arbitrary",),
            # ~12.6 MiB live VMEM; raise above v5e's 16 MiB scoped default,
            # stays well inside v7x's 64 MiB physical VMEM.
            vmem_limit_bytes=32 << 20,
        ),
        cost_estimate=pl.CostEstimate(
            flops=flops, transcendentals=0, bytes_accessed=bytes_accessed),
    )(x, w1, b1, w2, b2, w3, b3)

    return out_p[:, :num_classes]


def init_params(key, num_classes=10, size=1, depth=1):
    """Deterministic parameter init matching the module's layer shapes."""
    size = int(1024 * size)
    dims = [(4096, size)]                                   # input_processing Linear
    for d in range(1, depth + 1):                           # blocks
        dims.append((size // d, size // (d + 1)))
    dims.append((size // (depth + 1), num_classes))         # final Linear

    params = []
    for (fan_in, fan_out) in dims:
        key, kw, kb = jax.random.split(key, 3)
        bound = 1.0 / jnp.sqrt(fan_in)
        w = jax.random.uniform(
            kw, (fan_in, fan_out), jnp.float32, minval=-bound, maxval=bound
        )
        b = jax.random.uniform(
            kb, (fan_out,), jnp.float32, minval=-bound, maxval=bound
        )
        params.append((w, b))
    return params


if __name__ == "__main__":
    key = jax.random.PRNGKey(0)
    k_x, k_p = jax.random.split(key)

    batch = 2
    num_classes = 10
    x = jax.random.normal(k_x, (batch, 4096), dtype=jnp.float32)
    params = init_params(k_p, num_classes=num_classes, size=1, depth=1)

    prepared, nc = prepare_params(params)       # one-time weight prep
    out = caffenet_discriminator_forward(x, prepared, nc)
    out = jax.block_until_ready(out)

    # Reference check against plain JAX (Dropout == identity in eval mode).
    ref = x
    for i, (w, b) in enumerate(params):
        ref = ref @ w + b
        if i != len(params) - 1:
            ref = jnp.maximum(ref, 0.0)

    assert out.shape == (batch, num_classes)
    assert jnp.allclose(out, ref, atol=1e-3, rtol=1e-3)

    print("KERNEL_OK")
</pallas_src>

<mosaic_0001>
module attributes {stable_mosaic.version = 11 : i64} {
  func.func @_fused_mlp_kernel(%arg0: i32, %arg1: memref<2x1024xf32, #tpu.memory_space<vmem>>, %arg2: memref<1024x1024xf32, #tpu.memory_space<vmem>>, %arg3: memref<1x1024xf32, #tpu.memory_space<vmem>>, %arg4: memref<1024x512xf32, #tpu.memory_space<vmem>>, %arg5: memref<1x512xf32, #tpu.memory_space<vmem>>, %arg6: memref<512x128xf32, #tpu.memory_space<vmem>>, %arg7: memref<1x128xf32, #tpu.memory_space<vmem>>, %arg8: memref<2x128xf32, #tpu.memory_space<vmem>>, %arg9: memref<2x1024xf32, #tpu.memory_space<vmem>>) attributes {dimension_semantics = [#tpu.dimension_semantics<arbitrary>], iteration_bounds = array<i64: 4>, scalar_prefetch = 0 : i64, scratch_operands = 1 : i64, tpu.core_type = #tpu.core_type<tc>, window_params = [{transform_indices = @transform_0, window_bounds = array<i64: 2, 1024>}, {transform_indices = @transform_1, window_bounds = array<i64: 1024, 1024>}, {pipeline_mode = #tpu.pipeline_mode<synchronous>, transform_indices = @transform_2, window_bounds = array<i64: 1, 1024>}, {pipeline_mode = #tpu.pipeline_mode<synchronous>, transform_indices = @transform_3, window_bounds = array<i64: 1024, 512>}, {pipeline_mode = #tpu.pipeline_mode<synchronous>, transform_indices = @transform_4, window_bounds = array<i64: 1, 512>}, {pipeline_mode = #tpu.pipeline_mode<synchronous>, transform_indices = @transform_5, window_bounds = array<i64: 512, 128>}, {pipeline_mode = #tpu.pipeline_mode<synchronous>, transform_indices = @transform_6, window_bounds = array<i64: 1, 128>}, {pipeline_mode = #tpu.pipeline_mode<synchronous>, transform_indices = @transform_7, window_bounds = array<i64: 2, 128>}]} {
    %c0_i32 = arith.constant 0 : i32
    %0 = arith.cmpi eq, %arg0, %c0_i32 : i32
    %1 = arith.extui %0 : i1 to i32
    %c0_i32_0 = arith.constant 0 : i32
    %2 = arith.cmpi ne, %1, %c0_i32_0 : i32
    scf.if %2 {
      %cst_9 = arith.constant 0.000000e+00 : f32
      %12 = vector.broadcast %cst_9 : f32 to vector<2x1024xf32>
      %c0_10 = arith.constant 0 : index
      %c0_11 = arith.constant 0 : index
      %13 = vector.load %arg9[%c0_10, %c0_11] : memref<2x1024xf32, #tpu.memory_space<vmem>>, vector<2x1024xf32>
      tpu.vector_store %arg9[%c0_10, %c0_11], %12 {strides = array<i32>} : memref<2x1024xf32, #tpu.memory_space<vmem>>, vector<2x1024xf32>,
    } else {
    }
    %c0 = arith.constant 0 : index
    %c0_1 = arith.constant 0 : index
    %3 = vector.load %arg9[%c0, %c0_1] : memref<2x1024xf32, #tpu.memory_space<vmem>>, vector<2x1024xf32>
    %c0_2 = arith.constant 0 : index
    %c0_3 = arith.constant 0 : index
    %4 = vector.load %arg1[%c0_2, %c0_3] : memref<2x1024xf32, #tpu.memory_space<vmem>>, vector<2x1024xf32>
    %c0_4 = arith.constant 0 : index
    %c0_5 = arith.constant 0 : index
    %5 = vector.load %arg2[%c0_4, %c0_5] : memref<1024x1024xf32, #tpu.memory_space<vmem>>, vector<1024x1024xf32>
    %cst = arith.constant dense<0.000000e+00> : vector<2x1024xf32>
    %6 = tpu.matmul %4, %5, %cst {dimension_numbers = #tpu.dot_dimension_numbers<[1], [0], [0], [1], [0, 0, 1, 1], [], []>} : vector<2x1024xf32>, vector<1024x1024xf32>, vector<2x1024xf32> -> vector<2x1024xf32>
    %7 = arith.addf %3, %6 : vector<2x1024xf32>
    %c0_6 = arith.constant 0 : index
    %c0_7 = arith.constant 0 : index
    %8 = vector.load %arg9[%c0_6, %c0_7] : memref<2x1024xf32, #tpu.memory_space<vmem>>, vector<2x1024xf32>
    tpu.vector_store %arg9[%c0_6, %c0_7], %7 {strides = array<i32>} : memref<2x1024xf32, #tpu.memory_space<vmem>>, vector<2x1024xf32>,
    %c3_i32 = arith.constant 3 : i32
    %9 = arith.cmpi eq, %arg0, %c3_i32 : i32
    %10 = arith.extui %9 : i1 to i32
    %c0_i32_8 = arith.constant 0 : i32
    %11 = arith.cmpi ne, %10, %c0_i32_8 : i32
    scf.if %11 {
      %c0_9 = arith.constant 0 : index
      %c0_10 = arith.constant 0 : index
      %12 = vector.load %arg9[%c0_9, %c0_10] : memref<2x1024xf32, #tpu.memory_space<vmem>>, vector<2x1024xf32>
      %c0_11 = arith.constant 0 : index
      %c0_12 = arith.constant 0 : index
      %13 = vector.load %arg3[%c0_11, %c0_12] : memref<1x1024xf32, #tpu.memory_space<vmem>>, vector<1x1024xf32>
      %14 = vector.broadcast %13 : vector<1x1024xf32> to vector<2x1024xf32>
      %15 = arith.addf %12, %14 : vector<2x1024xf32>
      %cst_13 = arith.constant 0.000000e+00 : f32
      %16 = vector.broadcast %cst_13 : f32 to vector<2x1024xf32>
      %17 = arith.maximumf %15, %16 : vector<2x1024xf32>
      %c0_14 = arith.constant 0 : index
      %c0_15 = arith.constant 0 : index
      %18 = vector.load %arg4[%c0_14, %c0_15] : memref<1024x512xf32, #tpu.memory_space<vmem>>, vector<1024x512xf32>
      %cst_16 = arith.constant dense<0.000000e+00> : vector<2x512xf32>
      %19 = tpu.matmul %17, %18, %cst_16 {dimension_numbers = #tpu.dot_dimension_numbers<[1], [0], [0], [1], [0, 0, 1, 1], [], []>} : vector<2x1024xf32>, vector<1024x512xf32>, vector<2x512xf32> -> vector<2x512xf32>
      %c0_17 = arith.constant 0 : index
      %c0_18 = arith.constant 0 : index
      %20 = vector.load %arg5[%c0_17, %c0_18] : memref<1x512xf32, #tpu.memory_space<vmem>>, vector<1x512xf32>
      %21 = vector.broadcast %20 : vector<1x512xf32> to vector<2x512xf32>
      %22 = arith.addf %19, %21 : vector<2x512xf32>
      %cst_19 = arith.constant 0.000000e+00 : f32
      %23 = vector.broadcast %cst_19 : f32 to vector<2x512xf32>
      %24 = arith.maximumf %22, %23 : vector<2x512xf32>
      %c0_20 = arith.constant 0 : index
      %c0_21 = arith.constant 0 : index
      %25 = vector.load %arg6[%c0_20, %c0_21] : memref<512x128xf32, #tpu.memory_space<vmem>>, vector<512x128xf32>
      %cst_22 = arith.constant dense<0.000000e+00> : vector<2x128xf32>
      %26 = tpu.matmul %24, %25, %cst_22 {dimension_numbers = #tpu.dot_dimension_numbers<[1], [0], [0], [1], [0, 0, 1, 1], [], []>} : vector<2x512xf32>, vector<512x128xf32>, vector<2x128xf32> -> vector<2x128xf32>
      %c0_23 = arith.constant 0 : index
      %c0_24 = arith.constant 0 : index
      %27 = vector.load %arg7[%c0_23, %c0_24] : memref<1x128xf32, #tpu.memory_space<vmem>>, vector<1x128xf32>
      %28 = vector.broadcast %27 : vector<1x128xf32> to vector<2x128xf32>
      %29 = arith.addf %26, %28 : vector<2x128xf32>
      %c0_25 = arith.constant 0 : index
      %c0_26 = arith.constant 0 : index
      %30 = vector.load %arg8[%c0_25, %c0_26] : memref<2x128xf32, #tpu.memory_space<vmem>>, vector<2x128xf32>
      tpu.vector_store %arg8[%c0_25, %c0_26], %29 {strides = array<i32>} : memref<2x128xf32, #tpu.memory_space<vmem>>, vector<2x128xf32>,
    } else {
    }
    return
  }
  func.func @transform_0(%arg0: i32) -> (i32, i32) {
    %c0_i32 = arith.constant 0 : i32
    %c0_i32_0 = arith.constant 0 : i32
    return %c0_i32, %arg0 : i32, i32
  }
  func.func @transform_1(%arg0: i32) -> (i32, i32) {
    %c0_i32 = arith.constant 0 : i32
    %c0_i32_0 = arith.constant 0 : i32
    return %arg0, %c0_i32 : i32, i32
  }
  func.func @transform_2(%arg0: i32) -> (i32, i32) {
    %c0_i32 = arith.constant 0 : i32
    %c0_i32_0 = arith.constant 0 : i32
    %c0_i32_1 = arith.constant 0 : i32
    return %c0_i32, %c0_i32_0 : i32, i32
  }
  func.func @transform_3(%arg0: i32) -> (i32, i32) {
    %c0_i32 = arith.constant 0 : i32
    %c0_i32_0 = arith.constant 0 : i32
    %c0_i32_1 = arith.constant 0 : i32
    return %c0_i32, %c0_i32_0 : i32, i32
  }
  func.func @transform_4(%arg0: i32) -> (i32, i32) {
    %c0_i32 = arith.constant 0 : i32
    %c0_i32_0 = arith.constant 0 : i32
    %c0_i32_1 = arith.constant 0 : i32
    return %c0_i32, %c0_i32_0 : i32, i32
  }
  func.func @transform_5(%arg0: i32) -> (i32, i32) {
    %c0_i32 = arith.constant 0 : i32
    %c0_i32_0 = arith.constant 0 : i32
    %c0_i32_1 = arith.constant 0 : i32
    return %c0_i32, %c0_i32_0 : i32, i32
  }
  func.func @transform_6(%arg0: i32) -> (i32, i32) {
    %c0_i32 = arith.constant 0 : i32
    %c0_i32_0 = arith.constant 0 : i32
    %c0_i32_1 = arith.constant 0 : i32
    return %c0_i32, %c0_i32_0 : i32, i32
  }
  func.func @transform_7(%arg0: i32) -> (i32, i32) {
    %c0_i32 = arith.constant 0 : i32
    %c0_i32_0 = arith.constant 0 : i32
    %c0_i32_1 = arith.constant 0 : i32
    return %c0_i32, %c0_i32_0 : i32, i32
  }
}

</mosaic_0001>

<llo_original>
// kernel: tpu_custom_call.1
$region0: #{tpu_custom_call.1}
  #allocation0 [shape = 'u32[]', space=smem, size = 0x4, offset = 0x4, fixed_abs, tag = 'smem constant byte address 0x4 - core index']
  #allocation1 [shape = 'u32[144,128]{1,0:T(1,128)}', space=vmem, size = 0x12000, scoped, tag = 'internal scratch']
  #allocation2 [shape = 'f32[2,1024]{1,0:T(2,128)}', space=vmem, size = 0x2000, scoped, tag = 'scratch operand']
  %s0 = inlined_call_operand.hbm [shape: f32[2,4096], index: 0, kind: input, shape index: {}]
  %s1 = inlined_call_operand.hbm [shape: f32[4096,1024], index: 1, kind: input, shape index: {}]
  %s2 = inlined_call_operand.hbm [shape: f32[1,1024], index: 2, kind: input, shape index: {}]
  %s3 = inlined_call_operand.hbm [shape: f32[1024,512], index: 3, kind: input, shape index: {}]
  %s4 = inlined_call_operand.hbm [shape: f32[1,512], index: 4, kind: input, shape index: {}]
  %s5 = inlined_call_operand.hbm [shape: f32[512,128], index: 5, kind: input, shape index: {}]
  %s6 = inlined_call_operand.hbm [shape: f32[1,128], index: 6, kind: input, shape index: {}]
  %s7 = inlined_call_operand.hbm [shape: f32[2,128], index: 7, kind: output, shape index: {}]
  %s8 = sld [smem:[#allocation0]]
  $region97: #{tpu_custom_call.1} parent=0
    _
  %s10 = ssub.s32 1, %s8
  %s11 = scalar_select 0, %s10, %s8
  $region1: #{tpu_custom_call.1} parent=0
    #allocation3 [shape = 'u8[16384]{0}', space=vmem, size = 0x4000, scoped, tag = 'input window, operand 0']
    #allocation4 [shape = 's32[2]{0}', space=sflag, size = 0x8, scoped, tag = 'scoped memory for tpu_custom_call.1']
    #allocation5 [shape = 's32[2]{0}', space=sflag, size = 0x8, scoped, tag = 'scoped memory for tpu_custom_call.1']
    #allocation6 [shape = 'u8[8388608]{0}', space=vmem, size = 0x800000, scoped, tag = 'input window, operand 1']
    #allocation7 [shape = 's32[2]{0}', space=sflag, size = 0x8, scoped, tag = 'scoped memory for tpu_custom_call.1']
    #allocation8 [shape = 'u8[4096]{0}', space=vmem, size = 0x1000, scoped, tag = 'input window, operand 2, single buffered']
    #allocation9 [shape = 'u8[2097152]{0}', space=vmem, size = 0x200000, scoped, tag = 'input window, operand 3, single buffered']
    #allocation10 [shape = 's32[1]{0}', space=sflag, size = 0x4, scoped, tag = 'scoped memory for tpu_custom_call.1']
    #allocation11 [shape = 'u8[2048]{0}', space=vmem, size = 0x800, scoped, tag = 'input window, operand 4, single buffered']
    #allocation12 [shape = 'u8[262144]{0}', space=vmem, size = 0x40000, scoped, tag = 'input window, operand 5, single buffered']
    #allocation13 [shape = 's32[1]{0}', space=sflag, size = 0x4, scoped, tag = 'scoped memory for tpu_custom_call.1']
    #allocation14 [shape = 'u8[512]{0}', space=vmem, size = 0x400, scoped, tag = 'input window, operand 6, single buffered']
    #allocation15 [shape = 'u8[1024]{0}', space=vmem, size = 0x400, scoped, tag = 'output window, operand 0, single buffered']
    %12 = vsyncpa [#allocation4], 0
    %s13 = scalar_lea.sflag [#allocation4], 1
    %14 = vsyncpa %s13, 0
    %15 = vsyncpa [#allocation7], 0
    %s16 = scalar_lea.sflag [#allocation7], 1
    %17 = vsyncpa %s16, 0
    %18 = vsyncpa [#allocation10], 0
    %19 = vsyncpa [#allocation13], 0
    %20 = vsyncpa [#allocation5], 0
    loop: start=0, step=1, limit=6
    $region2: #{tpu_custom_call.1} parent=1 // loop_pre_header
      _
    $region3: #{tpu_custom_call.1} parent=1 // loop_header
      %s22 = sphi 0, %s26
      %p23 = scmp.ge.s32.totalorder %s22, 6
      %s32 = sphi 0, %s34
      %s35 = sphi 0, %s32
      %s36 = sphi 0, %s35
      %s52 = sphi 0, %s36
      %s58 = sphi 0, %s60
      %s61 = sphi 0, %s58
      %s62 = sphi 0, %s61
      %s78 = sphi 0, %s62
      %s82 = sphi 0, %s82
      %s84 = sphi 0, %s82
      %s85 = sphi 0, %s84
      %s99 = sphi 0, %s85
      %s103 = sphi 0, %s103
      %s105 = sphi 0, %s103
      %s106 = sphi 0, %s105
      %s120 = sphi 0, %s106
      %s124 = sphi 0, %s124
      %s126 = sphi 0, %s124
      %s127 = sphi 0, %s126
      %s141 = sphi 0, %s127
      %s145 = sphi 0, %s145
      %s147 = sphi 0, %s145
      %s148 = sphi 0, %s147
      %s162 = sphi 0, %s148
      %s166 = sphi 0, %s166
      %s168 = sphi 0, %s166
      %s169 = sphi 0, %s168
      %s183 = sphi 0, %s169
      %s187 = sphi 0, %s187
      %s189 = sphi 0, %s187
      %s190 = sphi 0, %s189
      %s204 = sphi 0, %s190
    $region4: #{tpu_custom_call.1} parent=1 // loop_header_branch
      %25 = sbr.rel (%p23) target = $region8
    $region5: #{tpu_custom_call.1} parent=1 // loop_body
      %s27 = ssub.s32 %s22, 1
      %s28 = ssub.s32 %s22, 2
      %s29 = sadd.s32 %s22, 1
      %s30 = ssub.s32 %s22, %s29
      %p31 = scmp.eq.s32.totalorder %s30, 0
      %s33 = sadd.s32 %s32, 1
      %s34 = scalar_select %p31, %s32, %s33
      %p37 = pneg %p31
      %p38 = scmp.eq.s32.totalorder %s22, 3
      %p39 = por %p37, %p38
      %p40 = scmp.ne.s32.totalorder %s32, %s35
      %p41 = scmp.eq.s32.totalorder %s22, 0
      %p42 = por %p40, %p41
      %p43 = scmp.ne.s32.totalorder %s32, %s35
      %p44 = scmp.eq.s32.totalorder %s27, 3
      %p45 = por %p43, %p44
      %p46 = scmp.ne.s32.totalorder %s35, %s36
      %p47 = scmp.eq.s32.totalorder %s27, 0
      %p48 = por %p46, %p47
      %p49 = scmp.ne.s32.totalorder %s35, %s36
      %p50 = scmp.eq.s32.totalorder %s28, 3
      %p51 = por %p49, %p50
      %p53 = scmp.ne.s32.totalorder %s36, %s52
      %p54 = scmp.eq.s32.totalorder %s28, 0
      %p55 = por %p53, %p54
      %s56 = ssub.s32 %s22, %s29
      %p57 = scmp.eq.s32.totalorder %s56, 0
      %s59 = sadd.s32 %s58, 1
      %s60 = scalar_select %p57, %s58, %s59
      %p63 = pneg %p57
      %p64 = scmp.eq.s32.totalorder %s22, 3
      %p65 = por %p63, %p64
      %p66 = scmp.ne.s32.totalorder %s58, %s61
      %p67 = scmp.eq.s32.totalorder %s22, 0
      %p68 = por %p66, %p67
      %p69 = scmp.ne.s32.totalorder %s58, %s61
      %p70 = scmp.eq.s32.totalorder %s27, 3
      %p71 = por %p69, %p70
      %p72 = scmp.ne.s32.totalorder %s61, %s62
      %p73 = scmp.eq.s32.totalorder %s27, 0
      %p74 = por %p72, %p73
      %p75 = scmp.ne.s32.totalorder %s61, %s62
      %p76 = scmp.eq.s32.totalorder %s28, 3
      %p77 = por %p75, %p76
      %p79 = scmp.ne.s32.totalorder %s62, %s78
      %p80 = scmp.eq.s32.totalorder %s28, 0
      %p81 = por %p79, %p80
      %s83 = sadd.s32 %s82, 1
      %p86 = scmp.eq.s32.totalorder %s22, 3
      %p87 = scmp.ne.s32.totalorder %s82, %s84
      %p88 = scmp.eq.s32.totalorder %s22, 0
      %p89 = por %p87, %p88
      %p90 = scmp.ne.s32.totalorder %s82, %s84
      %p91 = scmp.eq.s32.totalorder %s27, 3
      %p92 = por %p90, %p91
      %p93 = scmp.ne.s32.totalorder %s84, %s85
      %p94 = scmp.eq.s32.totalorder %s27, 0
      %p95 = por %p93, %p94
      %p96 = scmp.ne.s32.totalorder %s84, %s85
      %p97 = scmp.eq.s32.totalorder %s28, 3
      %p98 = por %p96, %p97
      %p100 = scmp.ne.s32.totalorder %s85, %s99
      %p101 = scmp.eq.s32.totalorder %s28, 0
      %p102 = por %p100, %p101
      %s104 = sadd.s32 %s103, 1
      %p107 = scmp.eq.s32.totalorder %s22, 3
      %p108 = scmp.ne.s32.totalorder %s103, %s105
      %p109 = scmp.eq.s32.totalorder %s22, 0
      %p110 = por %p108, %p109
      %p111 = scmp.ne.s32.totalorder %s103, %s105
      %p112 = scmp.eq.s32.totalorder %s27, 3
      %p113 = por %p111, %p112
      %p114 = scmp.ne.s32.totalorder %s105, %s106
      %p115 = scmp.eq.s32.totalorder %s27, 0
      %p116 = por %p114, %p115
      %p117 = scmp.ne.s32.totalorder %s105, %s106
      %p118 = scmp.eq.s32.totalorder %s28, 3
      %p119 = por %p117, %p118
      %p121 = scmp.ne.s32.totalorder %s106, %s120
      %p122 = scmp.eq.s32.totalorder %s28, 0
      %p123 = por %p121, %p122
      %s125 = sadd.s32 %s124, 1
      %p128 = scmp.eq.s32.totalorder %s22, 3
      %p129 = scmp.ne.s32.totalorder %s124, %s126
      %p130 = scmp.eq.s32.totalorder %s22, 0
      %p131 = por %p129, %p130
      %p132 = scmp.ne.s32.totalorder %s124, %s126
      %p133 = scmp.eq.s32.totalorder %s27, 3
      %p134 = por %p132, %p133
      %p135 = scmp.ne.s32.totalorder %s126, %s127
      %p136 = scmp.eq.s32.totalorder %s27, 0
      %p137 = por %p135, %p136
      %p138 = scmp.ne.s32.totalorder %s126, %s127
      %p139 = scmp.eq.s32.totalorder %s28, 3
      %p140 = por %p138, %p139
      %p142 = scmp.ne.s32.totalorder %s127, %s141
      %p143 = scmp.eq.s32.totalorder %s28, 0
      %p144 = por %p142, %p143
      %s146 = sadd.s32 %s145, 1
      %p149 = scmp.eq.s32.totalorder %s22, 3
      %p150 = scmp.ne.s32.totalorder %s145, %s147
      %p151 = scmp.eq.s32.totalorder %s22, 0
      %p152 = por %p150, %p151
      %p153 = scmp.ne.s32.totalorder %s145, %s147
      %p154 = scmp.eq.s32.totalorder %s27, 3
      %p155 = por %p153, %p154
      %p156 = scmp.ne.s32.totalorder %s147, %s148
      %p157 = scmp.eq.s32.totalorder %s27, 0
      %p158 = por %p156, %p157
      %p159 = scmp.ne.s32.totalorder %s147, %s148
      %p160 = scmp.eq.s32.totalorder %s28, 3
      %p161 = por %p159, %p160
      %p163 = scmp.ne.s32.totalorder %s148, %s162
      %p164 = scmp.eq.s32.totalorder %s28, 0
      %p165 = por %p163, %p164
      %s167 = sadd.s32 %s166, 1
      %p170 = scmp.eq.s32.totalorder %s22, 3
      %p171 = scmp.ne.s32.totalorder %s166, %s168
      %p172 = scmp.eq.s32.totalorder %s22, 0
      %p173 = por %p171, %p172
      %p174 = scmp.ne.s32.totalorder %s166, %s168
      %p175 = scmp.eq.s32.totalorder %s27, 3
      %p176 = por %p174, %p175
      %p177 = scmp.ne.s32.totalorder %s168, %s169
      %p178 = scmp.eq.s32.totalorder %s27, 0
      %p179 = por %p177, %p178
      %p180 = scmp.ne.s32.totalorder %s168, %s169
      %p181 = scmp.eq.s32.totalorder %s28, 3
      %p182 = por %p180, %p181
      %p184 = scmp.ne.s32.totalorder %s169, %s183
      %p185 = scmp.eq.s32.totalorder %s28, 0
      %p186 = por %p184, %p185
      %s188 = sadd.s32 %s187, 1
      %p191 = scmp.eq.s32.totalorder %s22, 3
      %p192 = scmp.ne.s32.totalorder %s187, %s189
      %p193 = scmp.eq.s32.totalorder %s22, 0
      %p194 = por %p192, %p193
      %p195 = scmp.ne.s32.totalorder %s187, %s189
      %p196 = scmp.eq.s32.totalorder %s27, 3
      %p197 = por %p195, %p196
      %p198 = scmp.ne.s32.totalorder %s189, %s190
      %p199 = scmp.eq.s32.totalorder %s27, 0
      %p200 = por %p198, %p199
      %p201 = scmp.ne.s32.totalorder %s189, %s190
      %p202 = scmp.eq.s32.totalorder %s28, 3
      %p203 = por %p201, %p202
      %p205 = scmp.ne.s32.totalorder %s190, %s204
      %p206 = scmp.eq.s32.totalorder %s28, 0
      %p207 = por %p205, %p206
      %p208 = scmp.le.s32.totalorder 1, %s22
      %p209 = scmp.lt.s32.totalorder %s22, 5
      %p210 = pnand %p208, %p209
      %p211 = pneg %p210
      // Predicated region
      $region9: #{tpu_custom_call.1} parent=5 // pred_check
        _
      $region10: #{tpu_custom_call.1} parent=5 // pred_check_branch
        %213 = sbr.rel (%p210) target = $region12
      $region11: #{tpu_custom_call.1} parent=5 // pred_region
        %s214 = ssub.s32 %s22, 1
        // Predicated region
        $region13: #{tpu_custom_call.1} parent=11 // pred_check
          %p215 = pneg %p95
        $region14: #{tpu_custom_call.1} parent=11 // pred_check_branch
          %217 = sbr.rel (%p215) target = $region16
        $region15: #{tpu_custom_call.1} parent=11 // pred_region
          %s219 = ssub.s32 128, 128
          %220 = vsyncadd [#allocation7], %s219
          %s222 = sshll.u32 [#allocation8], 4
          %s223 = int_to_ptr.vmem [resolvable:$true] %s222
          %225 = dma.hbm_to_vmem [thread:$0]  %s2, 128, %s223, [#allocation7]
        $region16: #{tpu_custom_call.1} parent=11 // pred_fallthru
          _
        // Predicated region
        $region17: #{tpu_custom_call.1} parent=11 // pred_check
          %p226 = pneg %p116
        $region18: #{tpu_custom_call.1} parent=11 // pred_check_branch
          %228 = sbr.rel (%p226) target = $region20
        $region19: #{tpu_custom_call.1} parent=11 // pred_region
          %s230 = ssub.s32 65536, 65536
          %231 = vsyncadd [#allocation10], %s230
          %s232 = sshll.u32 [#allocation9], 4
          %s233 = int_to_ptr.vmem [resolvable:$true] %s232
          %238 = dma.hbm_to_vmem [thread:$0]  %s3, 65536, %s233, [#allocation10], 512, 512, 32
        $region20: #{tpu_custom_call.1} parent=11 // pred_fallthru
          _
        // Predicated region
        $region21: #{tpu_custom_call.1} parent=11 // pred_check
          %p239 = pneg %p137
        $region22: #{tpu_custom_call.1} parent=11 // pred_check_branch
          %241 = sbr.rel (%p239) target = $region24
        $region23: #{tpu_custom_call.1} parent=11 // pred_region
          %s243 = ssub.s32 64, 64
          %244 = vsyncadd [#allocation10], %s243
          %s246 = sshll.u32 [#allocation11], 4
          %s247 = int_to_ptr.vmem [resolvable:$true] %s246
          %249 = dma.hbm_to_vmem [thread:$0]  %s4, 64, %s247, [#allocation10]
        $region24: #{tpu_custom_call.1} parent=11 // pred_fallthru
          _
        // Predicated region
        $region25: #{tpu_custom_call.1} parent=11 // pred_check
          %p250 = pneg %p158
        $region26: #{tpu_custom_call.1} parent=11 // pred_check_branch
          %252 = sbr.rel (%p250) target = $region28
        $region27: #{tpu_custom_call.1} parent=11 // pred_region
          %s254 = ssub.s32 8192, 8192
          %255 = vsyncadd [#allocation13], %s254
          %s256 = sshll.u32 [#allocation12], 4
          %s257 = int_to_ptr.vmem [resolvable:$true] %s256
          %262 = dma.hbm_to_vmem [thread:$0]  %s5, 8192, %s257, [#allocation13], 128, 128, 8
        $region28: #{tpu_custom_call.1} parent=11 // pred_fallthru
          _
        // Predicated region
        $region29: #{tpu_custom_call.1} parent=11 // pred_check
          %p263 = pneg %p179
        $region30: #{tpu_custom_call.1} parent=11 // pred_check_branch
          %265 = sbr.rel (%p263) target = $region32
        $region31: #{tpu_custom_call.1} parent=11 // pred_region
          %s267 = ssub.s32 16, 16
          %268 = vsyncadd [#allocation13], %s267
          %s270 = sshll.u32 [#allocation14], 4
          %s271 = int_to_ptr.vmem [resolvable:$true] %s270
          %273 = dma.hbm_to_vmem [thread:$0]  %s6, 16, %s271, [#allocation13]
        $region32: #{tpu_custom_call.1} parent=11 // pred_fallthru
          _
      $region12: #{tpu_custom_call.1} parent=5 // pred_fallthru
        _
      %p274 = scmp.lt.s32.totalorder %s22, 4
      // Predicated region
      $region33: #{tpu_custom_call.1} parent=5 // pred_check
        %p275 = pneg %p274
      $region34: #{tpu_custom_call.1} parent=5 // pred_check_branch
        %277 = sbr.rel (%p275) target = $region36
      $region35: #{tpu_custom_call.1} parent=5 // pred_region
        // Predicated region
        $region37: #{tpu_custom_call.1} parent=35 // pred_check
          %p278 = pneg %p42
        $region38: #{tpu_custom_call.1} parent=35 // pred_check_branch
          %280 = sbr.rel (%p278) target = $region40
        $region39: #{tpu_custom_call.1} parent=35 // pred_region
          %s281 = sand.u32 %s32, 1
          %s282 = scalar_lea.sflag [#allocation4], %s281
          %s283 = sand.u32 %s32, 1
          %s284 = smul.addr %s283, 16
          %s285 = scalar_lea.vmem [#allocation3], %s284
          %s286 = smul.u32 8, %s22
          %s288 = ssub.s32 256, 256
          %289 = vsyncadd %s282, %s288
          %s290 = smul.addr %s286, 32
          %s291 = scalar_lea.hbm %s0, %s290
          %s293 = sshll.u32 %s285, 4
          %s294 = int_to_ptr.vmem [resolvable:$true] %s293
          %296 = dma.hbm_to_vmem [thread:$0]  %s291, 256, %s294, %s282
        $region40: #{tpu_custom_call.1} parent=35 // pred_fallthru
          _
        // Predicated region
        $region41: #{tpu_custom_call.1} parent=35 // pred_check
          %p297 = pneg %p68
        $region42: #{tpu_custom_call.1} parent=35 // pred_check_branch
          %299 = sbr.rel (%p297) target = $region44
        $region43: #{tpu_custom_call.1} parent=35 // pred_region
          %s300 = sand.u32 %s22, 1
          %s301 = scalar_lea.sflag [#allocation7], %s300
          %s302 = sand.u32 %s58, 1
          %s303 = smul.addr %s302, 8192
          %s304 = scalar_lea.vmem [#allocation6], %s303
          %s305 = smul.u32 128, %s22
          %s307 = ssub.s32 131072, 131072
          %308 = vsyncadd %s301, %s307
          %s309 = smul.addr %s305, 8
          %s310 = smul.addr %s309, 128
          %s311 = scalar_lea.hbm %s1, %s310
          %s312 = sshll.u32 %s304, 4
          %s313 = int_to_ptr.vmem [resolvable:$true] %s312
          %318 = dma.hbm_to_vmem [thread:$0]  %s311, 131072, %s313, %s301, 1024, 1024, 64
        $region44: #{tpu_custom_call.1} parent=35 // pred_fallthru
          _
      $region36: #{tpu_custom_call.1} parent=5 // pred_fallthru
        _
      %p319 = scmp.le.s32.totalorder 1, %s22
      %p320 = scmp.lt.s32.totalorder %s22, 5
      %p321 = pnand %p319, %p320
      %p322 = pneg %p321
      // Predicated region
      $region45: #{tpu_custom_call.1} parent=5 // pred_check
        _
      $region46: #{tpu_custom_call.1} parent=5 // pred_check_branch
        %324 = sbr.rel (%p321) target = $region48
      $region47: #{tpu_custom_call.1} parent=5 // pred_region
        %s325 = ssub.s32 %s22, 1
        %s326 = sand.u32 %s35, 1
        %s327 = scalar_lea.sflag [#allocation4], %s326
        %s328 = sand.u32 %s35, 1
        %s329 = smul.addr %s328, 16
        %s330 = scalar_lea.vmem [#allocation3], %s329
        // Predicated region
        $region49: #{tpu_custom_call.1} parent=47 // pred_check
          %p331 = pneg %p48
        $region50: #{tpu_custom_call.1} parent=47 // pred_check_branch
          %333 = sbr.rel (%p331) target = $region52
        $region51: #{tpu_custom_call.1} parent=47 // pred_region
          %334 = dma.done %s327, 256
        $region52: #{tpu_custom_call.1} parent=47 // pred_fallthru
          _
        %s335 = sand.u32 %s27, 1
        %s336 = scalar_lea.sflag [#allocation7], %s335
        %s337 = sand.u32 %s61, 1
        %s338 = smul.addr %s337, 8192
        %s339 = scalar_lea.vmem [#allocation6], %s338
        // Predicated region
        $region53: #{tpu_custom_call.1} parent=47 // pred_check
          %p340 = pneg %p74
        $region54: #{tpu_custom_call.1} parent=47 // pred_check_branch
          %342 = sbr.rel (%p340) target = $region56
        $region55: #{tpu_custom_call.1} parent=47 // pred_region
          %343 = dma.done %s336, 131072
        $region56: #{tpu_custom_call.1} parent=47 // pred_fallthru
          _
        // Predicated region
        $region57: #{tpu_custom_call.1} parent=47 // pred_check
          %p344 = pneg %p95
        $region58: #{tpu_custom_call.1} parent=47 // pred_check_branch
          %346 = sbr.rel (%p344) target = $region60
        $region59: #{tpu_custom_call.1} parent=47 // pred_region
          %347 = dma.done [#allocation7], 128
        $region60: #{tpu_custom_call.1} parent=47 // pred_fallthru
          _
        // Predicated region
        $region61: #{tpu_custom_call.1} parent=47 // pred_check
          %p348 = pneg %p116
        $region62: #{tpu_custom_call.1} parent=47 // pred_check_branch
          %350 = sbr.rel (%p348) target = $region64
        $region63: #{tpu_custom_call.1} parent=47 // pred_region
          %351 = dma.done [#allocation10], 65536
        $region64: #{tpu_custom_call.1} parent=47 // pred_fallthru
          _
        // Predicated region
        $region65: #{tpu_custom_call.1} parent=47 // pred_check
          %p352 = pneg %p137
        $region66: #{tpu_custom_call.1} parent=47 // pred_check_branch
          %354 = sbr.rel (%p352) target = $region68
        $region67: #{tpu_custom_call.1} parent=47 // pred_region
          %355 = dma.done [#allocation10], 64
        $region68: #{tpu_custom_call.1} parent=47 // pred_fallthru
          _
        // Predicated region
        $region69: #{tpu_custom_call.1} parent=47 // pred_check
          %p356 = pneg %p158
        $region70: #{tpu_custom_call.1} parent=47 // pred_check_branch
          %358 = sbr.rel (%p356) target = $region72
        $region71: #{tpu_custom_call.1} parent=47 // pred_region
          %359 = dma.done [#allocation13], 8192
        $region72: #{tpu_custom_call.1} parent=47 // pred_fallthru
          _
        // Predicated region
        $region73: #{tpu_custom_call.1} parent=47 // pred_check
          %p360 = pneg %p179
        $region74: #{tpu_custom_call.1} parent=47 // pred_check_branch
          %362 = sbr.rel (%p360) target = $region76
        $region75: #{tpu_custom_call.1} parent=47 // pred_region
          %363 = dma.done [#allocation13], 16
        $region76: #{tpu_custom_call.1} parent=47 // pred_fallthru
          _
        %s364 = sand.u32 %s35, 1
        %s365 = scalar_lea.sflag [#allocation4], %s364
        %s366 = sand.u32 %s35, 1
        %s367 = smul.addr %s366, 16
        %s368 = scalar_lea.vmem [#allocation3], %s367
        %p369 = pneg %p48
        %p370 = pneg %p45
        %s371 = sand.u32 %s27, 1
        %s372 = scalar_lea.sflag [#allocation7], %s371
        %s373 = sand.u32 %s61, 1
        %s374 = smul.addr %s373, 8192
        %s375 = scalar_lea.vmem [#allocation6], %s374
        %p376 = pneg %p74
        %p377 = pneg %p71
        %p378 = pneg %p95
        %p379 = pneg %p92
        %p380 = pneg %p116
        %p381 = pneg %p113
        %p382 = pneg %p137
        %p383 = pneg %p134
        %p384 = pneg %p158
        %p385 = pneg %p155
        %p386 = pneg %p179
        %p387 = pneg %p176
        %p388 = pneg %p200
        %p389 = pneg %p197
        %s390 = smul.u32 8, %s27
        %s391 = smul.u32 128, %s27
        %p392 = scmp.eq.s32.totalorder %s27, 0
        // Predicated region
        $region77: #{tpu_custom_call.1} parent=47 // pred_check
          %p393 = pneg %p392
        $region78: #{tpu_custom_call.1} parent=47 // pred_check_branch
          %395 = sbr.rel (%p393) target = $region80
        $region79: #{tpu_custom_call.1} parent=47 // pred_region
          %396 = vst [vmem:[#allocation2] sm:$0xff] 0.0
          %397 = vst [vmem:[#allocation2 + $0x8] sm:$0xff] 0.0
        $region80: #{tpu_custom_call.1} parent=47 // pred_fallthru
          _
        %v398 = vld [vmem:[#allocation2] sm:$0xff]
        %v399 = vld [vmem:[#allocation2 + $0x8] sm:$0xff]
        %v400 = vld [vmem:[%s330] sm:$0xff]
        %v401 = vld [vmem:[%s330 + $0x8] sm:$0xff]
        %v402 = vld [vmem:[%s339] sm:$0xff]
        %v403 = vld [vmem:[%s339 + $0x8] sm:$0xff]
        %v404 = vld [vmem:[%s339 + $0x10] sm:$0xff]
        %v405 = vld [vmem:[%s339 + $0x18] sm:$0xff]
        %v406 = vld [vmem:[%s339 + $0x20] sm:$0xff]
        %v407 = vld [vmem:[%s339 + $0x28] sm:$0xff]
        %v408 = vld [vmem:[%s339 + $0x30] sm:$0xff]
        %v409 = vld [vmem:[%s339 + $0x38] sm:$0xff]
        %v410 = vld [vmem:[%s339 + $0x40] sm:$0xff]
        %v411 = vld [vmem:[%s339 + $0x48] sm:$0xff]
        %v412 = vld [vmem:[%s339 + $0x50] sm:$0xff]
        %v413 = vld [vmem:[%s339 + $0x58] sm:$0xff]
        %v414 = vld [vmem:[%s339 + $0x60] sm:$0xff]
        %v415 = vld [vmem:[%s339 + $0x68] sm:$0xff]
        %v416 = vld [vmem:[%s339 + $0x70] sm:$0xff]
        %v417 = vld [vmem:[%s339 + $0x78] sm:$0xff]
        %v418 = vld [vmem:[%s339 + $0x80] sm:$0xff]
        %v419 = vld [vmem:[%s339 + $0x88] sm:$0xff]
        %v420 = vld [vmem:[%s339 + $0x90] sm:$0xff]
        %v421 = vld [vmem:[%s339 + $0x98] sm:$0xff]
        %v422 = vld [vmem:[%s339 + $0xa0] sm:$0xff]
        %v423 = vld [vmem:[%s339 + $0xa8] sm:$0xff]
        %v424 = vld [vmem:[%s339 + $0xb0] sm:$0xff]
        %v425 = vld [vmem:[%s339 + $0xb8] sm:$0xff]
        %v426 = vld [vmem:[%s339 + $0xc0] sm:$0xff]
        %v427 = vld [vmem:[%s339 + $0xc8] sm:$0xff]
        %v428 = vld [vmem:[%s339 + $0xd0] sm:$0xff]
        %v429 = vld [vmem:[%s339 + $0xd8] sm:$0xff]
        %v430 = vld [vmem:[%s339 + $0xe0] sm:$0xff]
        %v431 = vld [vmem:[%s339 + $0xe8] sm:$0xff]
        %v432 = vld [vmem:[%s339 + $0xf0] sm:$0xff]
        %v433 = vld [vmem:[%s339 + $0xf8] sm:$0xff]
        %v434 = vld [vmem:[%s339 + $0x100] sm:$0xff]
        %v435 = vld [vmem:[%s339 + $0x108] sm:$0xff]
        %v436 = vld [vmem:[%s339 + $0x110] sm:$0xff]
        %v437 = vld [vmem:[%s339 + $0x118] sm:$0xff]
        %v438 = vld [vmem:[%s339 + $0x120] sm:$0xff]
        %v439 = vld [vmem:[%s339 + $0x128] sm:$0xff]
        %v440 = vld [vmem:[%s339 + $0x130] sm:$0xff]
        %v441 = vld [vmem:[%s339 + $0x138] sm:$0xff]
        %v442 = vld [vmem:[%s339 + $0x140] sm:$0xff]
        %v443 = vld [vmem:[%s339 + $0x148] sm:$0xff]
        %v444 = vld [vmem:[%s339 + $0x150] sm:$0xff]
        %v445 = vld [vmem:[%s339 + $0x158] sm:$0xff]
        %v446 = vld [vmem:[%s339 + $0x160] sm:$0xff]
        %v447 = vld [vmem:[%s339 + $0x168] sm:$0xff]
        %v448 = vld [vmem:[%s339 + $0x170] sm:$0xff]
        %v449 = vld [vmem:[%s339 + $0x178] sm:$0xff]
        %v450 = vld [vmem:[%s339 + $0x180] sm:$0xff]
        %v451 = vld [vmem:[%s339 + $0x188] sm:$0xff]
        %v452 = vld [vmem:[%s339 + $0x190] sm:$0xff]
        %v453 = vld [vmem:[%s339 + $0x198] sm:$0xff]
        %v454 = vld [vmem:[%s339 + $0x1a0] sm:$0xff]
        %v455 = vld [vmem:[%s339 + $0x1a8] sm:$0xff]
        %v456 = vld [vmem:[%s339 + $0x1b0] sm:$0xff]
        %v457 = vld [vmem:[%s339 + $0x1b8] sm:$0xff]
        %v458 = vld [vmem:[%s339 + $0x1c0] sm:$0xff]
        %v459 = vld [vmem:[%s339 + $0x1c8] sm:$0xff]
        %v460 = vld [vmem:[%s339 + $0x1d0] sm:$0xff]
        %v461 = vld [vmem:[%s339 + $0x1d8] sm:$0xff]
        %v462 = vld [vmem:[%s339 + $0x1e0] sm:$0xff]
        %v463 = vld [vmem:[%s339 + $0x1e8] sm:$0xff]
        %v464 = vld [vmem:[%s339 + $0x1f0] sm:$0xff]
        %v465 = vld [vmem:[%s339 + $0x1f8] sm:$0xff]
        %v466 = vld [vmem:[%s339 + $0x200] sm:$0xff]
        %v467 = vld [vmem:[%s339 + $0x208] sm:$0xff]
        %v468 = vld [vmem:[%s339 + $0x210] sm:$0xff]
        %v469 = vld [vmem:[%s339 + $0x218] sm:$0xff]
        %v470 = vld [vmem:[%s339 + $0x220] sm:$0xff]
        %v471 = vld [vmem:[%s339 + $0x228] sm:$0xff]
        %v472 = vld [vmem:[%s339 + $0x230] sm:$0xff]
        %v473 = vld [vmem:[%s339 + $0x238] sm:$0xff]
        %v474 = vld [vmem:[%s339 + $0x240] sm:$0xff]
        %v475 = vld [vmem:[%s339 + $0x248] sm:$0xff]
        %v476 = vld [vmem:[%s339 + $0x250] sm:$0xff]
        %v477 = vld [vmem:[%s339 + $0x258] sm:$0xff]
        %v478 = vld [vmem:[%s339 + $0x260] sm:$0xff]
        %v479 = vld [vmem:[%s339 + $0x268] sm:$0xff]
        %v480 = vld [vmem:[%s339 + $0x270] sm:$0xff]
        %v481 = vld [vmem:[%s339 + $0x278] sm:$0xff]
        %v482 = vld [vmem:[%s339 + $0x280] sm:$0xff]
        %v483 = vld [vmem:[%s339 + $0x288] sm:$0xff]
        %v484 = vld [vmem:[%s339 + $0x290] sm:$0xff]
        %v485 = vld [vmem:[%s339 + $0x298] sm:$0xff]
        %v486 = vld [vmem:[%s339 + $0x2a0] sm:$0xff]
        %v487 = vld [vmem:[%s339 + $0x2a8] sm:$0xff]
        %v488 = vld [vmem:[%s339 + $0x2b0] sm:$0xff]
        %v489 = vld [vmem:[%s339 + $0x2b8] sm:$0xff]
        %v490 = vld [vmem:[%s339 + $0x2c0] sm:$0xff]
        %v491 = vld [vmem:[%s339 + $0x2c8] sm:$0xff]
        %v492 = vld [vmem:[%s339 + $0x2d0] sm:$0xff]
        %v493 = vld [vmem:[%s339 + $0x2d8] sm:$0xff]
        %v494 = vld [vmem:[%s339 + $0x2e0] sm:$0xff]
        %v495 = vld [vmem:[%s339 + $0x2e8] sm:$0xff]
        %v496 = vld [vmem:[%s339 + $0x2f0] sm:$0xff]
        %v497 = vld [vmem:[%s339 + $0x2f8] sm:$0xff]
        %v498 = vld [vmem:[%s339 + $0x300] sm:$0xff]
        %v499 = vld [vmem:[%s339 + $0x308] sm:$0xff]
        %v500 = vld [vmem:[%s339 + $0x310] sm:$0xff]
        %v501 = vld [vmem:[%s339 + $0x318] sm:$0xff]
        %v502 = vld [vmem:[%s339 + $0x320] sm:$0xff]
        %v503 = vld [vmem:[%s339 + $0x328] sm:$0xff]
        %v504 = vld [vmem:[%s339 + $0x330] sm:$0xff]
        %v505 = vld [vmem:[%s339 + $0x338] sm:$0xff]
        %v506 = vld [vmem:[%s339 + $0x340] sm:$0xff]
        %v507 = vld [vmem:[%s339 + $0x348] sm:$0xff]
        %v508 = vld [vmem:[%s339 + $0x350] sm:$0xff]
        %v509 = vld [vmem:[%s339 + $0x358] sm:$0xff]
        %v510 = vld [vmem:[%s339 + $0x360] sm:$0xff]
        %v511 = vld [vmem:[%s339 + $0x368] sm:$0xff]
        %v512 = vld [vmem:[%s339 + $0x370] sm:$0xff]
        %v513 = vld [vmem:[%s339 + $0x378] sm:$0xff]
        %v514 = vld [vmem:[%s339 + $0x380] sm:$0xff]
        %v515 = vld [vmem:[%s339 + $0x388] sm:$0xff]
        %v516 = vld [vmem:[%s339 + $0x390] sm:$0xff]
        %v517 = vld [vmem:[%s339 + $0x398] sm:$0xff]
        %v518 = vld [vmem:[%s339 + $0x3a0] sm:$0xff]
        %v519 = vld [vmem:[%s339 + $0x3a8] sm:$0xff]
        %v520 = vld [vmem:[%s339 + $0x3b0] sm:$0xff]
        %v521 = vld [vmem:[%s339 + $0x3b8] sm:$0xff]
        %v522 = vld [vmem:[%s339 + $0x3c0] sm:$0xff]
        %v523 = vld [vmem:[%s339 + $0x3c8] sm:$0xff]
        %v524 = vld [vmem:[%s339 + $0x3d0] sm:$0xff]
        %v525 = vld [vmem:[%s339 + $0x3d8] sm:$0xff]
        %v526 = vld [vmem:[%s339 + $0x3e0] sm:$0xff]
        %v527 = vld [vmem:[%s339 + $0x3e8] sm:$0xff]
        %v528 = vld [vmem:[%s339 + $0x3f0] sm:$0xff]
        %v529 = vld [vmem:[%s339 + $0x3f8] sm:$0xff]
        %v530 = vld [vmem:[%s339 + $0x400] sm:$0xff]
        %v531 = vld [vmem:[%s339 + $0x408] sm:$0xff]
        %v532 = vld [vmem:[%s339 + $0x410] sm:$0xff]
        %v533 = vld [vmem:[%s339 + $0x418] sm:$0xff]
        %v534 = vld [vmem:[%s339 + $0x420] sm:$0xff]
        %v535 = vld [vmem:[%s339 + $0x428] sm:$0xff]
        %v536 = vld [vmem:[%s339 + $0x430] sm:$0xff]
        %v537 = vld [vmem:[%s339 + $0x438] sm:$0xff]
        %v538 = vld [vmem:[%s339 + $0x440] sm:$0xff]
        %v539 = vld [vmem:[%s339 + $0x448] sm:$0xff]
        %v540 = vld [vmem:[%s339 + $0x450] sm:$0xff]
        %v541 = vld [vmem:[%s339 + $0x458] sm:$0xff]
        %v542 = vld [vmem:[%s339 + $0x460] sm:$0xff]
        %v543 = vld [vmem:[%s339 + $0x468] sm:$0xff]
        %v544 = vld [vmem:[%s339 + $0x470] sm:$0xff]
        %v545 = vld [vmem:[%s339 + $0x478] sm:$0xff]
        %v546 = vld [vmem:[%s339 + $0x480] sm:$0xff]
        %v547 = vld [vmem:[%s339 + $0x488] sm:$0xff]
        %v548 = vld [vmem:[%s339 + $0x490] sm:$0xff]
        %v549 = vld [vmem:[%s339 + $0x498] sm:$0xff]
        %v550 = vld [vmem:[%s339 + $0x4a0] sm:$0xff]
        %v551 = vld [vmem:[%s339 + $0x4a8] sm:$0xff]
        %v552 = vld [vmem:[%s339 + $0x4b0] sm:$0xff]
        %v553 = vld [vmem:[%s339 + $0x4b8] sm:$0xff]
        %v554 = vld [vmem:[%s339 + $0x4c0] sm:$0xff]
        %v555 = vld [vmem:[%s339 + $0x4c8] sm:$0xff]
        %v556 = vld [vmem:[%s339 + $0x4d0] sm:$0xff]
        %v557 = vld [vmem:[%s339 + $0x4d8] sm:$0xff]
        %v558 = vld [vmem:[%s339 + $0x4e0] sm:$0xff]
        %v559 = vld [vmem:[%s339 + $0x4e8] sm:$0xff]
        %v560 = vld [vmem:[%s339 + $0x4f0] sm:$0xff]
        %v561 = vld [vmem:[%s339 + $0x4f8] sm:$0xff]
        %v562 = vld [vmem:[%s339 + $0x500] sm:$0xff]
        %v563 = vld [vmem:[%s339 + $0x508] sm:$0xff]
        %v564 = vld [vmem:[%s339 + $0x510] sm:$0xff]
        %v565 = vld [vmem:[%s339 + $0x518] sm:$0xff]
        %v566 = vld [vmem:[%s339 + $0x520] sm:$0xff]
        %v567 = vld [vmem:[%s339 + $0x528] sm:$0xff]
        %v568 = vld [vmem:[%s339 + $0x530] sm:$0xff]
        %v569 = vld [vmem:[%s339 + $0x538] sm:$0xff]
        %v570 = vld [vmem:[%s339 + $0x540] sm:$0xff]
        %v571 = vld [vmem:[%s339 + $0x548] sm:$0xff]
        %v572 = vld [vmem:[%s339 + $0x550] sm:$0xff]
        %v573 = vld [vmem:[%s339 + $0x558] sm:$0xff]
        %v574 = vld [vmem:[%s339 + $0x560] sm:$0xff]
        %v575 = vld [vmem:[%s339 + $0x568] sm:$0xff]
        %v576 = vld [vmem:[%s339 + $0x570] sm:$0xff]
        %v577 = vld [vmem:[%s339 + $0x578] sm:$0xff]
        %v578 = vld [vmem:[%s339 + $0x580] sm:$0xff]
        %v579 = vld [vmem:[%s339 + $0x588] sm:$0xff]
        %v580 = vld [vmem:[%s339 + $0x590] sm:$0xff]
        %v581 = vld [vmem:[%s339 + $0x598] sm:$0xff]
        %v582 = vld [vmem:[%s339 + $0x5a0] sm:$0xff]
        %v583 = vld [vmem:[%s339 + $0x5a8] sm:$0xff]
        %v584 = vld [vmem:[%s339 + $0x5b0] sm:$0xff]
        %v585 = vld [vmem:[%s339 + $0x5b8] sm:$0xff]
        %v586 = vld [vmem:[%s339 + $0x5c0] sm:$0xff]
        %v587 = vld [vmem:[%s339 + $0x5c8] sm:$0xff]
        %v588 = vld [vmem:[%s339 + $0x5d0] sm:$0xff]
        %v589 = vld [vmem:[%s339 + $0x5d8] sm:$0xff]
        %v590 = vld [vmem:[%s339 + $0x5e0] sm:$0xff]
        %v591 = vld [vmem:[%s339 + $0x5e8] sm:$0xff]
        %v592 = vld [vmem:[%s339 + $0x5f0] sm:$0xff]
        %v593 = vld [vmem:[%s339 + $0x5f8] sm:$0xff]
        %v594 = vld [vmem:[%s339 + $0x600] sm:$0xff]
        %v595 = vld [vmem:[%s339 + $0x608] sm:$0xff]
        %v596 = vld [vmem:[%s339 + $0x610] sm:$0xff]
        %v597 = vld [vmem:[%s339 + $0x618] sm:$0xff]
        %v598 = vld [vmem:[%s339 + $0x620] sm:$0xff]
        %v599 = vld [vmem:[%s339 + $0x628] sm:$0xff]
        %v600 = vld [vmem:[%s339 + $0x630] sm:$0xff]
        %v601 = vld [vmem:[%s339 + $0x638] sm:$0xff]
        %v602 = vld [vmem:[%s339 + $0x640] sm:$0xff]
        %v603 = vld [vmem:[%s339 + $0x648] sm:$0xff]
        %v604 = vld [vmem:[%s339 + $0x650] sm:$0xff]
        %v605 = vld [vmem:[%s339 + $0x658] sm:$0xff]
        %v606 = vld [vmem:[%s339 + $0x660] sm:$0xff]
        %v607 = vld [vmem:[%s339 + $0x668] sm:$0xff]
        %v608 = vld [vmem:[%s339 + $0x670] sm:$0xff]
        %v609 = vld [vmem:[%s339 + $0x678] sm:$0xff]
        %v610 = vld [vmem:[%s339 + $0x680] sm:$0xff]
        %v611 = vld [vmem:[%s339 + $0x688] sm:$0xff]
        %v612 = vld [vmem:[%s339 + $0x690] sm:$0xff]
        %v613 = vld [vmem:[%s339 + $0x698] sm:$0xff]
        %v614 = vld [vmem:[%s339 + $0x6a0] sm:$0xff]
        %v615 = vld [vmem:[%s339 + $0x6a8] sm:$0xff]
        %v616 = vld [vmem:[%s339 + $0x6b0] sm:$0xff]
        %v617 = vld [vmem:[%s339 + $0x6b8] sm:$0xff]
        %v618 = vld [vmem:[%s339 + $0x6c0] sm:$0xff]
        %v619 = vld [vmem:[%s339 + $0x6c8] sm:$0xff]
        %v620 = vld [vmem:[%s339 + $0x6d0] sm:$0xff]
        %v621 = vld [vmem:[%s339 + $0x6d8] sm:$0xff]
        %v622 = vld [vmem:[%s339 + $0x6e0] sm:$0xff]
        %v623 = vld [vmem:[%s339 + $0x6e8] sm:$0xff]
        %v624 = vld [vmem:[%s339 + $0x6f0] sm:$0xff]
        %v625 = vld [vmem:[%s339 + $0x6f8] sm:$0xff]
        %v626 = vld [vmem:[%s339 + $0x700] sm:$0xff]
        %v627 = vld [vmem:[%s339 + $0x708] sm:$0xff]
        %v628 = vld [vmem:[%s339 + $0x710] sm:$0xff]
        %v629 = vld [vmem:[%s339 + $0x718] sm:$0xff]
        %v630 = vld [vmem:[%s339 + $0x720] sm:$0xff]
        %v631 = vld [vmem:[%s339 + $0x728] sm:$0xff]
        %v632 = vld [vmem:[%s339 + $0x730] sm:$0xff]
        %v633 = vld [vmem:[%s339 + $0x738] sm:$0xff]
        %v634 = vld [vmem:[%s339 + $0x740] sm:$0xff]
        %v635 = vld [vmem:[%s339 + $0x748] sm:$0xff]
        %v636 = vld [vmem:[%s339 + $0x750] sm:$0xff]
        %v637 = vld [vmem:[%s339 + $0x758] sm:$0xff]
        %v638 = vld [vmem:[%s339 + $0x760] sm:$0xff]
        %v639 = vld [vmem:[%s339 + $0x768] sm:$0xff]
        %v640 = vld [vmem:[%s339 + $0x770] sm:$0xff]
        %v641 = vld [vmem:[%s339 + $0x778] sm:$0xff]
        %v642 = vld [vmem:[%s339 + $0x780] sm:$0xff]
        %v643 = vld [vmem:[%s339 + $0x788] sm:$0xff]
        %v644 = vld [vmem:[%s339 + $0x790] sm:$0xff]
        %v645 = vld [vmem:[%s339 + $0x798] sm:$0xff]
        %v646 = vld [vmem:[%s339 + $0x7a0] sm:$0xff]
        %v647 = vld [vmem:[%s339 + $0x7a8] sm:$0xff]
        %v648 = vld [vmem:[%s339 + $0x7b0] sm:$0xff]
        %v649 = vld [vmem:[%s339 + $0x7b8] sm:$0xff]
        %v650 = vld [vmem:[%s339 + $0x7c0] sm:$0xff]
        %v651 = vld [vmem:[%s339 + $0x7c8] sm:$0xff]
        %v652 = vld [vmem:[%s339 + $0x7d0] sm:$0xff]
        %v653 = vld [vmem:[%s339 + $0x7d8] sm:$0xff]
        %v654 = vld [vmem:[%s339 + $0x7e0] sm:$0xff]
        %v655 = vld [vmem:[%s339 + $0x7e8] sm:$0xff]
        %v656 = vld [vmem:[%s339 + $0x7f0] sm:$0xff]
        %v657 = vld [vmem:[%s339 + $0x7f8] sm:$0xff]
        %v658 = vld [vmem:[%s339 + $0x800] sm:$0xff]
        %v659 = vld [vmem:[%s339 + $0x808] sm:$0xff]
        %v660 = vld [vmem:[%s339 + $0x810] sm:$0xff]
        %v661 = vld [vmem:[%s339 + $0x818] sm:$0xff]
        %v662 = vld [vmem:[%s339 + $0x820] sm:$0xff]
        %v663 = vld [vmem:[%s339 + $0x828] sm:$0xff]
        %v664 = vld [vmem:[%s339 + $0x830] sm:$0xff]
        %v665 = vld [vmem:[%s339 + $0x838] sm:$0xff]
        %v666 = vld [vmem:[%s339 + $0x840] sm:$0xff]
        %v667 = vld [vmem:[%s339 + $0x848] sm:$0xff]
        %v668 = vld [vmem:[%s339 + $0x850] sm:$0xff]
        %v669 = vld [vmem:[%s339 + $0x858] sm:$0xff]
        %v670 = vld [vmem:[%s339 + $0x860] sm:$0xff]
        %v671 = vld [vmem:[%s339 + $0x868] sm:$0xff]
        %v672 = vld [vmem:[%s339 + $0x870] sm:$0xff]
        %v673 = vld [vmem:[%s339 + $0x878] sm:$0xff]
        %v674 = vld [vmem:[%s339 + $0x880] sm:$0xff]
        %v675 = vld [vmem:[%s339 + $0x888] sm:$0xff]
        %v676 = vld [vmem:[%s339 + $0x890] sm:$0xff]
        %v677 = vld [vmem:[%s339 + $0x898] sm:$0xff]
        %v678 = vld [vmem:[%s339 + $0x8a0] sm:$0xff]
        %v679 = vld [vmem:[%s339 + $0x8a8] sm:$0xff]
        %v680 = vld [vmem:[%s339 + $0x8b0] sm:$0xff]
        %v681 = vld [vmem:[%s339 + $0x8b8] sm:$0xff]
        %v682 = vld [vmem:[%s339 + $0x8c0] sm:$0xff]
        %v683 = vld [vmem:[%s339 + $0x8c8] sm:$0xff]
        %v684 = vld [vmem:[%s339 + $0x8d0] sm:$0xff]
        %v685 = vld [vmem:[%s339 + $0x8d8] sm:$0xff]
        %v686 = vld [vmem:[%s339 + $0x8e0] sm:$0xff]
        %v687 = vld [vmem:[%s339 + $0x8e8] sm:$0xff]
        %v688 = vld [vmem:[%s339 + $0x8f0] sm:$0xff]
        %v689 = vld [vmem:[%s339 + $0x8f8] sm:$0xff]
        %v690 = vld [vmem:[%s339 + $0x900] sm:$0xff]
        %v691 = vld [vmem:[%s339 + $0x908] sm:$0xff]
        %v692 = vld [vmem:[%s339 + $0x910] sm:$0xff]
        %v693 = vld [vmem:[%s339 + $0x918] sm:$0xff]
        %v694 = vld [vmem:[%s339 + $0x920] sm:$0xff]
        %v695 = vld [vmem:[%s339 + $0x928] sm:$0xff]
        %v696 = vld [vmem:[%s339 + $0x930] sm:$0xff]
        %v697 = vld [vmem:[%s339 + $0x938] sm:$0xff]
        %v698 = vld [vmem:[%s339 + $0x940] sm:$0xff]
        %v699 = vld [vmem:[%s339 + $0x948] sm:$0xff]
        %v700 = vld [vmem:[%s339 + $0x950] sm:$0xff]
        %v701 = vld [vmem:[%s339 + $0x958] sm:$0xff]
        %v702 = vld [vmem:[%s339 + $0x960] sm:$0xff]
        %v703 = vld [vmem:[%s339 + $0x968] sm:$0xff]
        %v704 = vld [vmem:[%s339 + $0x970] sm:$0xff]
        %v705 = vld [vmem:[%s339 + $0x978] sm:$0xff]
        %v706 = vld [vmem:[%s339 + $0x980] sm:$0xff]
        %v707 = vld [vmem:[%s339 + $0x988] sm:$0xff]
        %v708 = vld [vmem:[%s339 + $0x990] sm:$0xff]
        %v709 = vld [vmem:[%s339 + $0x998] sm:$0xff]
        %v710 = vld [vmem:[%s339 + $0x9a0] sm:$0xff]
        %v711 = vld [vmem:[%s339 + $0x9a8] sm:$0xff]
        %v712 = vld [vmem:[%s339 + $0x9b0] sm:$0xff]
        %v713 = vld [vmem:[%s339 + $0x9b8] sm:$0xff]
        %v714 = vld [vmem:[%s339 + $0x9c0] sm:$0xff]
        %v715 = vld [vmem:[%s339 + $0x9c8] sm:$0xff]
        %v716 = vld [vmem:[%s339 + $0x9d0] sm:$0xff]
        %v717 = vld [vmem:[%s339 + $0x9d8] sm:$0xff]
        %v718 = vld [vmem:[%s339 + $0x9e0] sm:$0xff]
        %v719 = vld [vmem:[%s339 + $0x9e8] sm:$0xff]
        %v720 = vld [vmem:[%s339 + $0x9f0] sm:$0xff]
        %v721 = vld [vmem:[%s339 + $0x9f8] sm:$0xff]
        %v722 = vld [vmem:[%s339 + $0xa00] sm:$0xff]
        %v723 = vld [vmem:[%s339 + $0xa08] sm:$0xff]
        %v724 = vld [vmem:[%s339 + $0xa10] sm:$0xff]
        %v725 = vld [vmem:[%s339 + $0xa18] sm:$0xff]
        %v726 = vld [vmem:[%s339 + $0xa20] sm:$0xff]
        %v727 = vld [vmem:[%s339 + $0xa28] sm:$0xff]
        %v728 = vld [vmem:[%s339 + $0xa30] sm:$0xff]
        %v729 = vld [vmem:[%s339 + $0xa38] sm:$0xff]
        %v730 = vld [vmem:[%s339 + $0xa40] sm:$0xff]
        %v731 = vld [vmem:[%s339 + $0xa48] sm:$0xff]
        %v732 = vld [vmem:[%s339 + $0xa50] sm:$0xff]
        %v733 = vld [vmem:[%s339 + $0xa58] sm:$0xff]
        %v734 = vld [vmem:[%s339 + $0xa60] sm:$0xff]
        %v735 = vld [vmem:[%s339 + $0xa68] sm:$0xff]
        %v736 = vld [vmem:[%s339 + $0xa70] sm:$0xff]
        %v737 = vld [vmem:[%s339 + $0xa78] sm:$0xff]
        %v738 = vld [vmem:[%s339 + $0xa80] sm:$0xff]
        %v739 = vld [vmem:[%s339 + $0xa88] sm:$0xff]
        %v740 = vld [vmem:[%s339 + $0xa90] sm:$0xff]
        %v741 = vld [vmem:[%s339 + $0xa98] sm:$0xff]
        %v742 = vld [vmem:[%s339 + $0xaa0] sm:$0xff]
        %v743 = vld [vmem:[%s339 + $0xaa8] sm:$0xff]
        %v744 = vld [vmem:[%s339 + $0xab0] sm:$0xff]
        %v745 = vld [vmem:[%s339 + $0xab8] sm:$0xff]
        %v746 = vld [vmem:[%s339 + $0xac0] sm:$0xff]
        %v747 = vld [vmem:[%s339 + $0xac8] sm:$0xff]
        %v748 = vld [vmem:[%s339 + $0xad0] sm:$0xff]
        %v749 = vld [vmem:[%s339 + $0xad8] sm:$0xff]
        %v750 = vld [vmem:[%s339 + $0xae0] sm:$0xff]
        %v751 = vld [vmem:[%s339 + $0xae8] sm:$0xff]
        %v752 = vld [vmem:[%s339 + $0xaf0] sm:$0xff]
        %v753 = vld [vmem:[%s339 + $0xaf8] sm:$0xff]
        %v754 = vld [vmem:[%s339 + $0xb00] sm:$0xff]
        %v755 = vld [vmem:[%s339 + $0xb08] sm:$0xff]
        %v756 = vld [vmem:[%s339 + $0xb10] sm:$0xff]
        %v757 = vld [vmem:[%s339 + $0xb18] sm:$0xff]
        %v758 = vld [vmem:[%s339 + $0xb20] sm:$0xff]
        %v759 = vld [vmem:[%s339 + $0xb28] sm:$0xff]
        %v760 = vld [vmem:[%s339 + $0xb30] sm:$0xff]
        %v761 = vld [vmem:[%s339 + $0xb38] sm:$0xff]
        %v762 = vld [vmem:[%s339 + $0xb40] sm:$0xff]
        %v763 = vld [vmem:[%s339 + $0xb48] sm:$0xff]
        %v764 = vld [vmem:[%s339 + $0xb50] sm:$0xff]
        %v765 = vld [vmem:[%s339 + $0xb58] sm:$0xff]
        %v766 = vld [vmem:[%s339 + $0xb60] sm:$0xff]
        %v767 = vld [vmem:[%s339 + $0xb68] sm:$0xff]
        %v768 = vld [vmem:[%s339 + $0xb70] sm:$0xff]
        %v769 = vld [vmem:[%s339 + $0xb78] sm:$0xff]
        %v770 = vld [vmem:[%s339 + $0xb80] sm:$0xff]
        %v771 = vld [vmem:[%s339 + $0xb88] sm:$0xff]
        %v772 = vld [vmem:[%s339 + $0xb90] sm:$0xff]
        %v773 = vld [vmem:[%s339 + $0xb98] sm:$0xff]
        %v774 = vld [vmem:[%s339 + $0xba0] sm:$0xff]
        %v775 = vld [vmem:[%s339 + $0xba8] sm:$0xff]
        %v776 = vld [vmem:[%s339 + $0xbb0] sm:$0xff]
        %v777 = vld [vmem:[%s339 + $0xbb8] sm:$0xff]
        %v778 = vld [vmem:[%s339 + $0xbc0] sm:$0xff]
        %v779 = vld [vmem:[%s339 + $0xbc8] sm:$0xff]
        %v780 = vld [vmem:[%s339 + $0xbd0] sm:$0xff]
        %v781 = vld [vmem:[%s339 + $0xbd8] sm:$0xff]
        %v782 = vld [vmem:[%s339 + $0xbe0] sm:$0xff]
        %v783 = vld [vmem:[%s339 + $0xbe8] sm:$0xff]
        %v784 = vld [vmem:[%s339 + $0xbf0] sm:$0xff]
        %v785 = vld [vmem:[%s339 + $0xbf8] sm:$0xff]
        %v786 = vld [vmem:[%s339 + $0xc00] sm:$0xff]
        %v787 = vld [vmem:[%s339 + $0xc08] sm:$0xff]
        %v788 = vld [vmem:[%s339 + $0xc10] sm:$0xff]
        %v789 = vld [vmem:[%s339 + $0xc18] sm:$0xff]
        %v790 = vld [vmem:[%s339 + $0xc20] sm:$0xff]
        %v791 = vld [vmem:[%s339 + $0xc28] sm:$0xff]
        %v792 = vld [vmem:[%s339 + $0xc30] sm:$0xff]
        %v793 = vld [vmem:[%s339 + $0xc38] sm:$0xff]
        %v794 = vld [vmem:[%s339 + $0xc40] sm:$0xff]
        %v795 = vld [vmem:[%s339 + $0xc48] sm:$0xff]
        %v796 = vld [vmem:[%s339 + $0xc50] sm:$0xff]
        %v797 = vld [vmem:[%s339 + $0xc58] sm:$0xff]
        %v798 = vld [vmem:[%s339 + $0xc60] sm:$0xff]
        %v799 = vld [vmem:[%s339 + $0xc68] sm:$0xff]
        %v800 = vld [vmem:[%s339 + $0xc70] sm:$0xff]
        %v801 = vld [vmem:[%s339 + $0xc78] sm:$0xff]
        %v802 = vld [vmem:[%s339 + $0xc80] sm:$0xff]
        %v803 = vld [vmem:[%s339 + $0xc88] sm:$0xff]
        %v804 = vld [vmem:[%s339 + $0xc90] sm:$0xff]
        %v805 = vld [vmem:[%s339 + $0xc98] sm:$0xff]
        %v806 = vld [vmem:[%s339 + $0xca0] sm:$0xff]
        %v807 = vld [vmem:[%s339 + $0xca8] sm:$0xff]
        %v808 = vld [vmem:[%s339 + $0xcb0] sm:$0xff]
        %v809 = vld [vmem:[%s339 + $0xcb8] sm:$0xff]
        %v810 = vld [vmem:[%s339 + $0xcc0] sm:$0xff]
        %v811 = vld [vmem:[%s339 + $0xcc8] sm:$0xff]
        %v812 = vld [vmem:[%s339 + $0xcd0] sm:$0xff]
        %v813 = vld [vmem:[%s339 + $0xcd8] sm:$0xff]
        %v814 = vld [vmem:[%s339 + $0xce0] sm:$0xff]
        %v815 = vld [vmem:[%s339 + $0xce8] sm:$0xff]
        %v816 = vld [vmem:[%s339 + $0xcf0] sm:$0xff]
        %v817 = vld [vmem:[%s339 + $0xcf8] sm:$0xff]
        %v818 = vld [vmem:[%s339 + $0xd00] sm:$0xff]
        %v819 = vld [vmem:[%s339 + $0xd08] sm:$0xff]
        %v820 = vld [vmem:[%s339 + $0xd10] sm:$0xff]
        %v821 = vld [vmem:[%s339 + $0xd18] sm:$0xff]
        %v822 = vld [vmem:[%s339 + $0xd20] sm:$0xff]
        %v823 = vld [vmem:[%s339 + $0xd28] sm:$0xff]
        %v824 = vld [vmem:[%s339 + $0xd30] sm:$0xff]
        %v825 = vld [vmem:[%s339 + $0xd38] sm:$0xff]
        %v826 = vld [vmem:[%s339 + $0xd40] sm:$0xff]
        %v827 = vld [vmem:[%s339 + $0xd48] sm:$0xff]
        %v828 = vld [vmem:[%s339 + $0xd50] sm:$0xff]
        %v829 = vld [vmem:[%s339 + $0xd58] sm:$0xff]
        %v830 = vld [vmem:[%s339 + $0xd60] sm:$0xff]
        %v831 = vld [vmem:[%s339 + $0xd68] sm:$0xff]
        %v832 = vld [vmem:[%s339 + $0xd70] sm:$0xff]
        %v833 = vld [vmem:[%s339 + $0xd78] sm:$0xff]
        %v834 = vld [vmem:[%s339 + $0xd80] sm:$0xff]
        %v835 = vld [vmem:[%s339 + $0xd88] sm:$0xff]
        %v836 = vld [vmem:[%s339 + $0xd90] sm:$0xff]
        %v837 = vld [vmem:[%s339 + $0xd98] sm:$0xff]
        %v838 = vld [vmem:[%s339 + $0xda0] sm:$0xff]
        %v839 = vld [vmem:[%s339 + $0xda8] sm:$0xff]
        %v840 = vld [vmem:[%s339 + $0xdb0] sm:$0xff]
        %v841 = vld [vmem:[%s339 + $0xdb8] sm:$0xff]
        %v842 = vld [vmem:[%s339 + $0xdc0] sm:$0xff]
        %v843 = vld [vmem:[%s339 + $0xdc8] sm:$0xff]
        %v844 = vld [vmem:[%s339 + $0xdd0] sm:$0xff]
        %v845 = vld [vmem:[%s339 + $0xdd8] sm:$0xff]
        %v846 = vld [vmem:[%s339 + $0xde0] sm:$0xff]
        %v847 = vld [vmem:[%s339 + $0xde8] sm:$0xff]
        %v848 = vld [vmem:[%s339 + $0xdf0] sm:$0xff]
        %v849 = vld [vmem:[%s339 + $0xdf8] sm:$0xff]
        %v850 = vld [vmem:[%s339 + $0xe00] sm:$0xff]
        %v851 = vld [vmem:[%s339 + $0xe08] sm:$0xff]
        %v852 = vld [vmem:[%s339 + $0xe10] sm:$0xff]
        %v853 = vld [vmem:[%s339 + $0xe18] sm:$0xff]
        %v854 = vld [vmem:[%s339 + $0xe20] sm:$0xff]
        %v855 = vld [vmem:[%s339 + $0xe28] sm:$0xff]
        %v856 = vld [vmem:[%s339 + $0xe30] sm:$0xff]
        %v857 = vld [vmem:[%s339 + $0xe38] sm:$0xff]
        %v858 = vld [vmem:[%s339 + $0xe40] sm:$0xff]
        %v859 = vld [vmem:[%s339 + $0xe48] sm:$0xff]
        %v860 = vld [vmem:[%s339 + $0xe50] sm:$0xff]
        %v861 = vld [vmem:[%s339 + $0xe58] sm:$0xff]
        %v862 = vld [vmem:[%s339 + $0xe60] sm:$0xff]
        %v863 = vld [vmem:[%s339 + $0xe68] sm:$0xff]
        %v864 = vld [vmem:[%s339 + $0xe70] sm:$0xff]
        %v865 = vld [vmem:[%s339 + $0xe78] sm:$0xff]
        %v866 = vld [vmem:[%s339 + $0xe80] sm:$0xff]
        %v867 = vld [vmem:[%s339 + $0xe88] sm:$0xff]
        %v868 = vld [vmem:[%s339 + $0xe90] sm:$0xff]
        %v869 = vld [vmem:[%s339 + $0xe98] sm:$0xff]
        %v870 = vld [vmem:[%s339 + $0xea0] sm:$0xff]
        %v871 = vld [vmem:[%s339 + $0xea8] sm:$0xff]
        %v872 = vld [vmem:[%s339 + $0xeb0] sm:$0xff]
        %v873 = vld [vmem:[%s339 + $0xeb8] sm:$0xff]
        %v874 = vld [vmem:[%s339 + $0xec0] sm:$0xff]
        %v875 = vld [vmem:[%s339 + $0xec8] sm:$0xff]
        %v876 = vld [vmem:[%s339 + $0xed0] sm:$0xff]
        %v877 = vld [vmem:[%s339 + $0xed8] sm:$0xff]
        %v878 = vld [vmem:[%s339 + $0xee0] sm:$0xff]
        %v879 = vld [vmem:[%s339 + $0xee8] sm:$0xff]
        %v880 = vld [vmem:[%s339 + $0xef0] sm:$0xff]
        %v881 = vld [vmem:[%s339 + $0xef8] sm:$0xff]
        %v882 = vld [vmem:[%s339 + $0xf00] sm:$0xff]
        %v883 = vld [vmem:[%s339 + $0xf08] sm:$0xff]
        %v884 = vld [vmem:[%s339 + $0xf10] sm:$0xff]
        %v885 = vld [vmem:[%s339 + $0xf18] sm:$0xff]
        %v886 = vld [vmem:[%s339 + $0xf20] sm:$0xff]
        %v887 = vld [vmem:[%s339 + $0xf28] sm:$0xff]
        %v888 = vld [vmem:[%s339 + $0xf30] sm:$0xff]
        %v889 = vld [vmem:[%s339 + $0xf38] sm:$0xff]
        %v890 = vld [vmem:[%s339 + $0xf40] sm:$0xff]
        %v891 = vld [vmem:[%s339 + $0xf48] sm:$0xff]
        %v892 = vld [vmem:[%s339 + $0xf50] sm:$0xff]
        %v893 = vld [vmem:[%s339 + $0xf58] sm:$0xff]
        %v894 = vld [vmem:[%s339 + $0xf60] sm:$0xff]
        %v895 = vld [vmem:[%s339 + $0xf68] sm:$0xff]
        %v896 = vld [vmem:[%s339 + $0xf70] sm:$0xff]
        %v897 = vld [vmem:[%s339 + $0xf78] sm:$0xff]
        %v898 = vld [vmem:[%s339 + $0xf80] sm:$0xff]
        %v899 = vld [vmem:[%s339 + $0xf88] sm:$0xff]
        %v900 = vld [vmem:[%s339 + $0xf90] sm:$0xff]
        %v901 = vld [vmem:[%s339 + $0xf98] sm:$0xff]
        %v902 = vld [vmem:[%s339 + $0xfa0] sm:$0xff]
        %v903 = vld [vmem:[%s339 + $0xfa8] sm:$0xff]
        %v904 = vld [vmem:[%s339 + $0xfb0] sm:$0xff]
        %v905 = vld [vmem:[%s339 + $0xfb8] sm:$0xff]
        %v906 = vld [vmem:[%s339 + $0xfc0] sm:$0xff]
        %v907 = vld [vmem:[%s339 + $0xfc8] sm:$0xff]
        %v908 = vld [vmem:[%s339 + $0xfd0] sm:$0xff]
        %v909 = vld [vmem:[%s339 + $0xfd8] sm:$0xff]
        %v910 = vld [vmem:[%s339 + $0xfe0] sm:$0xff]
        %v911 = vld [vmem:[%s339 + $0xfe8] sm:$0xff]
        %v912 = vld [vmem:[%s339 + $0xff0] sm:$0xff]
        %v913 = vld [vmem:[%s339 + $0xff8] sm:$0xff]
        %v914 = vld [vmem:[%s339 + $0x1000] sm:$0xff]
        %v915 = vld [vmem:[%s339 + $0x1008] sm:$0xff]
        %v916 = vld [vmem:[%s339 + $0x1010] sm:$0xff]
        %v917 = vld [vmem:[%s339 + $0x1018] sm:$0xff]
        %v918 = vld [vmem:[%s339 + $0x1020] sm:$0xff]
        %v919 = vld [vmem:[%s339 + $0x1028] sm:$0xff]
        %v920 = vld [vmem:[%s339 + $0x1030] sm:$0xff]
        %v921 = vld [vmem:[%s339 + $0x1038] sm:$0xff]
        %v922 = vld [vmem:[%s339 + $0x1040] sm:$0xff]
        %v923 = vld [vmem:[%s339 + $0x1048] sm:$0xff]
        %v924 = vld [vmem:[%s339 + $0x1050] sm:$0xff]
        %v925 = vld [vmem:[%s339 + $0x1058] sm:$0xff]
        %v926 = vld [vmem:[%s339 + $0x1060] sm:$0xff]
        %v927 = vld [vmem:[%s339 + $0x1068] sm:$0xff]
        %v928 = vld [vmem:[%s339 + $0x1070] sm:$0xff]
        %v929 = vld [vmem:[%s339 + $0x1078] sm:$0xff]
        %v930 = vld [vmem:[%s339 + $0x1080] sm:$0xff]
        %v931 = vld [vmem:[%s339 + $0x1088] sm:$0xff]
        %v932 = vld [vmem:[%s339 + $0x1090] sm:$0xff]
        %v933 = vld [vmem:[%s339 + $0x1098] sm:$0xff]
        %v934 = vld [vmem:[%s339 + $0x10a0] sm:$0xff]
        %v935 = vld [vmem:[%s339 + $0x10a8] sm:$0xff]
        %v936 = vld [vmem:[%s339 + $0x10b0] sm:$0xff]
        %v937 = vld [vmem:[%s339 + $0x10b8] sm:$0xff]
        %v938 = vld [vmem:[%s339 + $0x10c0] sm:$0xff]
        %v939 = vld [vmem:[%s339 + $0x10c8] sm:$0xff]
        %v940 = vld [vmem:[%s339 + $0x10d0] sm:$0xff]
        %v941 = vld [vmem:[%s339 + $0x10d8] sm:$0xff]
        %v942 = vld [vmem:[%s339 + $0x10e0] sm:$0xff]
        %v943 = vld [vmem:[%s339 + $0x10e8] sm:$0xff]
        %v944 = vld [vmem:[%s339 + $0x10f0] sm:$0xff]
        %v945 = vld [vmem:[%s339 + $0x10f8] sm:$0xff]
        %v946 = vld [vmem:[%s339 + $0x1100] sm:$0xff]
        %v947 = vld [vmem:[%s339 + $0x1108] sm:$0xff]
        %v948 = vld [vmem:[%s339 + $0x1110] sm:$0xff]
        %v949 = vld [vmem:[%s339 + $0x1118] sm:$0xff]
        %v950 = vld [vmem:[%s339 + $0x1120] sm:$0xff]
        %v951 = vld [vmem:[%s339 + $0x1128] sm:$0xff]
        %v952 = vld [vmem:[%s339 + $0x1130] sm:$0xff]
        %v953 = vld [vmem:[%s339 + $0x1138] sm:$0xff]
        %v954 = vld [vmem:[%s339 + $0x1140] sm:$0xff]
        %v955 = vld [vmem:[%s339 + $0x1148] sm:$0xff]
        %v956 = vld [vmem:[%s339 + $0x1150] sm:$0xff]
        %v957 = vld [vmem:[%s339 + $0x1158] sm:$0xff]
        %v958 = vld [vmem:[%s339 + $0x1160] sm:$0xff]
        %v959 = vld [vmem:[%s339 + $0x1168] sm:$0xff]
        %v960 = vld [vmem:[%s339 + $0x1170] sm:$0xff]
        %v961 = vld [vmem:[%s339 + $0x1178] sm:$0xff]
        %v962 = vld [vmem:[%s339 + $0x1180] sm:$0xff]
        %v963 = vld [vmem:[%s339 + $0x1188] sm:$0xff]
        %v964 = vld [vmem:[%s339 + $0x1190] sm:$0xff]
        %v965 = vld [vmem:[%s339 + $0x1198] sm:$0xff]
        %v966 = vld [vmem:[%s339 + $0x11a0] sm:$0xff]
        %v967 = vld [vmem:[%s339 + $0x11a8] sm:$0xff]
        %v968 = vld [vmem:[%s339 + $0x11b0] sm:$0xff]
        %v969 = vld [vmem:[%s339 + $0x11b8] sm:$0xff]
        %v970 = vld [vmem:[%s339 + $0x11c0] sm:$0xff]
        %v971 = vld [vmem:[%s339 + $0x11c8] sm:$0xff]
        %v972 = vld [vmem:[%s339 + $0x11d0] sm:$0xff]
        %v973 = vld [vmem:[%s339 + $0x11d8] sm:$0xff]
        %v974 = vld [vmem:[%s339 + $0x11e0] sm:$0xff]
        %v975 = vld [vmem:[%s339 + $0x11e8] sm:$0xff]
        %v976 = vld [vmem:[%s339 + $0x11f0] sm:$0xff]
        %v977 = vld [vmem:[%s339 + $0x11f8] sm:$0xff]
        %v978 = vld [vmem:[%s339 + $0x1200] sm:$0xff]
        %v979 = vld [vmem:[%s339 + $0x1208] sm:$0xff]
        %v980 = vld [vmem:[%s339 + $0x1210] sm:$0xff]
        %v981 = vld [vmem:[%s339 + $0x1218] sm:$0xff]
        %v982 = vld [vmem:[%s339 + $0x1220] sm:$0xff]
        %v983 = vld [vmem:[%s339 + $0x1228] sm:$0xff]
        %v984 = vld [vmem:[%s339 + $0x1230] sm:$0xff]
        %v985 = vld [vmem:[%s339 + $0x1238] sm:$0xff]
        %v986 = vld [vmem:[%s339 + $0x1240] sm:$0xff]
        %v987 = vld [vmem:[%s339 + $0x1248] sm:$0xff]
        %v988 = vld [vmem:[%s339 + $0x1250] sm:$0xff]
        %v989 = vld [vmem:[%s339 + $0x1258] sm:$0xff]
        %v990 = vld [vmem:[%s339 + $0x1260] sm:$0xff]
        %v991 = vld [vmem:[%s339 + $0x1268] sm:$0xff]
        %v992 = vld [vmem:[%s339 + $0x1270] sm:$0xff]
        %v993 = vld [vmem:[%s339 + $0x1278] sm:$0xff]
        %v994 = vld [vmem:[%s339 + $0x1280] sm:$0xff]
        %v995 = vld [vmem:[%s339 + $0x1288] sm:$0xff]
        %v996 = vld [vmem:[%s339 + $0x1290] sm:$0xff]
        %v997 = vld [vmem:[%s339 + $0x1298] sm:$0xff]
        %v998 = vld [vmem:[%s339 + $0x12a0] sm:$0xff]
        %v999 = vld [vmem:[%s339 + $0x12a8] sm:$0xff]
        %v1000 = vld [vmem:[%s339 + $0x12b0] sm:$0xff]
        %v1001 = vld [vmem:[%s339 + $0x12b8] sm:$0xff]
        %v1002 = vld [vmem:[%s339 + $0x12c0] sm:$0xff]
        %v1003 = vld [vmem:[%s339 + $0x12c8] sm:$0xff]
        %v1004 = vld [vmem:[%s339 + $0x12d0] sm:$0xff]
        %v1005 = vld [vmem:[%s339 + $0x12d8] sm:$0xff]
        %v1006 = vld [vmem:[%s339 + $0x12e0] sm:$0xff]
        %v1007 = vld [vmem:[%s339 + $0x12e8] sm:$0xff]
        %v1008 = vld [vmem:[%s339 + $0x12f0] sm:$0xff]
        %v1009 = vld [vmem:[%s339 + $0x12f8] sm:$0xff]
        %v1010 = vld [vmem:[%s339 + $0x1300] sm:$0xff]
        %v1011 = vld [vmem:[%s339 + $0x1308] sm:$0xff]
        %v1012 = vld [vmem:[%s339 + $0x1310] sm:$0xff]
        %v1013 = vld [vmem:[%s339 + $0x1318] sm:$0xff]
        %v1014 = vld [vmem:[%s339 + $0x1320] sm:$0xff]
        %v1015 = vld [vmem:[%s339 + $0x1328] sm:$0xff]
        %v1016 = vld [vmem:[%s339 + $0x1330] sm:$0xff]
        %v1017 = vld [vmem:[%s339 + $0x1338] sm:$0xff]
        %v1018 = vld [vmem:[%s339 + $0x1340] sm:$0xff]
        %v1019 = vld [vmem:[%s339 + $0x1348] sm:$0xff]
        %v1020 = vld [vmem:[%s339 + $0x1350] sm:$0xff]
        %v1021 = vld [vmem:[%s339 + $0x1358] sm:$0xff]
        %v1022 = vld [vmem:[%s339 + $0x1360] sm:$0xff]
        %v1023 = vld [vmem:[%s339 + $0x1368] sm:$0xff]
        %v1024 = vld [vmem:[%s339 + $0x1370] sm:$0xff]
        %v1025 = vld [vmem:[%s339 + $0x1378] sm:$0xff]
        %v1026 = vld [vmem:[%s339 + $0x1380] sm:$0xff]
        %v1027 = vld [vmem:[%s339 + $0x1388] sm:$0xff]
        %v1028 = vld [vmem:[%s339 + $0x1390] sm:$0xff]
        %v1029 = vld [vmem:[%s339 + $0x1398] sm:$0xff]
        %v1030 = vld [vmem:[%s339 + $0x13a0] sm:$0xff]
        %v1031 = vld [vmem:[%s339 + $0x13a8] sm:$0xff]
        %v1032 = vld [vmem:[%s339 + $0x13b0] sm:$0xff]
        %v1033 = vld [vmem:[%s339 + $0x13b8] sm:$0xff]
        %v1034 = vld [vmem:[%s339 + $0x13c0] sm:$0xff]
        %v1035 = vld [vmem:[%s339 + $0x13c8] sm:$0xff]
        %v1036 = vld [vmem:[%s339 + $0x13d0] sm:$0xff]
        %v1037 = vld [vmem:[%s339 + $0x13d8] sm:$0xff]
        %v1038 = vld [vmem:[%s339 + $0x13e0] sm:$0xff]
        %v1039 = vld [vmem:[%s339 + $0x13e8] sm:$0xff]
        %v1040 = vld [vmem:[%s339 + $0x13f0] sm:$0xff]
        %v1041 = vld [vmem:[%s339 + $0x13f8] sm:$0xff]
        %v1042 = vld [vmem:[%s339 + $0x1400] sm:$0xff]
        %v1043 = vld [vmem:[%s339 + $0x1408] sm:$0xff]
        %v1044 = vld [vmem:[%s339 + $0x1410] sm:$0xff]
        %v1045 = vld [vmem:[%s339 + $0x1418] sm:$0xff]
        %v1046 = vld [vmem:[%s339 + $0x1420] sm:$0xff]
        %v1047 = vld [vmem:[%s339 + $0x1428] sm:$0xff]
        %v1048 = vld [vmem:[%s339 + $0x1430] sm:$0xff]
        %v1049 = vld [vmem:[%s339 + $0x1438] sm:$0xff]
        %v1050 = vld [vmem:[%s339 + $0x1440] sm:$0xff]
        %v1051 = vld [vmem:[%s339 + $0x1448] sm:$0xff]
        %v1052 = vld [vmem:[%s339 + $0x1450] sm:$0xff]
        %v1053 = vld [vmem:[%s339 + $0x1458] sm:$0xff]
        %v1054 = vld [vmem:[%s339 + $0x1460] sm:$0xff]
        %v1055 = vld [vmem:[%s339 + $0x1468] sm:$0xff]
        %v1056 = vld [vmem:[%s339 + $0x1470] sm:$0xff]
        %v1057 = vld [vmem:[%s339 + $0x1478] sm:$0xff]
        %v1058 = vld [vmem:[%s339 + $0x1480] sm:$0xff]
        %v1059 = vld [vmem:[%s339 + $0x1488] sm:$0xff]
        %v1060 = vld [vmem:[%s339 + $0x1490] sm:$0xff]
        %v1061 = vld [vmem:[%s339 + $0x1498] sm:$0xff]
        %v1062 = vld [vmem:[%s339 + $0x14a0] sm:$0xff]
        %v1063 = vld [vmem:[%s339 + $0x14a8] sm:$0xff]
        %v1064 = vld [vmem:[%s339 + $0x14b0] sm:$0xff]
        %v1065 = vld [vmem:[%s339 + $0x14b8] sm:$0xff]
        %v1066 = vld [vmem:[%s339 + $0x14c0] sm:$0xff]
        %v1067 = vld [vmem:[%s339 + $0x14c8] sm:$0xff]
        %v1068 = vld [vmem:[%s339 + $0x14d0] sm:$0xff]
        %v1069 = vld [vmem:[%s339 + $0x14d8] sm:$0xff]
        %v1070 = vld [vmem:[%s339 + $0x14e0] sm:$0xff]
        %v1071 = vld [vmem:[%s339 + $0x14e8] sm:$0xff]
        %v1072 = vld [vmem:[%s339 + $0x14f0] sm:$0xff]
        %v1073 = vld [vmem:[%s339 + $0x14f8] sm:$0xff]
        %v1074 = vld [vmem:[%s339 + $0x1500] sm:$0xff]
        %v1075 = vld [vmem:[%s339 + $0x1508] sm:$0xff]
        %v1076 = vld [vmem:[%s339 + $0x1510] sm:$0xff]
        %v1077 = vld [vmem:[%s339 + $0x1518] sm:$0xff]
        %v1078 = vld [vmem:[%s339 + $0x1520] sm:$0xff]
        %v1079 = vld [vmem:[%s339 + $0x1528] sm:$0xff]
        %v1080 = vld [vmem:[%s339 + $0x1530] sm:$0xff]
        %v1081 = vld [vmem:[%s339 + $0x1538] sm:$0xff]
        %v1082 = vld [vmem:[%s339 + $0x1540] sm:$0xff]
        %v1083 = vld [vmem:[%s339 + $0x1548] sm:$0xff]
        %v1084 = vld [vmem:[%s339 + $0x1550] sm:$0xff]
        %v1085 = vld [vmem:[%s339 + $0x1558] sm:$0xff]
        %v1086 = vld [vmem:[%s339 + $0x1560] sm:$0xff]
        %v1087 = vld [vmem:[%s339 + $0x1568] sm:$0xff]
        %v1088 = vld [vmem:[%s339 + $0x1570] sm:$0xff]
        %v1089 = vld [vmem:[%s339 + $0x1578] sm:$0xff]
        %v1090 = vld [vmem:[%s339 + $0x1580] sm:$0xff]
        %v1091 = vld [vmem:[%s339 + $0x1588] sm:$0xff]
        %v1092 = vld [vmem:[%s339 + $0x1590] sm:$0xff]
        %v1093 = vld [vmem:[%s339 + $0x1598] sm:$0xff]
        %v1094 = vld [vmem:[%s339 + $0x15a0] sm:$0xff]
        %v1095 = vld [vmem:[%s339 + $0x15a8] sm:$0xff]
        %v1096 = vld [vmem:[%s339 + $0x15b0] sm:$0xff]
        %v1097 = vld [vmem:[%s339 + $0x15b8] sm:$0xff]
        %v1098 = vld [vmem:[%s339 + $0x15c0] sm:$0xff]
        %v1099 = vld [vmem:[%s339 + $0x15c8] sm:$0xff]
        %v1100 = vld [vmem:[%s339 + $0x15d0] sm:$0xff]
        %v1101 = vld [vmem:[%s339 + $0x15d8] sm:$0xff]
        %v1102 = vld [vmem:[%s339 + $0x15e0] sm:$0xff]
        %v1103 = vld [vmem:[%s339 + $0x15e8] sm:$0xff]
        %v1104 = vld [vmem:[%s339 + $0x15f0] sm:$0xff]
        %v1105 = vld [vmem:[%s339 + $0x15f8] sm:$0xff]
        %v1106 = vld [vmem:[%s339 + $0x1600] sm:$0xff]
        %v1107 = vld [vmem:[%s339 + $0x1608] sm:$0xff]
        %v1108 = vld [vmem:[%s339 + $0x1610] sm:$0xff]
        %v1109 = vld [vmem:[%s339 + $0x1618] sm:$0xff]
        %v1110 = vld [vmem:[%s339 + $0x1620] sm:$0xff]
        %v1111 = vld [vmem:[%s339 + $0x1628] sm:$0xff]
        %v1112 = vld [vmem:[%s339 + $0x1630] sm:$0xff]
        %v1113 = vld [vmem:[%s339 + $0x1638] sm:$0xff]
        %v1114 = vld [vmem:[%s339 + $0x1640] sm:$0xff]
        %v1115 = vld [vmem:[%s339 + $0x1648] sm:$0xff]
        %v1116 = vld [vmem:[%s339 + $0x1650] sm:$0xff]
        %v1117 = vld [vmem:[%s339 + $0x1658] sm:$0xff]
        %v1118 = vld [vmem:[%s339 + $0x1660] sm:$0xff]
        %v1119 = vld [vmem:[%s339 + $0x1668] sm:$0xff]
        %v1120 = vld [vmem:[%s339 + $0x1670] sm:$0xff]
        %v1121 = vld [vmem:[%s339 + $0x1678] sm:$0xff]
        %v1122 = vld [vmem:[%s339 + $0x1680] sm:$0xff]
        %v1123 = vld [vmem:[%s339 + $0x1688] sm:$0xff]
        %v1124 = vld [vmem:[%s339 + $0x1690] sm:$0xff]
        %v1125 = vld [vmem:[%s339 + $0x1698] sm:$0xff]
        %v1126 = vld [vmem:[%s339 + $0x16a0] sm:$0xff]
        %v1127 = vld [vmem:[%s339 + $0x16a8] sm:$0xff]
        %v1128 = vld [vmem:[%s339 + $0x16b0] sm:$0xff]
        %v1129 = vld [vmem:[%s339 + $0x16b8] sm:$0xff]
        %v1130 = vld [vmem:[%s339 + $0x16c0] sm:$0xff]
        %v1131 = vld [vmem:[%s339 + $0x16c8] sm:$0xff]
        %v1132 = vld [vmem:[%s339 + $0x16d0] sm:$0xff]
        %v1133 = vld [vmem:[%s339 + $0x16d8] sm:$0xff]
        %v1134 = vld [vmem:[%s339 + $0x16e0] sm:$0xff]
        %v1135 = vld [vmem:[%s339 + $0x16e8] sm:$0xff]
        %v1136 = vld [vmem:[%s339 + $0x16f0] sm:$0xff]
        %v1137 = vld [vmem:[%s339 + $0x16f8] sm:$0xff]
        %v1138 = vld [vmem:[%s339 + $0x1700] sm:$0xff]
        %v1139 = vld [vmem:[%s339 + $0x1708] sm:$0xff]
        %v1140 = vld [vmem:[%s339 + $0x1710] sm:$0xff]
        %v1141 = vld [vmem:[%s339 + $0x1718] sm:$0xff]
        %v1142 = vld [vmem:[%s339 + $0x1720] sm:$0xff]
        %v1143 = vld [vmem:[%s339 + $0x1728] sm:$0xff]
        %v1144 = vld [vmem:[%s339 + $0x1730] sm:$0xff]
        %v1145 = vld [vmem:[%s339 + $0x1738] sm:$0xff]
        %v1146 = vld [vmem:[%s339 + $0x1740] sm:$0xff]
        %v1147 = vld [vmem:[%s339 + $0x1748] sm:$0xff]
        %v1148 = vld [vmem:[%s339 + $0x1750] sm:$0xff]
        %v1149 = vld [vmem:[%s339 + $0x1758] sm:$0xff]
        %v1150 = vld [vmem:[%s339 + $0x1760] sm:$0xff]
        %v1151 = vld [vmem:[%s339 + $0x1768] sm:$0xff]
        %v1152 = vld [vmem:[%s339 + $0x1770] sm:$0xff]
        %v1153 = vld [vmem:[%s339 + $0x1778] sm:$0xff]
        %v1154 = vld [vmem:[%s339 + $0x1780] sm:$0xff]
        %v1155 = vld [vmem:[%s339 + $0x1788] sm:$0xff]
        %v1156 = vld [vmem:[%s339 + $0x1790] sm:$0xff]
        %v1157 = vld [vmem:[%s339 + $0x1798] sm:$0xff]
        %v1158 = vld [vmem:[%s339 + $0x17a0] sm:$0xff]
        %v1159 = vld [vmem:[%s339 + $0x17a8] sm:$0xff]
        %v1160 = vld [vmem:[%s339 + $0x17b0] sm:$0xff]
        %v1161 = vld [vmem:[%s339 + $0x17b8] sm:$0xff]
        %v1162 = vld [vmem:[%s339 + $0x17c0] sm:$0xff]
        %v1163 = vld [vmem:[%s339 + $0x17c8] sm:$0xff]
        %v1164 = vld [vmem:[%s339 + $0x17d0] sm:$0xff]
        %v1165 = vld [vmem:[%s339 + $0x17d8] sm:$0xff]
        %v1166 = vld [vmem:[%s339 + $0x17e0] sm:$0xff]
        %v1167 = vld [vmem:[%s339 + $0x17e8] sm:$0xff]
        %v1168 = vld [vmem:[%s339 + $0x17f0] sm:$0xff]
        %v1169 = vld [vmem:[%s339 + $0x17f8] sm:$0xff]
        %v1170 = vld [vmem:[%s339 + $0x1800] sm:$0xff]
        %v1171 = vld [vmem:[%s339 + $0x1808] sm:$0xff]
        %v1172 = vld [vmem:[%s339 + $0x1810] sm:$0xff]
        %v1173 = vld [vmem:[%s339 + $0x1818] sm:$0xff]
        %v1174 = vld [vmem:[%s339 + $0x1820] sm:$0xff]
        %v1175 = vld [vmem:[%s339 + $0x1828] sm:$0xff]
        %v1176 = vld [vmem:[%s339 + $0x1830] sm:$0xff]
        %v1177 = vld [vmem:[%s339 + $0x1838] sm:$0xff]
        %v1178 = vld [vmem:[%s339 + $0x1840] sm:$0xff]
        %v1179 = vld [vmem:[%s339 + $0x1848] sm:$0xff]
        %v1180 = vld [vmem:[%s339 + $0x1850] sm:$0xff]
        %v1181 = vld [vmem:[%s339 + $0x1858] sm:$0xff]
        %v1182 = vld [vmem:[%s339 + $0x1860] sm:$0xff]
        %v1183 = vld [vmem:[%s339 + $0x1868] sm:$0xff]
        %v1184 = vld [vmem:[%s339 + $0x1870] sm:$0xff]
        %v1185 = vld [vmem:[%s339 + $0x1878] sm:$0xff]
        %v1186 = vld [vmem:[%s339 + $0x1880] sm:$0xff]
        %v1187 = vld [vmem:[%s339 + $0x1888] sm:$0xff]
        %v1188 = vld [vmem:[%s339 + $0x1890] sm:$0xff]
        %v1189 = vld [vmem:[%s339 + $0x1898] sm:$0xff]
        %v1190 = vld [vmem:[%s339 + $0x18a0] sm:$0xff]
        %v1191 = vld [vmem:[%s339 + $0x18a8] sm:$0xff]
        %v1192 = vld [vmem:[%s339 + $0x18b0] sm:$0xff]
        %v1193 = vld [vmem:[%s339 + $0x18b8] sm:$0xff]
        %v1194 = vld [vmem:[%s339 + $0x18c0] sm:$0xff]
        %v1195 = vld [vmem:[%s339 + $0x18c8] sm:$0xff]
        %v1196 = vld [vmem:[%s339 + $0x18d0] sm:$0xff]
        %v1197 = vld [vmem:[%s339 + $0x18d8] sm:$0xff]
        %v1198 = vld [vmem:[%s339 + $0x18e0] sm:$0xff]
        %v1199 = vld [vmem:[%s339 + $0x18e8] sm:$0xff]
        %v1200 = vld [vmem:[%s339 + $0x18f0] sm:$0xff]
        %v1201 = vld [vmem:[%s339 + $0x18f8] sm:$0xff]
        %v1202 = vld [vmem:[%s339 + $0x1900] sm:$0xff]
        %v1203 = vld [vmem:[%s339 + $0x1908] sm:$0xff]
        %v1204 = vld [vmem:[%s339 + $0x1910] sm:$0xff]
        %v1205 = vld [vmem:[%s339 + $0x1918] sm:$0xff]
        %v1206 = vld [vmem:[%s339 + $0x1920] sm:$0xff]
        %v1207 = vld [vmem:[%s339 + $0x1928] sm:$0xff]
        %v1208 = vld [vmem:[%s339 + $0x1930] sm:$0xff]
        %v1209 = vld [vmem:[%s339 + $0x1938] sm:$0xff]
        %v1210 = vld [vmem:[%s339 + $0x1940] sm:$0xff]
        %v1211 = vld [vmem:[%s339 + $0x1948] sm:$0xff]
        %v1212 = vld [vmem:[%s339 + $0x1950] sm:$0xff]
        %v1213 = vld [vmem:[%s339 + $0x1958] sm:$0xff]
        %v1214 = vld [vmem:[%s339 + $0x1960] sm:$0xff]
        %v1215 = vld [vmem:[%s339 + $0x1968] sm:$0xff]
        %v1216 = vld [vmem:[%s339 + $0x1970] sm:$0xff]
        %v1217 = vld [vmem:[%s339 + $0x1978] sm:$0xff]
        %v1218 = vld [vmem:[%s339 + $0x1980] sm:$0xff]
        %v1219 = vld [vmem:[%s339 + $0x1988] sm:$0xff]
        %v1220 = vld [vmem:[%s339 + $0x1990] sm:$0xff]
        %v1221 = vld [vmem:[%s339 + $0x1998] sm:$0xff]
        %v1222 = vld [vmem:[%s339 + $0x19a0] sm:$0xff]
        %v1223 = vld [vmem:[%s339 + $0x19a8] sm:$0xff]
        %v1224 = vld [vmem:[%s339 + $0x19b0] sm:$0xff]
        %v1225 = vld [vmem:[%s339 + $0x19b8] sm:$0xff]
        %v1226 = vld [vmem:[%s339 + $0x19c0] sm:$0xff]
        %v1227 = vld [vmem:[%s339 + $0x19c8] sm:$0xff]
        %v1228 = vld [vmem:[%s339 + $0x19d0] sm:$0xff]
        %v1229 = vld [vmem:[%s339 + $0x19d8] sm:$0xff]
        %v1230 = vld [vmem:[%s339 + $0x19e0] sm:$0xff]
        %v1231 = vld [vmem:[%s339 + $0x19e8] sm:$0xff]
        %v1232 = vld [vmem:[%s339 + $0x19f0] sm:$0xff]
        %v1233 = vld [vmem:[%s339 + $0x19f8] sm:$0xff]
        %v1234 = vld [vmem:[%s339 + $0x1a00] sm:$0xff]
        %v1235 = vld [vmem:[%s339 + $0x1a08] sm:$0xff]
        %v1236 = vld [vmem:[%s339 + $0x1a10] sm:$0xff]
        %v1237 = vld [vmem:[%s339 + $0x1a18] sm:$0xff]
        %v1238 = vld [vmem:[%s339 + $0x1a20] sm:$0xff]
        %v1239 = vld [vmem:[%s339 + $0x1a28] sm:$0xff]
        %v1240 = vld [vmem:[%s339 + $0x1a30] sm:$0xff]
        %v1241 = vld [vmem:[%s339 + $0x1a38] sm:$0xff]
        %v1242 = vld [vmem:[%s339 + $0x1a40] sm:$0xff]
        %v1243 = vld [vmem:[%s339 + $0x1a48] sm:$0xff]
        %v1244 = vld [vmem:[%s339 + $0x1a50] sm:$0xff]
        %v1245 = vld [vmem:[%s339 + $0x1a58] sm:$0xff]
        %v1246 = vld [vmem:[%s339 + $0x1a60] sm:$0xff]
        %v1247 = vld [vmem:[%s339 + $0x1a68] sm:$0xff]
        %v1248 = vld [vmem:[%s339 + $0x1a70] sm:$0xff]
        %v1249 = vld [vmem:[%s339 + $0x1a78] sm:$0xff]
        %v1250 = vld [vmem:[%s339 + $0x1a80] sm:$0xff]
        %v1251 = vld [vmem:[%s339 + $0x1a88] sm:$0xff]
        %v1252 = vld [vmem:[%s339 + $0x1a90] sm:$0xff]
        %v1253 = vld [vmem:[%s339 + $0x1a98] sm:$0xff]
        %v1254 = vld [vmem:[%s339 + $0x1aa0] sm:$0xff]
        %v1255 = vld [vmem:[%s339 + $0x1aa8] sm:$0xff]
        %v1256 = vld [vmem:[%s339 + $0x1ab0] sm:$0xff]
        %v1257 = vld [vmem:[%s339 + $0x1ab8] sm:$0xff]
        %v1258 = vld [vmem:[%s339 + $0x1ac0] sm:$0xff]
        %v1259 = vld [vmem:[%s339 + $0x1ac8] sm:$0xff]
        %v1260 = vld [vmem:[%s339 + $0x1ad0] sm:$0xff]
        %v1261 = vld [vmem:[%s339 + $0x1ad8] sm:$0xff]
        %v1262 = vld [vmem:[%s339 + $0x1ae0] sm:$0xff]
        %v1263 = vld [vmem:[%s339 + $0x1ae8] sm:$0xff]
        %v1264 = vld [vmem:[%s339 + $0x1af0] sm:$0xff]
        %v1265 = vld [vmem:[%s339 + $0x1af8] sm:$0xff]
        %v1266 = vld [vmem:[%s339 + $0x1b00] sm:$0xff]
        %v1267 = vld [vmem:[%s339 + $0x1b08] sm:$0xff]
        %v1268 = vld [vmem:[%s339 + $0x1b10] sm:$0xff]
        %v1269 = vld [vmem:[%s339 + $0x1b18] sm:$0xff]
        %v1270 = vld [vmem:[%s339 + $0x1b20] sm:$0xff]
        %v1271 = vld [vmem:[%s339 + $0x1b28] sm:$0xff]
        %v1272 = vld [vmem:[%s339 + $0x1b30] sm:$0xff]
        %v1273 = vld [vmem:[%s339 + $0x1b38] sm:$0xff]
        %v1274 = vld [vmem:[%s339 + $0x1b40] sm:$0xff]
        %v1275 = vld [vmem:[%s339 + $0x1b48] sm:$0xff]
        %v1276 = vld [vmem:[%s339 + $0x1b50] sm:$0xff]
        %v1277 = vld [vmem:[%s339 + $0x1b58] sm:$0xff]
        %v1278 = vld [vmem:[%s339 + $0x1b60] sm:$0xff]
        %v1279 = vld [vmem:[%s339 + $0x1b68] sm:$0xff]
        %v1280 = vld [vmem:[%s339 + $0x1b70] sm:$0xff]
        %v1281 = vld [vmem:[%s339 + $0x1b78] sm:$0xff]
        %v1282 = vld [vmem:[%s339 + $0x1b80] sm:$0xff]
        %v1283 = vld [vmem:[%s339 + $0x1b88] sm:$0xff]
        %v1284 = vld [vmem:[%s339 + $0x1b90] sm:$0xff]
        %v1285 = vld [vmem:[%s339 + $0x1b98] sm:$0xff]
        %v1286 = vld [vmem:[%s339 + $0x1ba0] sm:$0xff]
        %v1287 = vld [vmem:[%s339 + $0x1ba8] sm:$0xff]
        %v1288 = vld [vmem:[%s339 + $0x1bb0] sm:$0xff]
        %v1289 = vld [vmem:[%s339 + $0x1bb8] sm:$0xff]
        %v1290 = vld [vmem:[%s339 + $0x1bc0] sm:$0xff]
        %v1291 = vld [vmem:[%s339 + $0x1bc8] sm:$0xff]
        %v1292 = vld [vmem:[%s339 + $0x1bd0] sm:$0xff]
        %v1293 = vld [vmem:[%s339 + $0x1bd8] sm:$0xff]
        %v1294 = vld [vmem:[%s339 + $0x1be0] sm:$0xff]
        %v1295 = vld [vmem:[%s339 + $0x1be8] sm:$0xff]
        %v1296 = vld [vmem:[%s339 + $0x1bf0] sm:$0xff]
        %v1297 = vld [vmem:[%s339 + $0x1bf8] sm:$0xff]
        %v1298 = vld [vmem:[%s339 + $0x1c00] sm:$0xff]
        %v1299 = vld [vmem:[%s339 + $0x1c08] sm:$0xff]
        %v1300 = vld [vmem:[%s339 + $0x1c10] sm:$0xff]
        %v1301 = vld [vmem:[%s339 + $0x1c18] sm:$0xff]
        %v1302 = vld [vmem:[%s339 + $0x1c20] sm:$0xff]
        %v1303 = vld [vmem:[%s339 + $0x1c28] sm:$0xff]
        %v1304 = vld [vmem:[%s339 + $0x1c30] sm:$0xff]
        %v1305 = vld [vmem:[%s339 + $0x1c38] sm:$0xff]
        %v1306 = vld [vmem:[%s339 + $0x1c40] sm:$0xff]
        %v1307 = vld [vmem:[%s339 + $0x1c48] sm:$0xff]
        %v1308 = vld [vmem:[%s339 + $0x1c50] sm:$0xff]
        %v1309 = vld [vmem:[%s339 + $0x1c58] sm:$0xff]
        %v1310 = vld [vmem:[%s339 + $0x1c60] sm:$0xff]
        %v1311 = vld [vmem:[%s339 + $0x1c68] sm:$0xff]
        %v1312 = vld [vmem:[%s339 + $0x1c70] sm:$0xff]
        %v1313 = vld [vmem:[%s339 + $0x1c78] sm:$0xff]
        %v1314 = vld [vmem:[%s339 + $0x1c80] sm:$0xff]
        %v1315 = vld [vmem:[%s339 + $0x1c88] sm:$0xff]
        %v1316 = vld [vmem:[%s339 + $0x1c90] sm:$0xff]
        %v1317 = vld [vmem:[%s339 + $0x1c98] sm:$0xff]
        %v1318 = vld [vmem:[%s339 + $0x1ca0] sm:$0xff]
        %v1319 = vld [vmem:[%s339 + $0x1ca8] sm:$0xff]
        %v1320 = vld [vmem:[%s339 + $0x1cb0] sm:$0xff]
        %v1321 = vld [vmem:[%s339 + $0x1cb8] sm:$0xff]
        %v1322 = vld [vmem:[%s339 + $0x1cc0] sm:$0xff]
        %v1323 = vld [vmem:[%s339 + $0x1cc8] sm:$0xff]
        %v1324 = vld [vmem:[%s339 + $0x1cd0] sm:$0xff]
        %v1325 = vld [vmem:[%s339 + $0x1cd8] sm:$0xff]
        %v1326 = vld [vmem:[%s339 + $0x1ce0] sm:$0xff]
        %v1327 = vld [vmem:[%s339 + $0x1ce8] sm:$0xff]
        %v1328 = vld [vmem:[%s339 + $0x1cf0] sm:$0xff]
        %v1329 = vld [vmem:[%s339 + $0x1cf8] sm:$0xff]
        %v1330 = vld [vmem:[%s339 + $0x1d00] sm:$0xff]
        %v1331 = vld [vmem:[%s339 + $0x1d08] sm:$0xff]
        %v1332 = vld [vmem:[%s339 + $0x1d10] sm:$0xff]
        %v1333 = vld [vmem:[%s339 + $0x1d18] sm:$0xff]
        %v1334 = vld [vmem:[%s339 + $0x1d20] sm:$0xff]
        %v1335 = vld [vmem:[%s339 + $0x1d28] sm:$0xff]
        %v1336 = vld [vmem:[%s339 + $0x1d30] sm:$0xff]
        %v1337 = vld [vmem:[%s339 + $0x1d38] sm:$0xff]
        %v1338 = vld [vmem:[%s339 + $0x1d40] sm:$0xff]
        %v1339 = vld [vmem:[%s339 + $0x1d48] sm:$0xff]
        %v1340 = vld [vmem:[%s339 + $0x1d50] sm:$0xff]
        %v1341 = vld [vmem:[%s339 + $0x1d58] sm:$0xff]
        %v1342 = vld [vmem:[%s339 + $0x1d60] sm:$0xff]
        %v1343 = vld [vmem:[%s339 + $0x1d68] sm:$0xff]
        %v1344 = vld [vmem:[%s339 + $0x1d70] sm:$0xff]
        %v1345 = vld [vmem:[%s339 + $0x1d78] sm:$0xff]
        %v1346 = vld [vmem:[%s339 + $0x1d80] sm:$0xff]
        %v1347 = vld [vmem:[%s339 + $0x1d88] sm:$0xff]
        %v1348 = vld [vmem:[%s339 + $0x1d90] sm:$0xff]
        %v1349 = vld [vmem:[%s339 + $0x1d98] sm:$0xff]
        %v1350 = vld [vmem:[%s339 + $0x1da0] sm:$0xff]
        %v1351 = vld [vmem:[%s339 + $0x1da8] sm:$0xff]
        %v1352 = vld [vmem:[%s339 + $0x1db0] sm:$0xff]
        %v1353 = vld [vmem:[%s339 + $0x1db8] sm:$0xff]
        %v1354 = vld [vmem:[%s339 + $0x1dc0] sm:$0xff]
        %v1355 = vld [vmem:[%s339 + $0x1dc8] sm:$0xff]
        %v1356 = vld [vmem:[%s339 + $0x1dd0] sm:$0xff]
        %v1357 = vld [vmem:[%s339 + $0x1dd8] sm:$0xff]
        %v1358 = vld [vmem:[%s339 + $0x1de0] sm:$0xff]
        %v1359 = vld [vmem:[%s339 + $0x1de8] sm:$0xff]
        %v1360 = vld [vmem:[%s339 + $0x1df0] sm:$0xff]
        %v1361 = vld [vmem:[%s339 + $0x1df8] sm:$0xff]
        %v1362 = vld [vmem:[%s339 + $0x1e00] sm:$0xff]
        %v1363 = vld [vmem:[%s339 + $0x1e08] sm:$0xff]
        %v1364 = vld [vmem:[%s339 + $0x1e10] sm:$0xff]
        %v1365 = vld [vmem:[%s339 + $0x1e18] sm:$0xff]
        %v1366 = vld [vmem:[%s339 + $0x1e20] sm:$0xff]
        %v1367 = vld [vmem:[%s339 + $0x1e28] sm:$0xff]
        %v1368 = vld [vmem:[%s339 + $0x1e30] sm:$0xff]
        %v1369 = vld [vmem:[%s339 + $0x1e38] sm:$0xff]
        %v1370 = vld [vmem:[%s339 + $0x1e40] sm:$0xff]
        %v1371 = vld [vmem:[%s339 + $0x1e48] sm:$0xff]
        %v1372 = vld [vmem:[%s339 + $0x1e50] sm:$0xff]
        %v1373 = vld [vmem:[%s339 + $0x1e58] sm:$0xff]
        %v1374 = vld [vmem:[%s339 + $0x1e60] sm:$0xff]
        %v1375 = vld [vmem:[%s339 + $0x1e68] sm:$0xff]
        %v1376 = vld [vmem:[%s339 + $0x1e70] sm:$0xff]
        %v1377 = vld [vmem:[%s339 + $0x1e78] sm:$0xff]
        %v1378 = vld [vmem:[%s339 + $0x1e80] sm:$0xff]
        %v1379 = vld [vmem:[%s339 + $0x1e88] sm:$0xff]
        %v1380 = vld [vmem:[%s339 + $0x1e90] sm:$0xff]
        %v1381 = vld [vmem:[%s339 + $0x1e98] sm:$0xff]
        %v1382 = vld [vmem:[%s339 + $0x1ea0] sm:$0xff]
        %v1383 = vld [vmem:[%s339 + $0x1ea8] sm:$0xff]
        %v1384 = vld [vmem:[%s339 + $0x1eb0] sm:$0xff]
        %v1385 = vld [vmem:[%s339 + $0x1eb8] sm:$0xff]
        %v1386 = vld [vmem:[%s339 + $0x1ec0] sm:$0xff]
        %v1387 = vld [vmem:[%s339 + $0x1ec8] sm:$0xff]
        %v1388 = vld [vmem:[%s339 + $0x1ed0] sm:$0xff]
        %v1389 = vld [vmem:[%s339 + $0x1ed8] sm:$0xff]
        %v1390 = vld [vmem:[%s339 + $0x1ee0] sm:$0xff]
        %v1391 = vld [vmem:[%s339 + $0x1ee8] sm:$0xff]
        %v1392 = vld [vmem:[%s339 + $0x1ef0] sm:$0xff]
        %v1393 = vld [vmem:[%s339 + $0x1ef8] sm:$0xff]
        %v1394 = vld [vmem:[%s339 + $0x1f00] sm:$0xff]
        %v1395 = vld [vmem:[%s339 + $0x1f08] sm:$0xff]
        %v1396 = vld [vmem:[%s339 + $0x1f10] sm:$0xff]
        %v1397 = vld [vmem:[%s339 + $0x1f18] sm:$0xff]
        %v1398 = vld [vmem:[%s339 + $0x1f20] sm:$0xff]
        %v1399 = vld [vmem:[%s339 + $0x1f28] sm:$0xff]
        %v1400 = vld [vmem:[%s339 + $0x1f30] sm:$0xff]
        %v1401 = vld [vmem:[%s339 + $0x1f38] sm:$0xff]
        %v1402 = vld [vmem:[%s339 + $0x1f40] sm:$0xff]
        %v1403 = vld [vmem:[%s339 + $0x1f48] sm:$0xff]
        %v1404 = vld [vmem:[%s339 + $0x1f50] sm:$0xff]
        %v1405 = vld [vmem:[%s339 + $0x1f58] sm:$0xff]
        %v1406 = vld [vmem:[%s339 + $0x1f60] sm:$0xff]
        %v1407 = vld [vmem:[%s339 + $0x1f68] sm:$0xff]
        %v1408 = vld [vmem:[%s339 + $0x1f70] sm:$0xff]
        %v1409 = vld [vmem:[%s339 + $0x1f78] sm:$0xff]
        %v1410 = vld [vmem:[%s339 + $0x1f80] sm:$0xff]
        %v1411 = vld [vmem:[%s339 + $0x1f88] sm:$0xff]
        %v1412 = vld [vmem:[%s339 + $0x1f90] sm:$0xff]
        %v1413 = vld [vmem:[%s339 + $0x1f98] sm:$0xff]
        %v1414 = vld [vmem:[%s339 + $0x1fa0] sm:$0xff]
        %v1415 = vld [vmem:[%s339 + $0x1fa8] sm:$0xff]
        %v1416 = vld [vmem:[%s339 + $0x1fb0] sm:$0xff]
        %v1417 = vld [vmem:[%s339 + $0x1fb8] sm:$0xff]
        %v1418 = vld [vmem:[%s339 + $0x1fc0] sm:$0xff]
        %v1419 = vld [vmem:[%s339 + $0x1fc8] sm:$0xff]
        %v1420 = vld [vmem:[%s339 + $0x1fd0] sm:$0xff]
        %v1421 = vld [vmem:[%s339 + $0x1fd8] sm:$0xff]
        %v1422 = vld [vmem:[%s339 + $0x1fe0] sm:$0xff]
        %v1423 = vld [vmem:[%s339 + $0x1fe8] sm:$0xff]
        %v1424 = vld [vmem:[%s339 + $0x1ff0] sm:$0xff]
        %v1425 = vld [vmem:[%s339 + $0x1ff8] sm:$0xff]
        %v1428 = vcombine.high %v400, %v400
        %v1430 = vunpack.c.l.s4 1983009808
        %v1431 = vunpack.c.0.s8 %v1430
        %v1432 = vlaneseq
        %v1433 = vshrl.u32 %v1432, 7
        %v1434 = vsub.s32 %v1431, %v1433
        %v1435 = vrot.slane %v400, %v1434
        %v1437 = vunpack.c.l.s4 1983009808
        %v1438 = vunpack.c.0.s8 %v1437
        %v1439 = vlaneseq
        %v1440 = vshrl.u32 %v1439, 7
        %v1441 = vsub.s32 %v1438, %v1440
        %v1442 = vrot.slane %v1428, %v1441
        %v1443 = vcombine.high %v1435, %v1435
        %v1444 = vcombine.high %v1442, %v1442
        %v1445 = vcombine.high %v401, %v401
        %v1447 = vunpack.c.l.s4 1983009808
        %v1448 = vunpack.c.0.s8 %v1447
        %v1449 = vlaneseq
        %v1450 = vshrl.u32 %v1449, 7
        %v1451 = vsub.s32 %v1448, %v1450
        %v1452 = vrot.slane %v401, %v1451
        %v1454 = vunpack.c.l.s4 1983009808
        %v1455 = vunpack.c.0.s8 %v1454
        %v1456 = vlaneseq
        %v1457 = vshrl.u32 %v1456, 7
        %v1458 = vsub.s32 %v1455, %v1457
        %v1459 = vrot.slane %v1445, %v1458
        %v1460 = vcombine.high %v1452, %v1452
        %v1461 = vcombine.high %v1459, %v1459
        %1470 = vmatprep.subr.mxu0 %v523
        %1471 = vmatpush1.msra.mxu0 %v522
        %1472 = vmatprep.subr.mxu0 %v515
        %1473 = vmatpush1.msra.mxu0 %v514
        %1474 = vmatprep.subr.mxu0 %v507
        %1475 = vmatpush1.msra.mxu0 %v506
        %1476 = vmatprep.subr.mxu0 %v499
        %1477 = vmatpush1.msra.mxu0 %v498
        %1478 = vmatprep.subr.mxu0 %v491
        %1479 = vmatpush1.msra.mxu0 %v490
        %1480 = vmatprep.subr.mxu0 %v483
        %1481 = vmatpush1.msra.mxu0 %v482
        %1482 = vmatprep.subr.mxu0 %v475
        %1483 = vmatpush1.msra.mxu0 %v474
        %1484 = vmatprep.subr.mxu0 %v467
        %1485 = vmatpush1.msra.mxu0 %v466
        %1486 = vmatprep.subr.mxu0 %v459
        %1487 = vmatpush1.msra.mxu0 %v458
        %1488 = vmatprep.subr.mxu0 %v451
        %1489 = vmatpush1.msra.mxu0 %v450
        %1490 = vmatprep.subr.mxu0 %v443
        %1491 = vmatpush1.msra.mxu0 %v442
        %1492 = vmatprep.subr.mxu0 %v435
        %1493 = vmatpush1.msra.mxu0 %v434
        %1494 = vmatprep.subr.mxu0 %v427
        %1495 = vmatpush1.msra.mxu0 %v426
        %1496 = vmatprep.subr.mxu0 %v419
        %1497 = vmatpush1.msra.mxu0 %v418
        %1498 = vmatprep.subr.mxu0 %v411
        %1499 = vmatpush1.msra.mxu0 %v410
        %1500 = vmatprep.subr.mxu0 %v403
        %1501 = vmatpush1.msra.mxu0 %v402
        %1502 = vmatprep.subr.mxu0 %v651
        %1503 = vmatpush2.msra.mxu0 %v650
        %1504 = vmatprep.subr.mxu0 %v643
        %1505 = vmatpush2.msra.mxu0 %v642
        %1506 = vmatprep.subr.mxu0 %v635
        %1507 = vmatpush2.msra.mxu0 %v634
        %1508 = vmatprep.subr.mxu0 %v627
        %1509 = vmatpush2.msra.mxu0 %v626
        %1510 = vmatprep.subr.mxu0 %v619
        %1511 = vmatpush2.msra.mxu0 %v618
        %1512 = vmatprep.subr.mxu0 %v611
        %1513 = vmatpush2.msra.mxu0 %v610
        %1514 = vmatprep.subr.mxu0 %v603
        %1515 = vmatpush2.msra.mxu0 %v602
        %1516 = vmatprep.subr.mxu0 %v595
        %1517 = vmatpush2.msra.mxu0 %v594
        %1518 = vmatprep.subr.mxu0 %v587
        %1519 = vmatpush2.msra.mxu0 %v586
        %1520 = vmatprep.subr.mxu0 %v579
        %1521 = vmatpush2.msra.mxu0 %v578
        %1522 = vmatprep.subr.mxu0 %v571
        %1523 = vmatpush2.msra.mxu0 %v570
        %1524 = vmatprep.subr.mxu0 %v563
        %1525 = vmatpush2.msra.mxu0 %v562
        %1526 = vmatprep.subr.mxu0 %v555
        %1527 = vmatpush2.msra.mxu0 %v554
        %1528 = vmatprep.subr.mxu0 %v547
        %1529 = vmatpush2.msra.mxu0 %v546
        %1530 = vmatprep.subr.mxu0 %v539
        %1531 = vmatpush2.msra.mxu0 %v538
        %1532 = vmatprep.subr.mxu0 %v531
        %1533 = vmatpush2.msra.mxu0 %v530
        %1534 = vmatprep.mubr.f32.mxu0 %v1443
        %1535 = vmatmul.mubr.f32.gmra.mxu0 %v1435
        %v1536 = vpop.f32.mrf.mxu0
        %v1537 = vadd.f32 0.0, %v1536
        %v1538 = vpop.f32.mrf.mxu0
        %v1539 = vadd.f32 0.0, %v1538
        %1540 = vdwg.mxu0
        %1541 = vmatprep.subr.mxu0 %v779
        %1542 = vmatpush1.msra.mxu0 %v778
        %1543 = vmatprep.subr.mxu0 %v771
        %1544 = vmatpush1.msra.mxu0 %v770
        %1545 = vmatprep.subr.mxu0 %v763
        %1546 = vmatpush1.msra.mxu0 %v762
        %1547 = vmatprep.subr.mxu0 %v755
        %1548 = vmatpush1.msra.mxu0 %v754
        %1549 = vmatprep.subr.mxu0 %v747
        %1550 = vmatpush1.msra.mxu0 %v746
        %1551 = vmatprep.subr.mxu0 %v739
        %1552 = vmatpush1.msra.mxu0 %v738
        %1553 = vmatprep.subr.mxu0 %v731
        %1554 = vmatpush1.msra.mxu0 %v730
        %1555 = vmatprep.subr.mxu0 %v723
        %1556 = vmatpush1.msra.mxu0 %v722
        %1557 = vmatprep.subr.mxu0 %v715
        %1558 = vmatpush1.msra.mxu0 %v714
        %1559 = vmatprep.subr.mxu0 %v707
        %1560 = vmatpush1.msra.mxu0 %v706
        %1561 = vmatprep.subr.mxu0 %v699
        %1562 = vmatpush1.msra.mxu0 %v698
        %1563 = vmatprep.subr.mxu0 %v691
        %1564 = vmatpush1.msra.mxu0 %v690
        %1565 = vmatprep.subr.mxu0 %v683
        %1566 = vmatpush1.msra.mxu0 %v682
        %1567 = vmatprep.subr.mxu0 %v675
        %1568 = vmatpush1.msra.mxu0 %v674
        %1569 = vmatprep.subr.mxu0 %v667
        %1570 = vmatpush1.msra.mxu0 %v666
        %1571 = vmatprep.subr.mxu0 %v659
        %1572 = vmatpush1.msra.mxu0 %v658
        %1573 = vmatprep.subr.mxu0 %v907
        %1574 = vmatpush2.msra.mxu0 %v906
        %1575 = vmatprep.subr.mxu0 %v899
        %1576 = vmatpush2.msra.mxu0 %v898
        %1577 = vmatprep.subr.mxu0 %v891
        %1578 = vmatpush2.msra.mxu0 %v890
        %1579 = vmatprep.subr.mxu0 %v883
        %1580 = vmatpush2.msra.mxu0 %v882
        %1581 = vmatprep.subr.mxu0 %v875
        %1582 = vmatpush2.msra.mxu0 %v874
        %1583 = vmatprep.subr.mxu0 %v867
        %1584 = vmatpush2.msra.mxu0 %v866
        %1585 = vmatprep.subr.mxu0 %v859
        %1586 = vmatpush2.msra.mxu0 %v858
        %1587 = vmatprep.subr.mxu0 %v851
        %1588 = vmatpush2.msra.mxu0 %v850
        %1589 = vmatprep.subr.mxu0 %v843
        %1590 = vmatpush2.msra.mxu0 %v842
        %1591 = vmatprep.subr.mxu0 %v835
        %1592 = vmatpush2.msra.mxu0 %v834
        %1593 = vmatprep.subr.mxu0 %v827
        %1594 = vmatpush2.msra.mxu0 %v826
        %1595 = vmatprep.subr.mxu0 %v819
        %1596 = vmatpush2.msra.mxu0 %v818
        %1597 = vmatprep.subr.mxu0 %v811
        %1598 = vmatpush2.msra.mxu0 %v810
        %1599 = vmatprep.subr.mxu0 %v803
        %1600 = vmatpush2.msra.mxu0 %v802
        %1601 = vmatprep.subr.mxu0 %v795
        %1602 = vmatpush2.msra.mxu0 %v794
        %1603 = vmatprep.subr.mxu0 %v787
        %1604 = vmatpush2.msra.mxu0 %v786
        %1605 = vmatprep.mubr.f32.mxu0 %v1444
        %1606 = vmatmul.mubr.f32.gmra.mxu0 %v1442
        %v1607 = vpop.f32.mrf.mxu0
        %v1608 = vadd.f32 %v1537, %v1607
        %v1609 = vpop.f32.mrf.mxu0
        %v1610 = vadd.f32 %v1539, %v1609
        %1611 = vdwg.mxu0
        %1612 = vmatprep.subr.mxu0 %v1035
        %1613 = vmatpush1.msra.mxu0 %v1034
        %1614 = vmatprep.subr.mxu0 %v1027
        %1615 = vmatpush1.msra.mxu0 %v1026
        %1616 = vmatprep.subr.mxu0 %v1019
        %1617 = vmatpush1.msra.mxu0 %v1018
        %1618 = vmatprep.subr.mxu0 %v1011
        %1619 = vmatpush1.msra.mxu0 %v1010
        %1620 = vmatprep.subr.mxu0 %v1003
        %1621 = vmatpush1.msra.mxu0 %v1002
        %1622 = vmatprep.subr.mxu0 %v995
        %1623 = vmatpush1.msra.mxu0 %v994
        %1624 = vmatprep.subr.mxu0 %v987
        %1625 = vmatpush1.msra.mxu0 %v986
        %1626 = vmatprep.subr.mxu0 %v979
        %1627 = vmatpush1.msra.mxu0 %v978
        %1628 = vmatprep.subr.mxu0 %v971
        %1629 = vmatpush1.msra.mxu0 %v970
        %1630 = vmatprep.subr.mxu0 %v963
        %1631 = vmatpush1.msra.mxu0 %v962
        %1632 = vmatprep.subr.mxu0 %v955
        %1633 = vmatpush1.msra.mxu0 %v954
        %1634 = vmatprep.subr.mxu0 %v947
        %1635 = vmatpush1.msra.mxu0 %v946
        %1636 = vmatprep.subr.mxu0 %v939
        %1637 = vmatpush1.msra.mxu0 %v938
        %1638 = vmatprep.subr.mxu0 %v931
        %1639 = vmatpush1.msra.mxu0 %v930
        %1640 = vmatprep.subr.mxu0 %v923
        %1641 = vmatpush1.msra.mxu0 %v922
        %1642 = vmatprep.subr.mxu0 %v915
        %1643 = vmatpush1.msra.mxu0 %v914
        %1644 = vmatprep.subr.mxu0 %v1163
        %1645 = vmatpush2.msra.mxu0 %v1162
        %1646 = vmatprep.subr.mxu0 %v1155
        %1647 = vmatpush2.msra.mxu0 %v1154
        %1648 = vmatprep.subr.mxu0 %v1147
        %1649 = vmatpush2.msra.mxu0 %v1146
        %1650 = vmatprep.subr.mxu0 %v1139
        %1651 = vmatpush2.msra.mxu0 %v1138
        %1652 = vmatprep.subr.mxu0 %v1131
        %1653 = vmatpush2.msra.mxu0 %v1130
        %1654 = vmatprep.subr.mxu0 %v1123
        %1655 = vmatpush2.msra.mxu0 %v1122
        %1656 = vmatprep.subr.mxu0 %v1115
        %1657 = vmatpush2.msra.mxu0 %v1114
        %1658 = vmatprep.subr.mxu0 %v1107
        %1659 = vmatpush2.msra.mxu0 %v1106
        %1660 = vmatprep.subr.mxu0 %v1099
        %1661 = vmatpush2.msra.mxu0 %v1098
        %1662 = vmatprep.subr.mxu0 %v1091
        %1663 = vmatpush2.msra.mxu0 %v1090
        %1664 = vmatprep.subr.mxu0 %v1083
        %1665 = vmatpush2.msra.mxu0 %v1082
        %1666 = vmatprep.subr.mxu0 %v1075
        %1667 = vmatpush2.msra.mxu0 %v1074
        %1668 = vmatprep.subr.mxu0 %v1067
        %1669 = vmatpush2.msra.mxu0 %v1066
        %1670 = vmatprep.subr.mxu0 %v1059
        %1671 = vmatpush2.msra.mxu0 %v1058
        %1672 = vmatprep.subr.mxu0 %v1051
        %1673 = vmatpush2.msra.mxu0 %v1050
        %1674 = vmatprep.subr.mxu0 %v1043
        %1675 = vmatpush2.msra.mxu0 %v1042
        %1676 = vmatprep.mubr.f32.mxu0 %v1460
        %1677 = vmatmul.mubr.f32.gmra.mxu0 %v1452
        %v1678 = vpop.f32.mrf.mxu0
        %v1679 = vadd.f32 %v1608, %v1678
        %v1680 = vpop.f32.mrf.mxu0
        %v1681 = vadd.f32 %v1610, %v1680
        %1682 = vdwg.mxu0
        %1683 = vmatprep.subr.mxu0 %v1291
        %1684 = vmatpush1.msra.mxu0 %v1290
        %1685 = vmatprep.subr.mxu0 %v1283
        %1686 = vmatpush1.msra.mxu0 %v1282
        %1687 = vmatprep.subr.mxu0 %v1275
        %1688 = vmatpush1.msra.mxu0 %v1274
        %1689 = vmatprep.subr.mxu0 %v1267
        %1690 = vmatpush1.msra.mxu0 %v1266
        %1691 = vmatprep.subr.mxu0 %v1259
        %1692 = vmatpush1.msra.mxu0 %v1258
        %1693 = vmatprep.subr.mxu0 %v1251
        %1694 = vmatpush1.msra.mxu0 %v1250
        %1695 = vmatprep.subr.mxu0 %v1243
        %1696 = vmatpush1.msra.mxu0 %v1242
        %1697 = vmatprep.subr.mxu0 %v1235
        %1698 = vmatpush1.msra.mxu0 %v1234
        %1699 = vmatprep.subr.mxu0 %v1227
        %1700 = vmatpush1.msra.mxu0 %v1226
        %1701 = vmatprep.subr.mxu0 %v1219
        %1702 = vmatpush1.msra.mxu0 %v1218
        %1703 = vmatprep.subr.mxu0 %v1211
        %1704 = vmatpush1.msra.mxu0 %v1210
        %1705 = vmatprep.subr.mxu0 %v1203
        %1706 = vmatpush1.msra.mxu0 %v1202
        %1707 = vmatprep.subr.mxu0 %v1195
        %1708 = vmatpush1.msra.mxu0 %v1194
        %1709 = vmatprep.subr.mxu0 %v1187
        %1710 = vmatpush1.msra.mxu0 %v1186
        %1711 = vmatprep.subr.mxu0 %v1179
        %1712 = vmatpush1.msra.mxu0 %v1178
        %1713 = vmatprep.subr.mxu0 %v1171
        %1714 = vmatpush1.msra.mxu0 %v1170
        %1715 = vmatprep.subr.mxu0 %v1419
        %1716 = vmatpush2.msra.mxu0 %v1418
        %1717 = vmatprep.subr.mxu0 %v1411
        %1718 = vmatpush2.msra.mxu0 %v1410
        %1719 = vmatprep.subr.mxu0 %v1403
        %1720 = vmatpush2.msra.mxu0 %v1402
        %1721 = vmatprep.subr.mxu0 %v1395
        %1722 = vmatpush2.msra.mxu0 %v1394
        %1723 = vmatprep.subr.mxu0 %v1387
        %1724 = vmatpush2.msra.mxu0 %v1386
        %1725 = vmatprep.subr.mxu0 %v1379
        %1726 = vmatpush2.msra.mxu0 %v1378
        %1727 = vmatprep.subr.mxu0 %v1371
        %1728 = vmatpush2.msra.mxu0 %v1370
        %1729 = vmatprep.subr.mxu0 %v1363
        %1730 = vmatpush2.msra.mxu0 %v1362
        %1731 = vmatprep.subr.mxu0 %v1355
        %1732 = vmatpush2.msra.mxu0 %v1354
        %1733 = vmatprep.subr.mxu0 %v1347
        %1734 = vmatpush2.msra.mxu0 %v1346
        %1735 = vmatprep.subr.mxu0 %v1339
        %1736 = vmatpush2.msra.mxu0 %v1338
        %1737 = vmatprep.subr.mxu0 %v1331
        %1738 = vmatpush2.msra.mxu0 %v1330
        %1739 = vmatprep.subr.mxu0 %v1323
        %1740 = vmatpush2.msra.mxu0 %v1322
        %1741 = vmatprep.subr.mxu0 %v1315
        %1742 = vmatpush2.msra.mxu0 %v1314
        %1743 = vmatprep.subr.mxu0 %v1307
        %1744 = vmatpush2.msra.mxu0 %v1306
        %1745 = vmatprep.subr.mxu0 %v1299
        %1746 = vmatpush2.msra.mxu0 %v1298
        %1747 = vmatprep.mubr.f32.mxu0 %v1461
        %1748 = vmatmul.mubr.f32.gmra.mxu0 %v1459
        %v1749 = vpop.f32.mrf.mxu0
        %v1750 = vadd.f32 %v1679, %v1749
        %v1751 = vpop.f32.mrf.mxu0
        %v1752 = vadd.f32 %v1681, %v1751
        %1753 = vdwg.mxu0
        %1754 = vmatprep.subr.mxu0 %v525
        %1755 = vmatpush1.msra.mxu0 %v524
        %1756 = vmatprep.subr.mxu0 %v517
        %1757 = vmatpush1.msra.mxu0 %v516
        %1758 = vmatprep.subr.mxu0 %v509
        %1759 = vmatpush1.msra.mxu0 %v508
        %1760 = vmatprep.subr.mxu0 %v501
        %1761 = vmatpush1.msra.mxu0 %v500
        %1762 = vmatprep.subr.mxu0 %v493
        %1763 = vmatpush1.msra.mxu0 %v492
        %1764 = vmatprep.subr.mxu0 %v485
        %1765 = vmatpush1.msra.mxu0 %v484
        %1766 = vmatprep.subr.mxu0 %v477
        %1767 = vmatpush1.msra.mxu0 %v476
        %1768 = vmatprep.subr.mxu0 %v469
        %1769 = vmatpush1.msra.mxu0 %v468
        %1770 = vmatprep.subr.mxu0 %v461
        %1771 = vmatpush1.msra.mxu0 %v460
        %1772 = vmatprep.subr.mxu0 %v453
        %1773 = vmatpush1.msra.mxu0 %v452
        %1774 = vmatprep.subr.mxu0 %v445
        %1775 = vmatpush1.msra.mxu0 %v444
        %1776 = vmatprep.subr.mxu0 %v437
        %1777 = vmatpush1.msra.mxu0 %v436
        %1778 = vmatprep.subr.mxu0 %v429
        %1779 = vmatpush1.msra.mxu0 %v428
        %1780 = vmatprep.subr.mxu0 %v421
        %1781 = vmatpush1.msra.mxu0 %v420
        %1782 = vmatprep.subr.mxu0 %v413
        %1783 = vmatpush1.msra.mxu0 %v412
        %1784 = vmatprep.subr.mxu0 %v405
        %1785 = vmatpush1.msra.mxu0 %v404
        %1786 = vmatprep.subr.mxu0 %v653
        %1787 = vmatpush2.msra.mxu0 %v652
        %1788 = vmatprep.subr.mxu0 %v645
        %1789 = vmatpush2.msra.mxu0 %v644
        %1790 = vmatprep.subr.mxu0 %v637
        %1791 = vmatpush2.msra.mxu0 %v636
        %1792 = vmatprep.subr.mxu0 %v629
        %1793 = vmatpush2.msra.mxu0 %v628
        %1794 = vmatprep.subr.mxu0 %v621
        %1795 = vmatpush2.msra.mxu0 %v620
        %1796 = vmatprep.subr.mxu0 %v613
        %1797 = vmatpush2.msra.mxu0 %v612
        %1798 = vmatprep.subr.mxu0 %v605
        %1799 = vmatpush2.msra.mxu0 %v604
        %1800 = vmatprep.subr.mxu0 %v597
        %1801 = vmatpush2.msra.mxu0 %v596
        %1802 = vmatprep.subr.mxu0 %v589
        %1803 = vmatpush2.msra.mxu0 %v588
        %1804 = vmatprep.subr.mxu0 %v581
        %1805 = vmatpush2.msra.mxu0 %v580
        %1806 = vmatprep.subr.mxu0 %v573
        %1807 = vmatpush2.msra.mxu0 %v572
        %1808 = vmatprep.subr.mxu0 %v565
        %1809 = vmatpush2.msra.mxu0 %v564
        %1810 = vmatprep.subr.mxu0 %v557
        %1811 = vmatpush2.msra.mxu0 %v556
        %1812 = vmatprep.subr.mxu0 %v549
        %1813 = vmatpush2.msra.mxu0 %v548
        %1814 = vmatprep.subr.mxu0 %v541
        %1815 = vmatpush2.msra.mxu0 %v540
        %1816 = vmatprep.subr.mxu0 %v533
        %1817 = vmatpush2.msra.mxu0 %v532
        %1818 = vmatprep.mubr.f32.mxu0 %v1443
        %1819 = vmatmul.mubr.f32.gmra.mxu0 %v1435
        %v1820 = vpop.f32.mrf.mxu0
        %v1821 = vadd.f32 0.0, %v1820
        %v1822 = vpop.f32.mrf.mxu0
        %v1823 = vadd.f32 0.0, %v1822
        %1824 = vdwg.mxu0
        %1825 = vmatprep.subr.mxu0 %v781
        %1826 = vmatpush1.msra.mxu0 %v780
        %1827 = vmatprep.subr.mxu0 %v773
        %1828 = vmatpush1.msra.mxu0 %v772
        %1829 = vmatprep.subr.mxu0 %v765
        %1830 = vmatpush1.msra.mxu0 %v764
        %1831 = vmatprep.subr.mxu0 %v757
        %1832 = vmatpush1.msra.mxu0 %v756
        %1833 = vmatprep.subr.mxu0 %v749
        %1834 = vmatpush1.msra.mxu0 %v748
        %1835 = vmatprep.subr.mxu0 %v741
        %1836 = vmatpush1.msra.mxu0 %v740
        %1837 = vmatprep.subr.mxu0 %v733
        %1838 = vmatpush1.msra.mxu0 %v732
        %1839 = vmatprep.subr.mxu0 %v725
        %1840 = vmatpush1.msra.mxu0 %v724
        %1841 = vmatprep.subr.mxu0 %v717
        %1842 = vmatpush1.msra.mxu0 %v716
        %1843 = vmatprep.subr.mxu0 %v709
        %1844 = vmatpush1.msra.mxu0 %v708
        %1845 = vmatprep.subr.mxu0 %v701
        %1846 = vmatpush1.msra.mxu0 %v700
        %1847 = vmatprep.subr.mxu0 %v693
        %1848 = vmatpush1.msra.mxu0 %v692
        %1849 = vmatprep.subr.mxu0 %v685
        %1850 = vmatpush1.msra.mxu0 %v684
        %1851 = vmatprep.subr.mxu0 %v677
        %1852 = vmatpush1.msra.mxu0 %v676
        %1853 = vmatprep.subr.mxu0 %v669
        %1854 = vmatpush1.msra.mxu0 %v668
        %1855 = vmatprep.subr.mxu0 %v661
        %1856 = vmatpush1.msra.mxu0 %v660
        %1857 = vmatprep.subr.mxu0 %v909
        %1858 = vmatpush2.msra.mxu0 %v908
        %1859 = vmatprep.subr.mxu0 %v901
        %1860 = vmatpush2.msra.mxu0 %v900
        %1861 = vmatprep.subr.mxu0 %v893
        %1862 = vmatpush2.msra.mxu0 %v892
        %1863 = vmatprep.subr.mxu0 %v885
        %1864 = vmatpush2.msra.mxu0 %v884
        %1865 = vmatprep.subr.mxu0 %v877
        %1866 = vmatpush2.msra.mxu0 %v876
        %1867 = vmatprep.subr.mxu0 %v869
        %1868 = vmatpush2.msra.mxu0 %v868
        %1869 = vmatprep.subr.mxu0 %v861
        %1870 = vmatpush2.msra.mxu0 %v860
        %1871 = vmatprep.subr.mxu0 %v853
        %1872 = vmatpush2.msra.mxu0 %v852
        %1873 = vmatprep.subr.mxu0 %v845
        %1874 = vmatpush2.msra.mxu0 %v844
        %1875 = vmatprep.subr.mxu0 %v837
        %1876 = vmatpush2.msra.mxu0 %v836
        %1877 = vmatprep.subr.mxu0 %v829
        %1878 = vmatpush2.msra.mxu0 %v828
        %1879 = vmatprep.subr.mxu0 %v821
        %1880 = vmatpush2.msra.mxu0 %v820
        %1881 = vmatprep.subr.mxu0 %v813
        %1882 = vmatpush2.msra.mxu0 %v812
        %1883 = vmatprep.subr.mxu0 %v805
        %1884 = vmatpush2.msra.mxu0 %v804
        %1885 = vmatprep.subr.mxu0 %v797
        %1886 = vmatpush2.msra.mxu0 %v796
        %1887 = vmatprep.subr.mxu0 %v789
        %1888 = vmatpush2.msra.mxu0 %v788
        %1889 = vmatprep.mubr.f32.mxu0 %v1444
        %1890 = vmatmul.mubr.f32.gmra.mxu0 %v1442
        %v1891 = vpop.f32.mrf.mxu0
        %v1892 = vadd.f32 %v1821, %v1891
        %v1893 = vpop.f32.mrf.mxu0
        %v1894 = vadd.f32 %v1823, %v1893
        %1895 = vdwg.mxu0
        %1896 = vmatprep.subr.mxu0 %v1037
        %1897 = vmatpush1.msra.mxu0 %v1036
        %1898 = vmatprep.subr.mxu0 %v1029
        %1899 = vmatpush1.msra.mxu0 %v1028
        %1900 = vmatprep.subr.mxu0 %v1021
        %1901 = vmatpush1.msra.mxu0 %v1020
        %1902 = vmatprep.subr.mxu0 %v1013
        %1903 = vmatpush1.msra.mxu0 %v1012
        %1904 = vmatprep.subr.mxu0 %v1005
        %1905 = vmatpush1.msra.mxu0 %v1004
        %1906 = vmatprep.subr.mxu0 %v997
        %1907 = vmatpush1.msra.mxu0 %v996
        %1908 = vmatprep.subr.mxu0 %v989
        %1909 = vmatpush1.msra.mxu0 %v988
        %1910 = vmatprep.subr.mxu0 %v981
        %1911 = vmatpush1.msra.mxu0 %v980
        %1912 = vmatprep.subr.mxu0 %v973
        %1913 = vmatpush1.msra.mxu0 %v972
        %1914 = vmatprep.subr.mxu0 %v965
        %1915 = vmatpush1.msra.mxu0 %v964
        %1916 = vmatprep.subr.mxu0 %v957
        %1917 = vmatpush1.msra.mxu0 %v956
        %1918 = vmatprep.subr.mxu0 %v949
        %1919 = vmatpush1.msra.mxu0 %v948
        %1920 = vmatprep.subr.mxu0 %v941
        %1921 = vmatpush1.msra.mxu0 %v940
        %1922 = vmatprep.subr.mxu0 %v933
        %1923 = vmatpush1.msra.mxu0 %v932
        %1924 = vmatprep.subr.mxu0 %v925
        %1925 = vmatpush1.msra.mxu0 %v924
        %1926 = vmatprep.subr.mxu0 %v917
        %1927 = vmatpush1.msra.mxu0 %v916
        %1928 = vmatprep.subr.mxu0 %v1165
        %1929 = vmatpush2.msra.mxu0 %v1164
        %1930 = vmatprep.subr.mxu0 %v1157
        %1931 = vmatpush2.msra.mxu0 %v1156
        %1932 = vmatprep.subr.mxu0 %v1149
        %1933 = vmatpush2.msra.mxu0 %v1148
        %1934 = vmatprep.subr.mxu0 %v1141
        %1935 = vmatpush2.msra.mxu0 %v1140
        %1936 = vmatprep.subr.mxu0 %v1133
        %1937 = vmatpush2.msra.mxu0 %v1132
        %1938 = vmatprep.subr.mxu0 %v1125
        %1939 = vmatpush2.msra.mxu0 %v1124
        %1940 = vmatprep.subr.mxu0 %v1117
        %1941 = vmatpush2.msra.mxu0 %v1116
        %1942 = vmatprep.subr.mxu0 %v1109
        %1943 = vmatpush2.msra.mxu0 %v1108
        %1944 = vmatprep.subr.mxu0 %v1101
        %1945 = vmatpush2.msra.mxu0 %v1100
        %1946 = vmatprep.subr.mxu0 %v1093
        %1947 = vmatpush2.msra.mxu0 %v1092
        %1948 = vmatprep.subr.mxu0 %v1085
        %1949 = vmatpush2.msra.mxu0 %v1084
        %1950 = vmatprep.subr.mxu0 %v1077
        %1951 = vmatpush2.msra.mxu0 %v1076
        %1952 = vmatprep.subr.mxu0 %v1069
        %1953 = vmatpush2.msra.mxu0 %v1068
        %1954 = vmatprep.subr.mxu0 %v1061
        %1955 = vmatpush2.msra.mxu0 %v1060
        %1956 = vmatprep.subr.mxu0 %v1053
        %1957 = vmatpush2.msra.mxu0 %v1052
        %1958 = vmatprep.subr.mxu0 %v1045
        %1959 = vmatpush2.msra.mxu0 %v1044
        %1960 = vmatprep.mubr.f32.mxu0 %v1460
        %1961 = vmatmul.mubr.f32.gmra.mxu0 %v1452
        %v1962 = vpop.f32.mrf.mxu0
        %v1963 = vadd.f32 %v1892, %v1962
        %v1964 = vpop.f32.mrf.mxu0
        %v1965 = vadd.f32 %v1894, %v1964
        %1966 = vdwg.mxu0
        %1967 = vmatprep.subr.mxu0 %v1293
        %1968 = vmatpush1.msra.mxu0 %v1292
        %1969 = vmatprep.subr.mxu0 %v1285
        %1970 = vmatpush1.msra.mxu0 %v1284
        %1971 = vmatprep.subr.mxu0 %v1277
        %1972 = vmatpush1.msra.mxu0 %v1276
        %1973 = vmatprep.subr.mxu0 %v1269
        %1974 = vmatpush1.msra.mxu0 %v1268
        %1975 = vmatprep.subr.mxu0 %v1261
        %1976 = vmatpush1.msra.mxu0 %v1260
        %1977 = vmatprep.subr.mxu0 %v1253
        %1978 = vmatpush1.msra.mxu0 %v1252
        %1979 = vmatprep.subr.mxu0 %v1245
        %1980 = vmatpush1.msra.mxu0 %v1244
        %1981 = vmatprep.subr.mxu0 %v1237
        %1982 = vmatpush1.msra.mxu0 %v1236
        %1983 = vmatprep.subr.mxu0 %v1229
        %1984 = vmatpush1.msra.mxu0 %v1228
        %1985 = vmatprep.subr.mxu0 %v1221
        %1986 = vmatpush1.msra.mxu0 %v1220
        %1987 = vmatprep.subr.mxu0 %v1213
        %1988 = vmatpush1.msra.mxu0 %v1212
        %1989 = vmatprep.subr.mxu0 %v1205
        %1990 = vmatpush1.msra.mxu0 %v1204
        %1991 = vmatprep.subr.mxu0 %v1197
        %1992 = vmatpush1.msra.mxu0 %v1196
        %1993 = vmatprep.subr.mxu0 %v1189
        %1994 = vmatpush1.msra.mxu0 %v1188
        %1995 = vmatprep.subr.mxu0 %v1181
        %1996 = vmatpush1.msra.mxu0 %v1180
        %1997 = vmatprep.subr.mxu0 %v1173
        %1998 = vmatpush1.msra.mxu0 %v1172
        %1999 = vmatprep.subr.mxu0 %v1421
        %2000 = vmatpush2.msra.mxu0 %v1420
        %2001 = vmatprep.subr.mxu0 %v1413
        %2002 = vmatpush2.msra.mxu0 %v1412
        %2003 = vmatprep.subr.mxu0 %v1405
        %2004 = vmatpush2.msra.mxu0 %v1404
        %2005 = vmatprep.subr.mxu0 %v1397
        %2006 = vmatpush2.msra.mxu0 %v1396
        %2007 = vmatprep.subr.mxu0 %v1389
        %2008 = vmatpush2.msra.mxu0 %v1388
        %2009 = vmatprep.subr.mxu0 %v1381
        %2010 = vmatpush2.msra.mxu0 %v1380
        %2011 = vmatprep.subr.mxu0 %v1373
        %2012 = vmatpush2.msra.mxu0 %v1372
        %2013 = vmatprep.subr.mxu0 %v1365
        %2014 = vmatpush2.msra.mxu0 %v1364
        %2015 = vmatprep.subr.mxu0 %v1357
        %2016 = vmatpush2.msra.mxu0 %v1356
        %2017 = vmatprep.subr.mxu0 %v1349
        %2018 = vmatpush2.msra.mxu0 %v1348
        %2019 = vmatprep.subr.mxu0 %v1341
        %2020 = vmatpush2.msra.mxu0 %v1340
        %2021 = vmatprep.subr.mxu0 %v1333
        %2022 = vmatpush2.msra.mxu0 %v1332
        %2023 = vmatprep.subr.mxu0 %v1325
        %2024 = vmatpush2.msra.mxu0 %v1324
        %2025 = vmatprep.subr.mxu0 %v1317
        %2026 = vmatpush2.msra.mxu0 %v1316
        %2027 = vmatprep.subr.mxu0 %v1309
        %2028 = vmatpush2.msra.mxu0 %v1308
        %2029 = vmatprep.subr.mxu0 %v1301
        %2030 = vmatpush2.msra.mxu0 %v1300
        %2031 = vmatprep.mubr.f32.mxu0 %v1461
        %2032 = vmatmul.mubr.f32.gmra.mxu0 %v1459
        %v2033 = vpop.f32.mrf.mxu0
        %v2034 = vadd.f32 %v1963, %v2033
        %v2035 = vpop.f32.mrf.mxu0
        %v2036 = vadd.f32 %v1965, %v2035
        %2037 = vdwg.mxu0
        %2038 = vmatprep.subr.mxu0 %v527
        %2039 = vmatpush1.msra.mxu0 %v526
        %2040 = vmatprep.subr.mxu0 %v519
        %2041 = vmatpush1.msra.mxu0 %v518
        %2042 = vmatprep.subr.mxu0 %v511
        %2043 = vmatpush1.msra.mxu0 %v510
        %2044 = vmatprep.subr.mxu0 %v503
        %2045 = vmatpush1.msra.mxu0 %v502
        %2046 = vmatprep.subr.mxu0 %v495
        %2047 = vmatpush1.msra.mxu0 %v494
        %2048 = vmatprep.subr.mxu0 %v487
        %2049 = vmatpush1.msra.mxu0 %v486
        %2050 = vmatprep.subr.mxu0 %v479
        %2051 = vmatpush1.msra.mxu0 %v478
        %2052 = vmatprep.subr.mxu0 %v471
        %2053 = vmatpush1.msra.mxu0 %v470
        %2054 = vmatprep.subr.mxu0 %v463
        %2055 = vmatpush1.msra.mxu0 %v462
        %2056 = vmatprep.subr.mxu0 %v455
        %2057 = vmatpush1.msra.mxu0 %v454
        %2058 = vmatprep.subr.mxu0 %v447
        %2059 = vmatpush1.msra.mxu0 %v446
        %2060 = vmatprep.subr.mxu0 %v439
        %2061 = vmatpush1.msra.mxu0 %v438
        %2062 = vmatprep.subr.mxu0 %v431
        %2063 = vmatpush1.msra.mxu0 %v430
        %2064 = vmatprep.subr.mxu0 %v423
        %2065 = vmatpush1.msra.mxu0 %v422
        %2066 = vmatprep.subr.mxu0 %v415
        %2067 = vmatpush1.msra.mxu0 %v414
        %2068 = vmatprep.subr.mxu0 %v407
        %2069 = vmatpush1.msra.mxu0 %v406
        %2070 = vmatprep.subr.mxu0 %v655
        %2071 = vmatpush2.msra.mxu0 %v654
        %2072 = vmatprep.subr.mxu0 %v647
        %2073 = vmatpush2.msra.mxu0 %v646
        %2074 = vmatprep.subr.mxu0 %v639
        %2075 = vmatpush2.msra.mxu0 %v638
        %2076 = vmatprep.subr.mxu0 %v631
        %2077 = vmatpush2.msra.mxu0 %v630
        %2078 = vmatprep.subr.mxu0 %v623
        %2079 = vmatpush2.msra.mxu0 %v622
        %2080 = vmatprep.subr.mxu0 %v615
        %2081 = vmatpush2.msra.mxu0 %v614
        %2082 = vmatprep.subr.mxu0 %v607
        %2083 = vmatpush2.msra.mxu0 %v606
        %2084 = vmatprep.subr.mxu0 %v599
        %2085 = vmatpush2.msra.mxu0 %v598
        %2086 = vmatprep.subr.mxu0 %v591
        %2087 = vmatpush2.msra.mxu0 %v590
        %2088 = vmatprep.subr.mxu0 %v583
        %2089 = vmatpush2.msra.mxu0 %v582
        %2090 = vmatprep.subr.mxu0 %v575
        %2091 = vmatpush2.msra.mxu0 %v574
        %2092 = vmatprep.subr.mxu0 %v567
        %2093 = vmatpush2.msra.mxu0 %v566
        %2094 = vmatprep.subr.mxu0 %v559
        %2095 = vmatpush2.msra.mxu0 %v558
        %2096 = vmatprep.subr.mxu0 %v551
        %2097 = vmatpush2.msra.mxu0 %v550
        %2098 = vmatprep.subr.mxu0 %v543
        %2099 = vmatpush2.msra.mxu0 %v542
        %2100 = vmatprep.subr.mxu0 %v535
        %2101 = vmatpush2.msra.mxu0 %v534
        %2102 = vmatprep.mubr.f32.mxu0 %v1443
        %2103 = vmatmul.mubr.f32.gmra.mxu0 %v1435
        %v2104 = vpop.f32.mrf.mxu0
        %v2105 = vadd.f32 0.0, %v2104
        %v2106 = vpop.f32.mrf.mxu0
        %v2107 = vadd.f32 0.0, %v2106
        %2108 = vdwg.mxu0
        %2109 = vmatprep.subr.mxu0 %v783
        %2110 = vmatpush1.msra.mxu0 %v782
        %2111 = vmatprep.subr.mxu0 %v775
        %2112 = vmatpush1.msra.mxu0 %v774
        %2113 = vmatprep.subr.mxu0 %v767
        %2114 = vmatpush1.msra.mxu0 %v766
        %2115 = vmatprep.subr.mxu0 %v759
        %2116 = vmatpush1.msra.mxu0 %v758
        %2117 = vmatprep.subr.mxu0 %v751
        %2118 = vmatpush1.msra.mxu0 %v750
        %2119 = vmatprep.subr.mxu0 %v743
        %2120 = vmatpush1.msra.mxu0 %v742
        %2121 = vmatprep.subr.mxu0 %v735
        %2122 = vmatpush1.msra.mxu0 %v734
        %2123 = vmatprep.subr.mxu0 %v727
        %2124 = vmatpush1.msra.mxu0 %v726
        %2125 = vmatprep.subr.mxu0 %v719
        %2126 = vmatpush1.msra.mxu0 %v718
        %2127 = vmatprep.subr.mxu0 %v711
        %2128 = vmatpush1.msra.mxu0 %v710
        %2129 = vmatprep.subr.mxu0 %v703
        %2130 = vmatpush1.msra.mxu0 %v702
        %2131 = vmatprep.subr.mxu0 %v695
        %2132 = vmatpush1.msra.mxu0 %v694
        %2133 = vmatprep.subr.mxu0 %v687
        %2134 = vmatpush1.msra.mxu0 %v686
        %2135 = vmatprep.subr.mxu0 %v679
        %2136 = vmatpush1.msra.mxu0 %v678
        %2137 = vmatprep.subr.mxu0 %v671
        %2138 = vmatpush1.msra.mxu0 %v670
        %2139 = vmatprep.subr.mxu0 %v663
        %2140 = vmatpush1.msra.mxu0 %v662
        %2141 = vmatprep.subr.mxu0 %v911
        %2142 = vmatpush2.msra.mxu0 %v910
        %2143 = vmatprep.subr.mxu0 %v903
        %2144 = vmatpush2.msra.mxu0 %v902
        %2145 = vmatprep.subr.mxu0 %v895
        %2146 = vmatpush2.msra.mxu0 %v894
        %2147 = vmatprep.subr.mxu0 %v887
        %2148 = vmatpush2.msra.mxu0 %v886
        %2149 = vmatprep.subr.mxu0 %v879
        %2150 = vmatpush2.msra.mxu0 %v878
        %2151 = vmatprep.subr.mxu0 %v871
        %2152 = vmatpush2.msra.mxu0 %v870
        %2153 = vmatprep.subr.mxu0 %v863
        %2154 = vmatpush2.msra.mxu0 %v862
        %2155 = vmatprep.subr.mxu0 %v855
        %2156 = vmatpush2.msra.mxu0 %v854
        %2157 = vmatprep.subr.mxu0 %v847
        %2158 = vmatpush2.msra.mxu0 %v846
        %2159 = vmatprep.subr.mxu0 %v839
        %2160 = vmatpush2.msra.mxu0 %v838
        %2161 = vmatprep.subr.mxu0 %v831
        %2162 = vmatpush2.msra.mxu0 %v830
        %2163 = vmatprep.subr.mxu0 %v823
        %2164 = vmatpush2.msra.mxu0 %v822
        %2165 = vmatprep.subr.mxu0 %v815
        %2166 = vmatpush2.msra.mxu0 %v814
        %2167 = vmatprep.subr.mxu0 %v807
        %2168 = vmatpush2.msra.mxu0 %v806
        %2169 = vmatprep.subr.mxu0 %v799
        %2170 = vmatpush2.msra.mxu0 %v798
        %2171 = vmatprep.subr.mxu0 %v791
        %2172 = vmatpush2.msra.mxu0 %v790
        %2173 = vmatprep.mubr.f32.mxu0 %v1444
        %2174 = vmatmul.mubr.f32.gmra.mxu0 %v1442
        %v2175 = vpop.f32.mrf.mxu0
        %v2176 = vadd.f32 %v2105, %v2175
        %v2177 = vpop.f32.mrf.mxu0
        %v2178 = vadd.f32 %v2107, %v2177
        %2179 = vdwg.mxu0
        %2180 = vmatprep.subr.mxu0 %v1039
        %2181 = vmatpush1.msra.mxu0 %v1038
        %2182 = vmatprep.subr.mxu0 %v1031
        %2183 = vmatpush1.msra.mxu0 %v1030
        %2184 = vmatprep.subr.mxu0 %v1023
        %2185 = vmatpush1.msra.mxu0 %v1022
        %2186 = vmatprep.subr.mxu0 %v1015
        %2187 = vmatpush1.msra.mxu0 %v1014
        %2188 = vmatprep.subr.mxu0 %v1007
        %2189 = vmatpush1.msra.mxu0 %v1006
        %2190 = vmatprep.subr.mxu0 %v999
        %2191 = vmatpush1.msra.mxu0 %v998
        %2192 = vmatprep.subr.mxu0 %v991
        %2193 = vmatpush1.msra.mxu0 %v990
        %2194 = vmatprep.subr.mxu0 %v983
        %2195 = vmatpush1.msra.mxu0 %v982
        %2196 = vmatprep.subr.mxu0 %v975
        %2197 = vmatpush1.msra.mxu0 %v974
        %2198 = vmatprep.subr.mxu0 %v967
        %2199 = vmatpush1.msra.mxu0 %v966
        %2200 = vmatprep.subr.mxu0 %v959
        %2201 = vmatpush1.msra.mxu0 %v958
        %2202 = vmatprep.subr.mxu0 %v951
        %2203 = vmatpush1.msra.mxu0 %v950
        %2204 = vmatprep.subr.mxu0 %v943
        %2205 = vmatpush1.msra.mxu0 %v942
        %2206 = vmatprep.subr.mxu0 %v935
        %2207 = vmatpush1.msra.mxu0 %v934
        %2208 = vmatprep.subr.mxu0 %v927
        %2209 = vmatpush1.msra.mxu0 %v926
        %2210 = vmatprep.subr.mxu0 %v919
        %2211 = vmatpush1.msra.mxu0 %v918
        %2212 = vmatprep.subr.mxu0 %v1167
        %2213 = vmatpush2.msra.mxu0 %v1166
        %2214 = vmatprep.subr.mxu0 %v1159
        %2215 = vmatpush2.msra.mxu0 %v1158
        %2216 = vmatprep.subr.mxu0 %v1151
        %2217 = vmatpush2.msra.mxu0 %v1150
        %2218 = vmatprep.subr.mxu0 %v1143
        %2219 = vmatpush2.msra.mxu0 %v1142
        %2220 = vmatprep.subr.mxu0 %v1135
        %2221 = vmatpush2.msra.mxu0 %v1134
        %2222 = vmatprep.subr.mxu0 %v1127
        %2223 = vmatpush2.msra.mxu0 %v1126
        %2224 = vmatprep.subr.mxu0 %v1119
        %2225 = vmatpush2.msra.mxu0 %v1118
        %2226 = vmatprep.subr.mxu0 %v1111
        %2227 = vmatpush2.msra.mxu0 %v1110
        %2228 = vmatprep.subr.mxu0 %v1103
        %2229 = vmatpush2.msra.mxu0 %v1102
        %2230 = vmatprep.subr.mxu0 %v1095
        %2231 = vmatpush2.msra.mxu0 %v1094
        %2232 = vmatprep.subr.mxu0 %v1087
        %2233 = vmatpush2.msra.mxu0 %v1086
        %2234 = vmatprep.subr.mxu0 %v1079
        %2235 = vmatpush2.msra.mxu0 %v1078
        %2236 = vmatprep.subr.mxu0 %v1071
        %2237 = vmatpush2.msra.mxu0 %v1070
        %2238 = vmatprep.subr.mxu0 %v1063
        %2239 = vmatpush2.msra.mxu0 %v1062
        %2240 = vmatprep.subr.mxu0 %v1055
        %2241 = vmatpush2.msra.mxu0 %v1054
        %2242 = vmatprep.subr.mxu0 %v1047
        %2243 = vmatpush2.msra.mxu0 %v1046
        %2244 = vmatprep.mubr.f32.mxu0 %v1460
        %2245 = vmatmul.mubr.f32.gmra.mxu0 %v1452
        %v2246 = vpop.f32.mrf.mxu0
        %v2247 = vadd.f32 %v2176, %v2246
        %v2248 = vpop.f32.mrf.mxu0
        %v2249 = vadd.f32 %v2178, %v2248
        %2250 = vdwg.mxu0
        %2251 = vmatprep.subr.mxu0 %v1295
        %2252 = vmatpush1.msra.mxu0 %v1294
        %2253 = vmatprep.subr.mxu0 %v1287
        %2254 = vmatpush1.msra.mxu0 %v1286
        %2255 = vmatprep.subr.mxu0 %v1279
        %2256 = vmatpush1.msra.mxu0 %v1278
        %2257 = vmatprep.subr.mxu0 %v1271
        %2258 = vmatpush1.msra.mxu0 %v1270
        %2259 = vmatprep.subr.mxu0 %v1263
        %2260 = vmatpush1.msra.mxu0 %v1262
        %2261 = vmatprep.subr.mxu0 %v1255
        %2262 = vmatpush1.msra.mxu0 %v1254
        %2263 = vmatprep.subr.mxu0 %v1247
        %2264 = vmatpush1.msra.mxu0 %v1246
        %2265 = vmatprep.subr.mxu0 %v1239
        %2266 = vmatpush1.msra.mxu0 %v1238
        %2267 = vmatprep.subr.mxu0 %v1231
        %2268 = vmatpush1.msra.mxu0 %v1230
        %2269 = vmatprep.subr.mxu0 %v1223
        %2270 = vmatpush1.msra.mxu0 %v1222
        %2271 = vmatprep.subr.mxu0 %v1215
        %2272 = vmatpush1.msra.mxu0 %v1214
        %2273 = vmatprep.subr.mxu0 %v1207
        %2274 = vmatpush1.msra.mxu0 %v1206
        %2275 = vmatprep.subr.mxu0 %v1199
        %2276 = vmatpush1.msra.mxu0 %v1198
        %2277 = vmatprep.subr.mxu0 %v1191
        %2278 = vmatpush1.msra.mxu0 %v1190
        %2279 = vmatprep.subr.mxu0 %v1183
        %2280 = vmatpush1.msra.mxu0 %v1182
        %2281 = vmatprep.subr.mxu0 %v1175
        %2282 = vmatpush1.msra.mxu0 %v1174
        %2283 = vmatprep.subr.mxu0 %v1423
        %2284 = vmatpush2.msra.mxu0 %v1422
        %2285 = vmatprep.subr.mxu0 %v1415
        %2286 = vmatpush2.msra.mxu0 %v1414
        %2287 = vmatprep.subr.mxu0 %v1407
        %2288 = vmatpush2.msra.mxu0 %v1406
        %2289 = vmatprep.subr.mxu0 %v1399
        %2290 = vmatpush2.msra.mxu0 %v1398
        %2291 = vmatprep.subr.mxu0 %v1391
        %2292 = vmatpush2.msra.mxu0 %v1390
        %2293 = vmatprep.subr.mxu0 %v1383
        %2294 = vmatpush2.msra.mxu0 %v1382
        %2295 = vmatprep.subr.mxu0 %v1375
        %2296 = vmatpush2.msra.mxu0 %v1374
        %2297 = vmatprep.subr.mxu0 %v1367
        %2298 = vmatpush2.msra.mxu0 %v1366
        %2299 = vmatprep.subr.mxu0 %v1359
        %2300 = vmatpush2.msra.mxu0 %v1358
        %2301 = vmatprep.subr.mxu0 %v1351
        %2302 = vmatpush2.msra.mxu0 %v1350
        %2303 = vmatprep.subr.mxu0 %v1343
        %2304 = vmatpush2.msra.mxu0 %v1342
        %2305 = vmatprep.subr.mxu0 %v1335
        %2306 = vmatpush2.msra.mxu0 %v1334
        %2307 = vmatprep.subr.mxu0 %v1327
        %2308 = vmatpush2.msra.mxu0 %v1326
        %2309 = vmatprep.subr.mxu0 %v1319
        %2310 = vmatpush2.msra.mxu0 %v1318
        %2311 = vmatprep.subr.mxu0 %v1311
        %2312 = vmatpush2.msra.mxu0 %v1310
        %2313 = vmatprep.subr.mxu0 %v1303
        %2314 = vmatpush2.msra.mxu0 %v1302
        %2315 = vmatprep.mubr.f32.mxu0 %v1461
        %2316 = vmatmul.mubr.f32.gmra.mxu0 %v1459
        %v2317 = vpop.f32.mrf.mxu0
        %v2318 = vadd.f32 %v2247, %v2317
        %v2319 = vpop.f32.mrf.mxu0
        %v2320 = vadd.f32 %v2249, %v2319
        %2321 = vdwg.mxu0
        %2322 = vmatprep.subr.mxu0 %v529
        %2323 = vmatpush1.msra.mxu0 %v528
        %2324 = vmatprep.subr.mxu0 %v521
        %2325 = vmatpush1.msra.mxu0 %v520
        %2326 = vmatprep.subr.mxu0 %v513
        %2327 = vmatpush1.msra.mxu0 %v512
        %2328 = vmatprep.subr.mxu0 %v505
        %2329 = vmatpush1.msra.mxu0 %v504
        %2330 = vmatprep.subr.mxu0 %v497
        %2331 = vmatpush1.msra.mxu0 %v496
        %2332 = vmatprep.subr.mxu0 %v489
        %2333 = vmatpush1.msra.mxu0 %v488
        %2334 = vmatprep.subr.mxu0 %v481
        %2335 = vmatpush1.msra.mxu0 %v480
        %2336 = vmatprep.subr.mxu0 %v473
        %2337 = vmatpush1.msra.mxu0 %v472
        %2338 = vmatprep.subr.mxu0 %v465
        %2339 = vmatpush1.msra.mxu0 %v464
        %2340 = vmatprep.subr.mxu0 %v457
        %2341 = vmatpush1.msra.mxu0 %v456
        %2342 = vmatprep.subr.mxu0 %v449
        %2343 = vmatpush1.msra.mxu0 %v448
        %2344 = vmatprep.subr.mxu0 %v441
        %2345 = vmatpush1.msra.mxu0 %v440
        %2346 = vmatprep.subr.mxu0 %v433
        %2347 = vmatpush1.msra.mxu0 %v432
        %2348 = vmatprep.subr.mxu0 %v425
        %2349 = vmatpush1.msra.mxu0 %v424
        %2350 = vmatprep.subr.mxu0 %v417
        %2351 = vmatpush1.msra.mxu0 %v416
        %2352 = vmatprep.subr.mxu0 %v409
        %2353 = vmatpush1.msra.mxu0 %v408
        %2354 = vmatprep.subr.mxu0 %v657
        %2355 = vmatpush2.msra.mxu0 %v656
        %2356 = vmatprep.subr.mxu0 %v649
        %2357 = vmatpush2.msra.mxu0 %v648
        %2358 = vmatprep.subr.mxu0 %v641
        %2359 = vmatpush2.msra.mxu0 %v640
        %2360 = vmatprep.subr.mxu0 %v633
        %2361 = vmatpush2.msra.mxu0 %v632
        %2362 = vmatprep.subr.mxu0 %v625
        %2363 = vmatpush2.msra.mxu0 %v624
        %2364 = vmatprep.subr.mxu0 %v617
        %2365 = vmatpush2.msra.mxu0 %v616
        %2366 = vmatprep.subr.mxu0 %v609
        %2367 = vmatpush2.msra.mxu0 %v608
        %2368 = vmatprep.subr.mxu0 %v601
        %2369 = vmatpush2.msra.mxu0 %v600
        %2370 = vmatprep.subr.mxu0 %v593
        %2371 = vmatpush2.msra.mxu0 %v592
        %2372 = vmatprep.subr.mxu0 %v585
        %2373 = vmatpush2.msra.mxu0 %v584
        %2374 = vmatprep.subr.mxu0 %v577
        %2375 = vmatpush2.msra.mxu0 %v576
        %2376 = vmatprep.subr.mxu0 %v569
        %2377 = vmatpush2.msra.mxu0 %v568
        %2378 = vmatprep.subr.mxu0 %v561
        %2379 = vmatpush2.msra.mxu0 %v560
        %2380 = vmatprep.subr.mxu0 %v553
        %2381 = vmatpush2.msra.mxu0 %v552
        %2382 = vmatprep.subr.mxu0 %v545
        %2383 = vmatpush2.msra.mxu0 %v544
        %2384 = vmatprep.subr.mxu0 %v537
        %2385 = vmatpush2.msra.mxu0 %v536
        %2386 = vmatprep.mubr.f32.mxu0 %v1443
        %2387 = vmatmul.mubr.f32.gmra.mxu0 %v1435
        %v2388 = vpop.f32.mrf.mxu0
        %v2389 = vadd.f32 0.0, %v2388
        %v2390 = vpop.f32.mrf.mxu0
        %v2391 = vadd.f32 0.0, %v2390
        %2392 = vdwg.mxu0
        %2393 = vmatprep.subr.mxu0 %v785
        %2394 = vmatpush1.msra.mxu0 %v784
        %2395 = vmatprep.subr.mxu0 %v777
        %2396 = vmatpush1.msra.mxu0 %v776
        %2397 = vmatprep.subr.mxu0 %v769
        %2398 = vmatpush1.msra.mxu0 %v768
        %2399 = vmatprep.subr.mxu0 %v761
        %2400 = vmatpush1.msra.mxu0 %v760
        %2401 = vmatprep.subr.mxu0 %v753
        %2402 = vmatpush1.msra.mxu0 %v752
        %2403 = vmatprep.subr.mxu0 %v745
        %2404 = vmatpush1.msra.mxu0 %v744
        %2405 = vmatprep.subr.mxu0 %v737
        %2406 = vmatpush1.msra.mxu0 %v736
        %2407 = vmatprep.subr.mxu0 %v729
        %2408 = vmatpush1.msra.mxu0 %v728
        %2409 = vmatprep.subr.mxu0 %v721
        %2410 = vmatpush1.msra.mxu0 %v720
        %2411 = vmatprep.subr.mxu0 %v713
        %2412 = vmatpush1.msra.mxu0 %v712
        %2413 = vmatprep.subr.mxu0 %v705
        %2414 = vmatpush1.msra.mxu0 %v704
        %2415 = vmatprep.subr.mxu0 %v697
        %2416 = vmatpush1.msra.mxu0 %v696
        %2417 = vmatprep.subr.mxu0 %v689
        %2418 = vmatpush1.msra.mxu0 %v688
        %2419 = vmatprep.subr.mxu0 %v681
        %2420 = vmatpush1.msra.mxu0 %v680
        %2421 = vmatprep.subr.mxu0 %v673
        %2422 = vmatpush1.msra.mxu0 %v672
        %2423 = vmatprep.subr.mxu0 %v665
        %2424 = vmatpush1.msra.mxu0 %v664
        %2425 = vmatprep.subr.mxu0 %v913
        %2426 = vmatpush2.msra.mxu0 %v912
        %2427 = vmatprep.subr.mxu0 %v905
        %2428 = vmatpush2.msra.mxu0 %v904
        %2429 = vmatprep.subr.mxu0 %v897
        %2430 = vmatpush2.msra.mxu0 %v896
        %2431 = vmatprep.subr.mxu0 %v889
        %2432 = vmatpush2.msra.mxu0 %v888
        %2433 = vmatprep.subr.mxu0 %v881
        %2434 = vmatpush2.msra.mxu0 %v880
        %2435 = vmatprep.subr.mxu0 %v873
        %2436 = vmatpush2.msra.mxu0 %v872
        %2437 = vmatprep.subr.mxu0 %v865
        %2438 = vmatpush2.msra.mxu0 %v864
        %2439 = vmatprep.subr.mxu0 %v857
        %2440 = vmatpush2.msra.mxu0 %v856
        %2441 = vmatprep.subr.mxu0 %v849
        %2442 = vmatpush2.msra.mxu0 %v848
        %2443 = vmatprep.subr.mxu0 %v841
        %2444 = vmatpush2.msra.mxu0 %v840
        %2445 = vmatprep.subr.mxu0 %v833
        %2446 = vmatpush2.msra.mxu0 %v832
        %2447 = vmatprep.subr.mxu0 %v825
        %2448 = vmatpush2.msra.mxu0 %v824
        %2449 = vmatprep.subr.mxu0 %v817
        %2450 = vmatpush2.msra.mxu0 %v816
        %2451 = vmatprep.subr.mxu0 %v809
        %2452 = vmatpush2.msra.mxu0 %v808
        %2453 = vmatprep.subr.mxu0 %v801
        %2454 = vmatpush2.msra.mxu0 %v800
        %2455 = vmatprep.subr.mxu0 %v793
        %2456 = vmatpush2.msra.mxu0 %v792
        %2457 = vmatprep.mubr.f32.mxu0 %v1444
        %2458 = vmatmul.mubr.f32.gmra.mxu0 %v1442
        %v2459 = vpop.f32.mrf.mxu0
        %v2460 = vadd.f32 %v2389, %v2459
        %v2461 = vpop.f32.mrf.mxu0
        %v2462 = vadd.f32 %v2391, %v2461
        %2463 = vdwg.mxu0
        %2464 = vmatprep.subr.mxu0 %v1041
        %2465 = vmatpush1.msra.mxu0 %v1040
        %2466 = vmatprep.subr.mxu0 %v1033
        %2467 = vmatpush1.msra.mxu0 %v1032
        %2468 = vmatprep.subr.mxu0 %v1025
        %2469 = vmatpush1.msra.mxu0 %v1024
        %2470 = vmatprep.subr.mxu0 %v1017
        %2471 = vmatpush1.msra.mxu0 %v1016
        %2472 = vmatprep.subr.mxu0 %v1009
        %2473 = vmatpush1.msra.mxu0 %v1008
        %2474 = vmatprep.subr.mxu0 %v1001
        %2475 = vmatpush1.msra.mxu0 %v1000
        %2476 = vmatprep.subr.mxu0 %v993
        %2477 = vmatpush1.msra.mxu0 %v992
        %2478 = vmatprep.subr.mxu0 %v985
        %2479 = vmatpush1.msra.mxu0 %v984
        %2480 = vmatprep.subr.mxu0 %v977
        %2481 = vmatpush1.msra.mxu0 %v976
        %2482 = vmatprep.subr.mxu0 %v969
        %2483 = vmatpush1.msra.mxu0 %v968
        %2484 = vmatprep.subr.mxu0 %v961
        %2485 = vmatpush1.msra.mxu0 %v960
        %2486 = vmatprep.subr.mxu0 %v953
        %2487 = vmatpush1.msra.mxu0 %v952
        %2488 = vmatprep.subr.mxu0 %v945
        %2489 = vmatpush1.msra.mxu0 %v944
        %2490 = vmatprep.subr.mxu0 %v937
        %2491 = vmatpush1.msra.mxu0 %v936
        %2492 = vmatprep.subr.mxu0 %v929
        %2493 = vmatpush1.msra.mxu0 %v928
        %2494 = vmatprep.subr.mxu0 %v921
        %2495 = vmatpush1.msra.mxu0 %v920
        %2496 = vmatprep.subr.mxu0 %v1169
        %2497 = vmatpush2.msra.mxu0 %v1168
        %2498 = vmatprep.subr.mxu0 %v1161
        %2499 = vmatpush2.msra.mxu0 %v1160
        %2500 = vmatprep.subr.mxu0 %v1153
        %2501 = vmatpush2.msra.mxu0 %v1152
        %2502 = vmatprep.subr.mxu0 %v1145
        %2503 = vmatpush2.msra.mxu0 %v1144
        %2504 = vmatprep.subr.mxu0 %v1137
        %2505 = vmatpush2.msra.mxu0 %v1136
        %2506 = vmatprep.subr.mxu0 %v1129
        %2507 = vmatpush2.msra.mxu0 %v1128
        %2508 = vmatprep.subr.mxu0 %v1121
        %2509 = vmatpush2.msra.mxu0 %v1120
        %2510 = vmatprep.subr.mxu0 %v1113
        %2511 = vmatpush2.msra.mxu0 %v1112
        %2512 = vmatprep.subr.mxu0 %v1105
        %2513 = vmatpush2.msra.mxu0 %v1104
        %2514 = vmatprep.subr.mxu0 %v1097
        %2515 = vmatpush2.msra.mxu0 %v1096
        %2516 = vmatprep.subr.mxu0 %v1089
        %2517 = vmatpush2.msra.mxu0 %v1088
        %2518 = vmatprep.subr.mxu0 %v1081
        %2519 = vmatpush2.msra.mxu0 %v1080
        %2520 = vmatprep.subr.mxu0 %v1073
        %2521 = vmatpush2.msra.mxu0 %v1072
        %2522 = vmatprep.subr.mxu0 %v1065
        %2523 = vmatpush2.msra.mxu0 %v1064
        %2524 = vmatprep.subr.mxu0 %v1057
        %2525 = vmatpush2.msra.mxu0 %v1056
        %2526 = vmatprep.subr.mxu0 %v1049
        %2527 = vmatpush2.msra.mxu0 %v1048
        %2528 = vmatprep.mubr.f32.mxu0 %v1460
        %2529 = vmatmul.mubr.f32.gmra.mxu0 %v1452
        %v2530 = vpop.f32.mrf.mxu0
        %v2531 = vadd.f32 %v2460, %v2530
        %v2532 = vpop.f32.mrf.mxu0
        %v2533 = vadd.f32 %v2462, %v2532
        %2534 = vdwg.mxu0
        %2535 = vmatprep.subr.mxu0 %v1297
        %2536 = vmatpush1.msra.mxu0 %v1296
        %2537 = vmatprep.subr.mxu0 %v1289
        %2538 = vmatpush1.msra.mxu0 %v1288
        %2539 = vmatprep.subr.mxu0 %v1281
        %2540 = vmatpush1.msra.mxu0 %v1280
        %2541 = vmatprep.subr.mxu0 %v1273
        %2542 = vmatpush1.msra.mxu0 %v1272
        %2543 = vmatprep.subr.mxu0 %v1265
        %2544 = vmatpush1.msra.mxu0 %v1264
        %2545 = vmatprep.subr.mxu0 %v1257
        %2546 = vmatpush1.msra.mxu0 %v1256
        %2547 = vmatprep.subr.mxu0 %v1249
        %2548 = vmatpush1.msra.mxu0 %v1248
        %2549 = vmatprep.subr.mxu0 %v1241
        %2550 = vmatpush1.msra.mxu0 %v1240
        %2551 = vmatprep.subr.mxu0 %v1233
        %2552 = vmatpush1.msra.mxu0 %v1232
        %2553 = vmatprep.subr.mxu0 %v1225
        %2554 = vmatpush1.msra.mxu0 %v1224
        %2555 = vmatprep.subr.mxu0 %v1217
        %2556 = vmatpush1.msra.mxu0 %v1216
        %2557 = vmatprep.subr.mxu0 %v1209
        %2558 = vmatpush1.msra.mxu0 %v1208
        %2559 = vmatprep.subr.mxu0 %v1201
        %2560 = vmatpush1.msra.mxu0 %v1200
        %2561 = vmatprep.subr.mxu0 %v1193
        %2562 = vmatpush1.msra.mxu0 %v1192
        %2563 = vmatprep.subr.mxu0 %v1185
        %2564 = vmatpush1.msra.mxu0 %v1184
        %2565 = vmatprep.subr.mxu0 %v1177
        %2566 = vmatpush1.msra.mxu0 %v1176
        %2567 = vmatprep.subr.mxu0 %v1425
        %2568 = vmatpush2.msra.mxu0 %v1424
        %2569 = vmatprep.subr.mxu0 %v1417
        %2570 = vmatpush2.msra.mxu0 %v1416
        %2571 = vmatprep.subr.mxu0 %v1409
        %2572 = vmatpush2.msra.mxu0 %v1408
        %2573 = vmatprep.subr.mxu0 %v1401
        %2574 = vmatpush2.msra.mxu0 %v1400
        %2575 = vmatprep.subr.mxu0 %v1393
        %2576 = vmatpush2.msra.mxu0 %v1392
        %2577 = vmatprep.subr.mxu0 %v1385
        %2578 = vmatpush2.msra.mxu0 %v1384
        %2579 = vmatprep.subr.mxu0 %v1377
        %2580 = vmatpush2.msra.mxu0 %v1376
        %2581 = vmatprep.subr.mxu0 %v1369
        %2582 = vmatpush2.msra.mxu0 %v1368
        %2583 = vmatprep.subr.mxu0 %v1361
        %2584 = vmatpush2.msra.mxu0 %v1360
        %2585 = vmatprep.subr.mxu0 %v1353
        %2586 = vmatpush2.msra.mxu0 %v1352
        %2587 = vmatprep.subr.mxu0 %v1345
        %2588 = vmatpush2.msra.mxu0 %v1344
        %2589 = vmatprep.subr.mxu0 %v1337
        %2590 = vmatpush2.msra.mxu0 %v1336
        %2591 = vmatprep.subr.mxu0 %v1329
        %2592 = vmatpush2.msra.mxu0 %v1328
        %2593 = vmatprep.subr.mxu0 %v1321
        %2594 = vmatpush2.msra.mxu0 %v1320
        %2595 = vmatprep.subr.mxu0 %v1313
        %2596 = vmatpush2.msra.mxu0 %v1312
        %2597 = vmatprep.subr.mxu0 %v1305
        %2598 = vmatpush2.msra.mxu0 %v1304
        %2599 = vmatprep.mubr.f32.mxu0 %v1461
        %2600 = vmatmul.mubr.f32.gmra.mxu0 %v1459
        %v2601 = vpop.f32.mrf.mxu0
        %v2602 = vadd.f32 %v2531, %v2601
        %v2603 = vpop.f32.mrf.mxu0
        %v2604 = vadd.f32 %v2533, %v2603
        %2605 = vdwg.mxu0
        %v2614 = vcombine.low %v1750, %v1752
        %v2615 = vcombine.low %v2034, %v2036
        %v2617 = vunpack.c.l.s4 1983009808
        %v2618 = vunpack.c.0.s8 %v2617
        %v2619 = vlaneseq
        %v2620 = vshrl.u32 %v2619, 7
        %v2621 = vsub.s32 %v2618, %v2620
        %v2622 = vrot.slane %v2614, %v2621
        %v2624 = vunpack.c.l.s4 1983009808
        %v2625 = vunpack.c.0.s8 %v2624
        %v2626 = vlaneseq
        %v2627 = vshrl.u32 %v2626, 7
        %v2628 = vsub.s32 %v2625, %v2627
        %v2629 = vrot.slane %v2615, %v2628
        %v2630 = vcombine.low %v2622, %v2629
        %v2631 = vcombine.low %v2318, %v2320
        %v2632 = vcombine.low %v2602, %v2604
        %v2634 = vunpack.c.l.s4 1983009808
        %v2635 = vunpack.c.0.s8 %v2634
        %v2636 = vlaneseq
        %v2637 = vshrl.u32 %v2636, 7
        %v2638 = vsub.s32 %v2635, %v2637
        %v2639 = vrot.slane %v2631, %v2638
        %v2641 = vunpack.c.l.s4 1983009808
        %v2642 = vunpack.c.0.s8 %v2641
        %v2643 = vlaneseq
        %v2644 = vshrl.u32 %v2643, 7
        %v2645 = vsub.s32 %v2642, %v2644
        %v2646 = vrot.slane %v2632, %v2645
        %v2647 = vcombine.low %v2639, %v2646
        %v2650 = vadd.f32 %v398, %v2630
        %v2651 = vadd.f32 %v399, %v2647
        %2652 = vst [vmem:[#allocation2] sm:$0xff] %v2650
        %2653 = vst [vmem:[#allocation2 + $0x8] sm:$0xff] %v2651
        %p2654 = scmp.eq.s32.totalorder %s27, 3
        // Predicated region
        $region81: #{tpu_custom_call.1} parent=47 // pred_check
          %p2655 = pneg %p2654
        $region82: #{tpu_custom_call.1} parent=47 // pred_check_branch
          %2657 = sbr.rel (%p2655) target = $region84
        $region83: #{tpu_custom_call.1} parent=47 // pred_region
          %v2658 = vld [vmem:[#allocation2] sm:$0xff]
          %v2659 = vld [vmem:[#allocation2 + $0x8] sm:$0xff]
          %v2660 = vld [vmem:[#allocation8] sm:$0xff]
          %v2662 = vlaneseq
          %v2663 = vshrl.u32 %v2662, 7
          %v2664 = vsub.s32 0, %v2663
          %v2665 = vrot.slane %v2660, %v2664
          %v2666 = vlaneseq
          %v2667 = vshrl.u32 %v2666, 7
          %v2668 = vsub.s32 1, %v2667
          %v2669 = vrot.slane %v2660, %v2668
          %v2670 = vlaneseq
          %v2671 = vshrl.u32 %v2670, 7
          %v2672 = vsub.s32 2, %v2671
          %v2673 = vrot.slane %v2660, %v2672
          %v2674 = vlaneseq
          %v2675 = vshrl.u32 %v2674, 7
          %v2676 = vsub.s32 3, %v2675
          %v2677 = vrot.slane %v2660, %v2676
          %v2678 = vlaneseq
          %v2679 = vshrl.u32 %v2678, 7
          %v2680 = vsub.s32 4, %v2679
          %v2681 = vrot.slane %v2660, %v2680
          %v2682 = vlaneseq
          %v2683 = vshrl.u32 %v2682, 7
          %v2684 = vsub.s32 5, %v2683
          %v2685 = vrot.slane %v2660, %v2684
          %v2686 = vlaneseq
          %v2687 = vshrl.u32 %v2686, 7
          %v2688 = vsub.s32 6, %v2687
          %v2689 = vrot.slane %v2660, %v2688
          %v2690 = vlaneseq
          %v2691 = vshrl.u32 %v2690, 7
          %v2692 = vsub.s32 7, %v2691
          %v2693 = vrot.slane %v2660, %v2692
          %v2694 = vcombine.low %v2665, %v2669
          %v2695 = vcombine.low %v2673, %v2677
          %v2697 = vunpack.c.l.s4 1983009808
          %v2698 = vunpack.c.0.s8 %v2697
          %v2699 = vlaneseq
          %v2700 = vshrl.u32 %v2699, 7
          %v2701 = vsub.s32 %v2698, %v2700
          %v2702 = vrot.slane %v2694, %v2701
          %v2704 = vunpack.c.l.s4 1983009808
          %v2705 = vunpack.c.0.s8 %v2704
          %v2706 = vlaneseq
          %v2707 = vshrl.u32 %v2706, 7
          %v2708 = vsub.s32 %v2705, %v2707
          %v2709 = vrot.slane %v2695, %v2708
          %v2710 = vcombine.low %v2702, %v2709
          %v2711 = vcombine.low %v2681, %v2685
          %v2712 = vcombine.low %v2689, %v2693
          %v2714 = vunpack.c.l.s4 1983009808
          %v2715 = vunpack.c.0.s8 %v2714
          %v2716 = vlaneseq
          %v2717 = vshrl.u32 %v2716, 7
          %v2718 = vsub.s32 %v2715, %v2717
          %v2719 = vrot.slane %v2711, %v2718
          %v2721 = vunpack.c.l.s4 1983009808
          %v2722 = vunpack.c.0.s8 %v2721
          %v2723 = vlaneseq
          %v2724 = vshrl.u32 %v2723, 7
          %v2725 = vsub.s32 %v2722, %v2724
          %v2726 = vrot.slane %v2712, %v2725
          %v2727 = vcombine.low %v2719, %v2726
          %v2730 = vadd.f32 %v2658, %v2710
          %v2731 = vadd.f32 %v2659, %v2727
          %v2732 = vmax.f32 %v2730, 0.0
          %v2733 = vmax.f32 %v2731, 0.0
          %v2734 = vld [vmem:[#allocation9] sm:$0xff]
          %v2735 = vld [vmem:[#allocation9 + $0x8] sm:$0xff]
          %v2736 = vld [vmem:[#allocation9 + $0x10] sm:$0xff]
          %v2737 = vld [vmem:[#allocation9 + $0x18] sm:$0xff]
          %v2738 = vld [vmem:[#allocation9 + $0x20] sm:$0xff]
          %v2739 = vld [vmem:[#allocation9 + $0x28] sm:$0xff]
          %v2740 = vld [vmem:[#allocation9 + $0x30] sm:$0xff]
          %v2741 = vld [vmem:[#allocation9 + $0x38] sm:$0xff]
          %v2742 = vld [vmem:[#allocation9 + $0x40] sm:$0xff]
          %v2743 = vld [vmem:[#allocation9 + $0x48] sm:$0xff]
          %v2744 = vld [vmem:[#allocation9 + $0x50] sm:$0xff]
          %v2745 = vld [vmem:[#allocation9 + $0x58] sm:$0xff]
          %v2746 = vld [vmem:[#allocation9 + $0x60] sm:$0xff]
          %v2747 = vld [vmem:[#allocation9 + $0x68] sm:$0xff]
          %v2748 = vld [vmem:[#allocation9 + $0x70] sm:$0xff]
          %v2749 = vld [vmem:[#allocation9 + $0x78] sm:$0xff]
          %v2750 = vld [vmem:[#allocation9 + $0x80] sm:$0xff]
          %v2751 = vld [vmem:[#allocation9 + $0x88] sm:$0xff]
          %v2752 = vld [vmem:[#allocation9 + $0x90] sm:$0xff]
          %v2753 = vld [vmem:[#allocation9 + $0x98] sm:$0xff]
          %v2754 = vld [vmem:[#allocation9 + $0xa0] sm:$0xff]
          %v2755 = vld [vmem:[#allocation9 + $0xa8] sm:$0xff]
          %v2756 = vld [vmem:[#allocation9 + $0xb0] sm:$0xff]
          %v2757 = vld [vmem:[#allocation9 + $0xb8] sm:$0xff]
          %v2758 = vld [vmem:[#allocation9 + $0xc0] sm:$0xff]
          %v2759 = vld [vmem:[#allocation9 + $0xc8] sm:$0xff]
          %v2760 = vld [vmem:[#allocation9 + $0xd0] sm:$0xff]
          %v2761 = vld [vmem:[#allocation9 + $0xd8] sm:$0xff]
          %v2762 = vld [vmem:[#allocation9 + $0xe0] sm:$0xff]
          %v2763 = vld [vmem:[#allocation9 + $0xe8] sm:$0xff]
          %v2764 = vld [vmem:[#allocation9 + $0xf0] sm:$0xff]
          %v2765 = vld [vmem:[#allocation9 + $0xf8] sm:$0xff]
          %v2766 = vld [vmem:[#allocation9 + $0x100] sm:$0xff]
          %v2767 = vld [vmem:[#allocation9 + $0x108] sm:$0xff]
          %v2768 = vld [vmem:[#allocation9 + $0x110] sm:$0xff]
          %v2769 = vld [vmem:[#allocation9 + $0x118] sm:$0xff]
          %v2770 = vld [vmem:[#allocation9 + $0x120] sm:$0xff]
          %v2771 = vld [vmem:[#allocation9 + $0x128] sm:$0xff]
          %v2772 = vld [vmem:[#allocation9 + $0x130] sm:$0xff]
          %v2773 = vld [vmem:[#allocation9 + $0x138] sm:$0xff]
          %v2774 = vld [vmem:[#allocation9 + $0x140] sm:$0xff]
          %v2775 = vld [vmem:[#allocation9 + $0x148] sm:$0xff]
          %v2776 = vld [vmem:[#allocation9 + $0x150] sm:$0xff]
          %v2777 = vld [vmem:[#allocation9 + $0x158] sm:$0xff]
          %v2778 = vld [vmem:[#allocation9 + $0x160] sm:$0xff]
          %v2779 = vld [vmem:[#allocation9 + $0x168] sm:$0xff]
          %v2780 = vld [vmem:[#allocation9 + $0x170] sm:$0xff]
          %v2781 = vld [vmem:[#allocation9 + $0x178] sm:$0xff]
          %v2782 = vld [vmem:[#allocation9 + $0x180] sm:$0xff]
          %v2783 = vld [vmem:[#allocation9 + $0x188] sm:$0xff]
          %v2784 = vld [vmem:[#allocation9 + $0x190] sm:$0xff]
          %v2785 = vld [vmem:[#allocation9 + $0x198] sm:$0xff]
          %v2786 = vld [vmem:[#allocation9 + $0x1a0] sm:$0xff]
          %v2787 = vld [vmem:[#allocation9 + $0x1a8] sm:$0xff]
          %v2788 = vld [vmem:[#allocation9 + $0x1b0] sm:$0xff]
          %v2789 = vld [vmem:[#allocation9 + $0x1b8] sm:$0xff]
          %v2790 = vld [vmem:[#allocation9 + $0x1c0] sm:$0xff]
          %v2791 = vld [vmem:[#allocation9 + $0x1c8] sm:$0xff]
          %v2792 = vld [vmem:[#allocation9 + $0x1d0] sm:$0xff]
          %v2793 = vld [vmem:[#allocation9 + $0x1d8] sm:$0xff]
          %v2794 = vld [vmem:[#allocation9 + $0x1e0] sm:$0xff]
          %v2795 = vld [vmem:[#allocation9 + $0x1e8] sm:$0xff]
          %v2796 = vld [vmem:[#allocation9 + $0x1f0] sm:$0xff]
          %v2797 = vld [vmem:[#allocation9 + $0x1f8] sm:$0xff]
          %v2798 = vld [vmem:[#allocation9 + $0x200] sm:$0xff]
          %v2799 = vld [vmem:[#allocation9 + $0x208] sm:$0xff]
          %v2800 = vld [vmem:[#allocation9 + $0x210] sm:$0xff]
          %v2801 = vld [vmem:[#allocation9 + $0x218] sm:$0xff]
          %v2802 = vld [vmem:[#allocation9 + $0x220] sm:$0xff]
          %v2803 = vld [vmem:[#allocation9 + $0x228] sm:$0xff]
          %v2804 = vld [vmem:[#allocation9 + $0x230] sm:$0xff]
          %v2805 = vld [vmem:[#allocation9 + $0x238] sm:$0xff]
          %v2806 = vld [vmem:[#allocation9 + $0x240] sm:$0xff]
          %v2807 = vld [vmem:[#allocation9 + $0x248] sm:$0xff]
          %v2808 = vld [vmem:[#allocation9 + $0x250] sm:$0xff]
          %v2809 = vld [vmem:[#allocation9 + $0x258] sm:$0xff]
          %v2810 = vld [vmem:[#allocation9 + $0x260] sm:$0xff]
          %v2811 = vld [vmem:[#allocation9 + $0x268] sm:$0xff]
          %v2812 = vld [vmem:[#allocation9 + $0x270] sm:$0xff]
          %v2813 = vld [vmem:[#allocation9 + $0x278] sm:$0xff]
          %v2814 = vld [vmem:[#allocation9 + $0x280] sm:$0xff]
          %v2815 = vld [vmem:[#allocation9 + $0x288] sm:$0xff]
          %v2816 = vld [vmem:[#allocation9 + $0x290] sm:$0xff]
          %v2817 = vld [vmem:[#allocation9 + $0x298] sm:$0xff]
          %v2818 = vld [vmem:[#allocation9 + $0x2a0] sm:$0xff]
          %v2819 = vld [vmem:[#allocation9 + $0x2a8] sm:$0xff]
          %v2820 = vld [vmem:[#allocation9 + $0x2b0] sm:$0xff]
          %v2821 = vld [vmem:[#allocation9 + $0x2b8] sm:$0xff]
          %v2822 = vld [vmem:[#allocation9 + $0x2c0] sm:$0xff]
          %v2823 = vld [vmem:[#allocation9 + $0x2c8] sm:$0xff]
          %v2824 = vld [vmem:[#allocation9 + $0x2d0] sm:$0xff]
          %v2825 = vld [vmem:[#allocation9 + $0x2d8] sm:$0xff]
          %v2826 = vld [vmem:[#allocation9 + $0x2e0] sm:$0xff]
          %v2827 = vld [vmem:[#allocation9 + $0x2e8] sm:$0xff]
          %v2828 = vld [vmem:[#allocation9 + $0x2f0] sm:$0xff]
          %v2829 = vld [vmem:[#allocation9 + $0x2f8] sm:$0xff]
          %v2830 = vld [vmem:[#allocation9 + $0x300] sm:$0xff]
          %v2831 = vld [vmem:[#allocation9 + $0x308] sm:$0xff]
          %v2832 = vld [vmem:[#allocation9 + $0x310] sm:$0xff]
          %v2833 = vld [vmem:[#allocation9 + $0x318] sm:$0xff]
          %v2834 = vld [vmem:[#allocation9 + $0x320] sm:$0xff]
          %v2835 = vld [vmem:[#allocation9 + $0x328] sm:$0xff]
          %v2836 = vld [vmem:[#allocation9 + $0x330] sm:$0xff]
          %v2837 = vld [vmem:[#allocation9 + $0x338] sm:$0xff]
          %v2838 = vld [vmem:[#allocation9 + $0x340] sm:$0xff]
          %v2839 = vld [vmem:[#allocation9 + $0x348] sm:$0xff]
          %v2840 = vld [vmem:[#allocation9 + $0x350] sm:$0xff]
          %v2841 = vld [vmem:[#allocation9 + $0x358] sm:$0xff]
          %v2842 = vld [vmem:[#allocation9 + $0x360] sm:$0xff]
          %v2843 = vld [vmem:[#allocation9 + $0x368] sm:$0xff]
          %v2844 = vld [vmem:[#allocation9 + $0x370] sm:$0xff]
          %v2845 = vld [vmem:[#allocation9 + $0x378] sm:$0xff]
          %v2846 = vld [vmem:[#allocation9 + $0x380] sm:$0xff]
          %v2847 = vld [vmem:[#allocation9 + $0x388] sm:$0xff]
          %v2848 = vld [vmem:[#allocation9 + $0x390] sm:$0xff]
          %v2849 = vld [vmem:[#allocation9 + $0x398] sm:$0xff]
          %v2850 = vld [vmem:[#allocation9 + $0x3a0] sm:$0xff]
          %v2851 = vld [vmem:[#allocation9 + $0x3a8] sm:$0xff]
          %v2852 = vld [vmem:[#allocation9 + $0x3b0] sm:$0xff]
          %v2853 = vld [vmem:[#allocation9 + $0x3b8] sm:$0xff]
          %v2854 = vld [vmem:[#allocation9 + $0x3c0] sm:$0xff]
          %v2855 = vld [vmem:[#allocation9 + $0x3c8] sm:$0xff]
          %v2856 = vld [vmem:[#allocation9 + $0x3d0] sm:$0xff]
          %v2857 = vld [vmem:[#allocation9 + $0x3d8] sm:$0xff]
          %v2858 = vld [vmem:[#allocation9 + $0x3e0] sm:$0xff]
          %v2859 = vld [vmem:[#allocation9 + $0x3e8] sm:$0xff]
          %v2860 = vld [vmem:[#allocation9 + $0x3f0] sm:$0xff]
          %v2861 = vld [vmem:[#allocation9 + $0x3f8] sm:$0xff]
          %v2862 = vld [vmem:[#allocation9 + $0x400] sm:$0xff]
          %v2863 = vld [vmem:[#allocation9 + $0x408] sm:$0xff]
          %v2864 = vld [vmem:[#allocation9 + $0x410] sm:$0xff]
          %v2865 = vld [vmem:[#allocation9 + $0x418] sm:$0xff]
          %v2866 = vld [vmem:[#allocation9 + $0x420] sm:$0xff]
          %v2867 = vld [vmem:[#allocation9 + $0x428] sm:$0xff]
          %v2868 = vld [vmem:[#allocation9 + $0x430] sm:$0xff]
          %v2869 = vld [vmem:[#allocation9 + $0x438] sm:$0xff]
          %v2870 = vld [vmem:[#allocation9 + $0x440] sm:$0xff]
          %v2871 = vld [vmem:[#allocation9 + $0x448] sm:$0xff]
          %v2872 = vld [vmem:[#allocation9 + $0x450] sm:$0xff]
          %v2873 = vld [vmem:[#allocation9 + $0x458] sm:$0xff]
          %v2874 = vld [vmem:[#allocation9 + $0x460] sm:$0xff]
          %v2875 = vld [vmem:[#allocation9 + $0x468] sm:$0xff]
          %v2876 = vld [vmem:[#allocation9 + $0x470] sm:$0xff]
          %v2877 = vld [vmem:[#allocation9 + $0x478] sm:$0xff]
          %v2878 = vld [vmem:[#allocation9 + $0x480] sm:$0xff]
          %v2879 = vld [vmem:[#allocation9 + $0x488] sm:$0xff]
          %v2880 = vld [vmem:[#allocation9 + $0x490] sm:$0xff]
          %v2881 = vld [vmem:[#allocation9 + $0x498] sm:$0xff]
          %v2882 = vld [vmem:[#allocation9 + $0x4a0] sm:$0xff]
          %v2883 = vld [vmem:[#allocation9 + $0x4a8] sm:$0xff]
          %v2884 = vld [vmem:[#allocation9 + $0x4b0] sm:$0xff]
          %v2885 = vld [vmem:[#allocation9 + $0x4b8] sm:$0xff]
          %v2886 = vld [vmem:[#allocation9 + $0x4c0] sm:$0xff]
          %v2887 = vld [vmem:[#allocation9 + $0x4c8] sm:$0xff]
          %v2888 = vld [vmem:[#allocation9 + $0x4d0] sm:$0xff]
          %v2889 = vld [vmem:[#allocation9 + $0x4d8] sm:$0xff]
          %v2890 = vld [vmem:[#allocation9 + $0x4e0] sm:$0xff]
          %v2891 = vld [vmem:[#allocation9 + $0x4e8] sm:$0xff]
          %v2892 = vld [vmem:[#allocation9 + $0x4f0] sm:$0xff]
          %v2893 = vld [vmem:[#allocation9 + $0x4f8] sm:$0xff]
          %v2894 = vld [vmem:[#allocation9 + $0x500] sm:$0xff]
          %v2895 = vld [vmem:[#allocation9 + $0x508] sm:$0xff]
          %v2896 = vld [vmem:[#allocation9 + $0x510] sm:$0xff]
          %v2897 = vld [vmem:[#allocation9 + $0x518] sm:$0xff]
          %v2898 = vld [vmem:[#allocation9 + $0x520] sm:$0xff]
          %v2899 = vld [vmem:[#allocation9 + $0x528] sm:$0xff]
          %v2900 = vld [vmem:[#allocation9 + $0x530] sm:$0xff]
          %v2901 = vld [vmem:[#allocation9 + $0x538] sm:$0xff]
          %v2902 = vld [vmem:[#allocation9 + $0x540] sm:$0xff]
          %v2903 = vld [vmem:[#allocation9 + $0x548] sm:$0xff]
          %v2904 = vld [vmem:[#allocation9 + $0x550] sm:$0xff]
          %v2905 = vld [vmem:[#allocation9 + $0x558] sm:$0xff]
          %v2906 = vld [vmem:[#allocation9 + $0x560] sm:$0xff]
          %v2907 = vld [vmem:[#allocation9 + $0x568] sm:$0xff]
          %v2908 = vld [vmem:[#allocation9 + $0x570] sm:$0xff]
          %v2909 = vld [vmem:[#allocation9 + $0x578] sm:$0xff]
          %v2910 = vld [vmem:[#allocation9 + $0x580] sm:$0xff]
          %v2911 = vld [vmem:[#allocation9 + $0x588] sm:$0xff]
          %v2912 = vld [vmem:[#allocation9 + $0x590] sm:$0xff]
          %v2913 = vld [vmem:[#allocation9 + $0x598] sm:$0xff]
          %v2914 = vld [vmem:[#allocation9 + $0x5a0] sm:$0xff]
          %v2915 = vld [vmem:[#allocation9 + $0x5a8] sm:$0xff]
          %v2916 = vld [vmem:[#allocation9 + $0x5b0] sm:$0xff]
          %v2917 = vld [vmem:[#allocation9 + $0x5b8] sm:$0xff]
          %v2918 = vld [vmem:[#allocation9 + $0x5c0] sm:$0xff]
          %v2919 = vld [vmem:[#allocation9 + $0x5c8] sm:$0xff]
          %v2920 = vld [vmem:[#allocation9 + $0x5d0] sm:$0xff]
          %v2921 = vld [vmem:[#allocation9 + $0x5d8] sm:$0xff]
          %v2922 = vld [vmem:[#allocation9 + $0x5e0] sm:$0xff]
          %v2923 = vld [vmem:[#allocation9 + $0x5e8] sm:$0xff]
          %v2924 = vld [vmem:[#allocation9 + $0x5f0] sm:$0xff]
          %v2925 = vld [vmem:[#allocation9 + $0x5f8] sm:$0xff]
          %v2926 = vld [vmem:[#allocation9 + $0x600] sm:$0xff]
          %v2927 = vld [vmem:[#allocation9 + $0x608] sm:$0xff]
          %v2928 = vld [vmem:[#allocation9 + $0x610] sm:$0xff]
          %v2929 = vld [vmem:[#allocation9 + $0x618] sm:$0xff]
          %v2930 = vld [vmem:[#allocation9 + $0x620] sm:$0xff]
          %v2931 = vld [vmem:[#allocation9 + $0x628] sm:$0xff]
          %v2932 = vld [vmem:[#allocation9 + $0x630] sm:$0xff]
          %v2933 = vld [vmem:[#allocation9 + $0x638] sm:$0xff]
          %v2934 = vld [vmem:[#allocation9 + $0x640] sm:$0xff]
          %v2935 = vld [vmem:[#allocation9 + $0x648] sm:$0xff]
          %v2936 = vld [vmem:[#allocation9 + $0x650] sm:$0xff]
          %v2937 = vld [vmem:[#allocation9 + $0x658] sm:$0xff]
          %v2938 = vld [vmem:[#allocation9 + $0x660] sm:$0xff]
          %v2939 = vld [vmem:[#allocation9 + $0x668] sm:$0xff]
          %v2940 = vld [vmem:[#allocation9 + $0x670] sm:$0xff]
          %v2941 = vld [vmem:[#allocation9 + $0x678] sm:$0xff]
          %v2942 = vld [vmem:[#allocation9 + $0x680] sm:$0xff]
          %v2943 = vld [vmem:[#allocation9 + $0x688] sm:$0xff]
          %v2944 = vld [vmem:[#allocation9 + $0x690] sm:$0xff]
          %v2945 = vld [vmem:[#allocation9 + $0x698] sm:$0xff]
          %v2946 = vld [vmem:[#allocation9 + $0x6a0] sm:$0xff]
          %v2947 = vld [vmem:[#allocation9 + $0x6a8] sm:$0xff]
          %v2948 = vld [vmem:[#allocation9 + $0x6b0] sm:$0xff]
          %v2949 = vld [vmem:[#allocation9 + $0x6b8] sm:$0xff]
          %v2950 = vld [vmem:[#allocation9 + $0x6c0] sm:$0xff]
          %v2951 = vld [vmem:[#allocation9 + $0x6c8] sm:$0xff]
          %v2952 = vld [vmem:[#allocation9 + $0x6d0] sm:$0xff]
          %v2953 = vld [vmem:[#allocation9 + $0x6d8] sm:$0xff]
          %v2954 = vld [vmem:[#allocation9 + $0x6e0] sm:$0xff]
          %v2955 = vld [vmem:[#allocation9 + $0x6e8] sm:$0xff]
          %v2956 = vld [vmem:[#allocation9 + $0x6f0] sm:$0xff]
          %v2957 = vld [vmem:[#allocation9 + $0x6f8] sm:$0xff]
          %v2958 = vld [vmem:[#allocation9 + $0x700] sm:$0xff]
          %v2959 = vld [vmem:[#allocation9 + $0x708] sm:$0xff]
          %v2960 = vld [vmem:[#allocation9 + $0x710] sm:$0xff]
          %v2961 = vld [vmem:[#allocation9 + $0x718] sm:$0xff]
          %v2962 = vld [vmem:[#allocation9 + $0x720] sm:$0xff]
          %v2963 = vld [vmem:[#allocation9 + $0x728] sm:$0xff]
          %v2964 = vld [vmem:[#allocation9 + $0x730] sm:$0xff]
          %v2965 = vld [vmem:[#allocation9 + $0x738] sm:$0xff]
          %v2966 = vld [vmem:[#allocation9 + $0x740] sm:$0xff]
          %v2967 = vld [vmem:[#allocation9 + $0x748] sm:$0xff]
          %v2968 = vld [vmem:[#allocation9 + $0x750] sm:$0xff]
          %v2969 = vld [vmem:[#allocation9 + $0x758] sm:$0xff]
          %v2970 = vld [vmem:[#allocation9 + $0x760] sm:$0xff]
          %v2971 = vld [vmem:[#allocation9 + $0x768] sm:$0xff]
          %v2972 = vld [vmem:[#allocation9 + $0x770] sm:$0xff]
          %v2973 = vld [vmem:[#allocation9 + $0x778] sm:$0xff]
          %v2974 = vld [vmem:[#allocation9 + $0x780] sm:$0xff]
          %v2975 = vld [vmem:[#allocation9 + $0x788] sm:$0xff]
          %v2976 = vld [vmem:[#allocation9 + $0x790] sm:$0xff]
          %v2977 = vld [vmem:[#allocation9 + $0x798] sm:$0xff]
          %v2978 = vld [vmem:[#allocation9 + $0x7a0] sm:$0xff]
          %v2979 = vld [vmem:[#allocation9 + $0x7a8] sm:$0xff]
          %v2980 = vld [vmem:[#allocation9 + $0x7b0] sm:$0xff]
          %v2981 = vld [vmem:[#allocation9 + $0x7b8] sm:$0xff]
          %v2982 = vld [vmem:[#allocation9 + $0x7c0] sm:$0xff]
          %v2983 = vld [vmem:[#allocation9 + $0x7c8] sm:$0xff]
          %v2984 = vld [vmem:[#allocation9 + $0x7d0] sm:$0xff]
          %v2985 = vld [vmem:[#allocation9 + $0x7d8] sm:$0xff]
          %v2986 = vld [vmem:[#allocation9 + $0x7e0] sm:$0xff]
          %v2987 = vld [vmem:[#allocation9 + $0x7e8] sm:$0xff]
          %v2988 = vld [vmem:[#allocation9 + $0x7f0] sm:$0xff]
          %v2989 = vld [vmem:[#allocation9 + $0x7f8] sm:$0xff]
          %v2990 = vld [vmem:[#allocation9 + $0x800] sm:$0xff]
          %v2991 = vld [vmem:[#allocation9 + $0x808] sm:$0xff]
          %v2992 = vld [vmem:[#allocation9 + $0x810] sm:$0xff]
          %v2993 = vld [vmem:[#allocation9 + $0x818] sm:$0xff]
          %v2994 = vld [vmem:[#allocation9 + $0x820] sm:$0xff]
          %v2995 = vld [vmem:[#allocation9 + $0x828] sm:$0xff]
          %v2996 = vld [vmem:[#allocation9 + $0x830] sm:$0xff]
          %v2997 = vld [vmem:[#allocation9 + $0x838] sm:$0xff]
          %v2998 = vld [vmem:[#allocation9 + $0x840] sm:$0xff]
          %v2999 = vld [vmem:[#allocation9 + $0x848] sm:$0xff]
          %v3000 = vld [vmem:[#allocation9 + $0x850] sm:$0xff]
          %v3001 = vld [vmem:[#allocation9 + $0x858] sm:$0xff]
          %v3002 = vld [vmem:[#allocation9 + $0x860] sm:$0xff]
          %v3003 = vld [vmem:[#allocation9 + $0x868] sm:$0xff]
          %v3004 = vld [vmem:[#allocation9 + $0x870] sm:$0xff]
          %v3005 = vld [vmem:[#allocation9 + $0x878] sm:$0xff]
          %v3006 = vld [vmem:[#allocation9 + $0x880] sm:$0xff]
          %v3007 = vld [vmem:[#allocation9 + $0x888] sm:$0xff]
          %v3008 = vld [vmem:[#allocation9 + $0x890] sm:$0xff]
          %v3009 = vld [vmem:[#allocation9 + $0x898] sm:$0xff]
          %v3010 = vld [vmem:[#allocation9 + $0x8a0] sm:$0xff]
          %v3011 = vld [vmem:[#allocation9 + $0x8a8] sm:$0xff]
          %v3012 = vld [vmem:[#allocation9 + $0x8b0] sm:$0xff]
          %v3013 = vld [vmem:[#allocation9 + $0x8b8] sm:$0xff]
          %v3014 = vld [vmem:[#allocation9 + $0x8c0] sm:$0xff]
          %v3015 = vld [vmem:[#allocation9 + $0x8c8] sm:$0xff]
          %v3016 = vld [vmem:[#allocation9 + $0x8d0] sm:$0xff]
          %v3017 = vld [vmem:[#allocation9 + $0x8d8] sm:$0xff]
          %v3018 = vld [vmem:[#allocation9 + $0x8e0] sm:$0xff]
          %v3019 = vld [vmem:[#allocation9 + $0x8e8] sm:$0xff]
          %v3020 = vld [vmem:[#allocation9 + $0x8f0] sm:$0xff]
          %v3021 = vld [vmem:[#allocation9 + $0x8f8] sm:$0xff]
          %v3022 = vld [vmem:[#allocation9 + $0x900] sm:$0xff]
          %v3023 = vld [vmem:[#allocation9 + $0x908] sm:$0xff]
          %v3024 = vld [vmem:[#allocation9 + $0x910] sm:$0xff]
          %v3025 = vld [vmem:[#allocation9 + $0x918] sm:$0xff]
          %v3026 = vld [vmem:[#allocation9 + $0x920] sm:$0xff]
          %v3027 = vld [vmem:[#allocation9 + $0x928] sm:$0xff]
          %v3028 = vld [vmem:[#allocation9 + $0x930] sm:$0xff]
          %v3029 = vld [vmem:[#allocation9 + $0x938] sm:$0xff]
          %v3030 = vld [vmem:[#allocation9 + $0x940] sm:$0xff]
          %v3031 = vld [vmem:[#allocation9 + $0x948] sm:$0xff]
          %v3032 = vld [vmem:[#allocation9 + $0x950] sm:$0xff]
          %v3033 = vld [vmem:[#allocation9 + $0x958] sm:$0xff]
          %v3034 = vld [vmem:[#allocation9 + $0x960] sm:$0xff]
          %v3035 = vld [vmem:[#allocation9 + $0x968] sm:$0xff]
          %v3036 = vld [vmem:[#allocation9 + $0x970] sm:$0xff]
          %v3037 = vld [vmem:[#allocation9 + $0x978] sm:$0xff]
          %v3038 = vld [vmem:[#allocation9 + $0x980] sm:$0xff]
          %v3039 = vld [vmem:[#allocation9 + $0x988] sm:$0xff]
          %v3040 = vld [vmem:[#allocation9 + $0x990] sm:$0xff]
          %v3041 = vld [vmem:[#allocation9 + $0x998] sm:$0xff]
          %v3042 = vld [vmem:[#allocation9 + $0x9a0] sm:$0xff]
          %v3043 = vld [vmem:[#allocation9 + $0x9a8] sm:$0xff]
          %v3044 = vld [vmem:[#allocation9 + $0x9b0] sm:$0xff]
          %v3045 = vld [vmem:[#allocation9 + $0x9b8] sm:$0xff]
          %v3046 = vld [vmem:[#allocation9 + $0x9c0] sm:$0xff]
          %v3047 = vld [vmem:[#allocation9 + $0x9c8] sm:$0xff]
          %v3048 = vld [vmem:[#allocation9 + $0x9d0] sm:$0xff]
          %v3049 = vld [vmem:[#allocation9 + $0x9d8] sm:$0xff]
          %v3050 = vld [vmem:[#allocation9 + $0x9e0] sm:$0xff]
          %v3051 = vld [vmem:[#allocation9 + $0x9e8] sm:$0xff]
          %v3052 = vld [vmem:[#allocation9 + $0x9f0] sm:$0xff]
          %v3053 = vld [vmem:[#allocation9 + $0x9f8] sm:$0xff]
          %v3054 = vld [vmem:[#allocation9 + $0xa00] sm:$0xff]
          %v3055 = vld [vmem:[#allocation9 + $0xa08] sm:$0xff]
          %v3056 = vld [vmem:[#allocation9 + $0xa10] sm:$0xff]
          %v3057 = vld [vmem:[#allocation9 + $0xa18] sm:$0xff]
          %v3058 = vld [vmem:[#allocation9 + $0xa20] sm:$0xff]
          %v3059 = vld [vmem:[#allocation9 + $0xa28] sm:$0xff]
          %v3060 = vld [vmem:[#allocation9 + $0xa30] sm:$0xff]
          %v3061 = vld [vmem:[#allocation9 + $0xa38] sm:$0xff]
          %v3062 = vld [vmem:[#allocation9 + $0xa40] sm:$0xff]
          %v3063 = vld [vmem:[#allocation9 + $0xa48] sm:$0xff]
          %v3064 = vld [vmem:[#allocation9 + $0xa50] sm:$0xff]
          %v3065 = vld [vmem:[#allocation9 + $0xa58] sm:$0xff]
          %v3066 = vld [vmem:[#allocation9 + $0xa60] sm:$0xff]
          %v3067 = vld [vmem:[#allocation9 + $0xa68] sm:$0xff]
          %v3068 = vld [vmem:[#allocation9 + $0xa70] sm:$0xff]
          %v3069 = vld [vmem:[#allocation9 + $0xa78] sm:$0xff]
          %v3070 = vld [vmem:[#allocation9 + $0xa80] sm:$0xff]
          %v3071 = vld [vmem:[#allocation9 + $0xa88] sm:$0xff]
          %v3072 = vld [vmem:[#allocation9 + $0xa90] sm:$0xff]
          %v3073 = vld [vmem:[#allocation9 + $0xa98] sm:$0xff]
          %v3074 = vld [vmem:[#allocation9 + $0xaa0] sm:$0xff]
          %v3075 = vld [vmem:[#allocation9 + $0xaa8] sm:$0xff]
          %v3076 = vld [vmem:[#allocation9 + $0xab0] sm:$0xff]
          %v3077 = vld [vmem:[#allocation9 + $0xab8] sm:$0xff]
          %v3078 = vld [vmem:[#allocation9 + $0xac0] sm:$0xff]
          %v3079 = vld [vmem:[#allocation9 + $0xac8] sm:$0xff]
          %v3080 = vld [vmem:[#allocation9 + $0xad0] sm:$0xff]
          %v3081 = vld [vmem:[#allocation9 + $0xad8] sm:$0xff]
          %v3082 = vld [vmem:[#allocation9 + $0xae0] sm:$0xff]
          %v3083 = vld [vmem:[#allocation9 + $0xae8] sm:$0xff]
          %v3084 = vld [vmem:[#allocation9 + $0xaf0] sm:$0xff]
          %v3085 = vld [vmem:[#allocation9 + $0xaf8] sm:$0xff]
          %v3086 = vld [vmem:[#allocation9 + $0xb00] sm:$0xff]
          %v3087 = vld [vmem:[#allocation9 + $0xb08] sm:$0xff]
          %v3088 = vld [vmem:[#allocation9 + $0xb10] sm:$0xff]
          %v3089 = vld [vmem:[#allocation9 + $0xb18] sm:$0xff]
          %v3090 = vld [vmem:[#allocation9 + $0xb20] sm:$0xff]
          %v3091 = vld [vmem:[#allocation9 + $0xb28] sm:$0xff]
          %v3092 = vld [vmem:[#allocation9 + $0xb30] sm:$0xff]
          %v3093 = vld [vmem:[#allocation9 + $0xb38] sm:$0xff]
          %v3094 = vld [vmem:[#allocation9 + $0xb40] sm:$0xff]
          %v3095 = vld [vmem:[#allocation9 + $0xb48] sm:$0xff]
          %v3096 = vld [vmem:[#allocation9 + $0xb50] sm:$0xff]
          %v3097 = vld [vmem:[#allocation9 + $0xb58] sm:$0xff]
          %v3098 = vld [vmem:[#allocation9 + $0xb60] sm:$0xff]
          %v3099 = vld [vmem:[#allocation9 + $0xb68] sm:$0xff]
          %v3100 = vld [vmem:[#allocation9 + $0xb70] sm:$0xff]
          %v3101 = vld [vmem:[#allocation9 + $0xb78] sm:$0xff]
          %v3102 = vld [vmem:[#allocation9 + $0xb80] sm:$0xff]
          %v3103 = vld [vmem:[#allocation9 + $0xb88] sm:$0xff]
          %v3104 = vld [vmem:[#allocation9 + $0xb90] sm:$0xff]
          %v3105 = vld [vmem:[#allocation9 + $0xb98] sm:$0xff]
          %v3106 = vld [vmem:[#allocation9 + $0xba0] sm:$0xff]
          %v3107 = vld [vmem:[#allocation9 + $0xba8] sm:$0xff]
          %v3108 = vld [vmem:[#allocation9 + $0xbb0] sm:$0xff]
          %v3109 = vld [vmem:[#allocation9 + $0xbb8] sm:$0xff]
          %v3110 = vld [vmem:[#allocation9 + $0xbc0] sm:$0xff]
          %v3111 = vld [vmem:[#allocation9 + $0xbc8] sm:$0xff]
          %v3112 = vld [vmem:[#allocation9 + $0xbd0] sm:$0xff]
          %v3113 = vld [vmem:[#allocation9 + $0xbd8] sm:$0xff]
          %v3114 = vld [vmem:[#allocation9 + $0xbe0] sm:$0xff]
          %v3115 = vld [vmem:[#allocation9 + $0xbe8] sm:$0xff]
          %v3116 = vld [vmem:[#allocation9 + $0xbf0] sm:$0xff]
          %v3117 = vld [vmem:[#allocation9 + $0xbf8] sm:$0xff]
          %v3118 = vld [vmem:[#allocation9 + $0xc00] sm:$0xff]
          %v3119 = vld [vmem:[#allocation9 + $0xc08] sm:$0xff]
          %v3120 = vld [vmem:[#allocation9 + $0xc10] sm:$0xff]
          %v3121 = vld [vmem:[#allocation9 + $0xc18] sm:$0xff]
          %v3122 = vld [vmem:[#allocation9 + $0xc20] sm:$0xff]
          %v3123 = vld [vmem:[#allocation9 + $0xc28] sm:$0xff]
          %v3124 = vld [vmem:[#allocation9 + $0xc30] sm:$0xff]
          %v3125 = vld [vmem:[#allocation9 + $0xc38] sm:$0xff]
          %v3126 = vld [vmem:[#allocation9 + $0xc40] sm:$0xff]
          %v3127 = vld [vmem:[#allocation9 + $0xc48] sm:$0xff]
          %v3128 = vld [vmem:[#allocation9 + $0xc50] sm:$0xff]
          %v3129 = vld [vmem:[#allocation9 + $0xc58] sm:$0xff]
          %v3130 = vld [vmem:[#allocation9 + $0xc60] sm:$0xff]
          %v3131 = vld [vmem:[#allocation9 + $0xc68] sm:$0xff]
          %v3132 = vld [vmem:[#allocation9 + $0xc70] sm:$0xff]
          %v3133 = vld [vmem:[#allocation9 + $0xc78] sm:$0xff]
          %v3134 = vld [vmem:[#allocation9 + $0xc80] sm:$0xff]
          %v3135 = vld [vmem:[#allocation9 + $0xc88] sm:$0xff]
          %v3136 = vld [vmem:[#allocation9 + $0xc90] sm:$0xff]
          %v3137 = vld [vmem:[#allocation9 + $0xc98] sm:$0xff]
          %v3138 = vld [vmem:[#allocation9 + $0xca0] sm:$0xff]
          %v3139 = vld [vmem:[#allocation9 + $0xca8] sm:$0xff]
          %v3140 = vld [vmem:[#allocation9 + $0xcb0] sm:$0xff]
          %v3141 = vld [vmem:[#allocation9 + $0xcb8] sm:$0xff]
          %v3142 = vld [vmem:[#allocation9 + $0xcc0] sm:$0xff]
          %v3143 = vld [vmem:[#allocation9 + $0xcc8] sm:$0xff]
          %v3144 = vld [vmem:[#allocation9 + $0xcd0] sm:$0xff]
          %v3145 = vld [vmem:[#allocation9 + $0xcd8] sm:$0xff]
          %v3146 = vld [vmem:[#allocation9 + $0xce0] sm:$0xff]
          %v3147 = vld [vmem:[#allocation9 + $0xce8] sm:$0xff]
          %v3148 = vld [vmem:[#allocation9 + $0xcf0] sm:$0xff]
          %v3149 = vld [vmem:[#allocation9 + $0xcf8] sm:$0xff]
          %v3150 = vld [vmem:[#allocation9 + $0xd00] sm:$0xff]
          %v3151 = vld [vmem:[#allocation9 + $0xd08] sm:$0xff]
          %v3152 = vld [vmem:[#allocation9 + $0xd10] sm:$0xff]
          %v3153 = vld [vmem:[#allocation9 + $0xd18] sm:$0xff]
          %v3154 = vld [vmem:[#allocation9 + $0xd20] sm:$0xff]
          %v3155 = vld [vmem:[#allocation9 + $0xd28] sm:$0xff]
          %v3156 = vld [vmem:[#allocation9 + $0xd30] sm:$0xff]
          %v3157 = vld [vmem:[#allocation9 + $0xd38] sm:$0xff]
          %v3158 = vld [vmem:[#allocation9 + $0xd40] sm:$0xff]
          %v3159 = vld [vmem:[#allocation9 + $0xd48] sm:$0xff]
          %v3160 = vld [vmem:[#allocation9 + $0xd50] sm:$0xff]
          %v3161 = vld [vmem:[#allocation9 + $0xd58] sm:$0xff]
          %v3162 = vld [vmem:[#allocation9 + $0xd60] sm:$0xff]
          %v3163 = vld [vmem:[#allocation9 + $0xd68] sm:$0xff]
          %v3164 = vld [vmem:[#allocation9 + $0xd70] sm:$0xff]
          %v3165 = vld [vmem:[#allocation9 + $0xd78] sm:$0xff]
          %v3166 = vld [vmem:[#allocation9 + $0xd80] sm:$0xff]
          %v3167 = vld [vmem:[#allocation9 + $0xd88] sm:$0xff]
          %v3168 = vld [vmem:[#allocation9 + $0xd90] sm:$0xff]
          %v3169 = vld [vmem:[#allocation9 + $0xd98] sm:$0xff]
          %v3170 = vld [vmem:[#allocation9 + $0xda0] sm:$0xff]
          %v3171 = vld [vmem:[#allocation9 + $0xda8] sm:$0xff]
          %v3172 = vld [vmem:[#allocation9 + $0xdb0] sm:$0xff]
          %v3173 = vld [vmem:[#allocation9 + $0xdb8] sm:$0xff]
          %v3174 = vld [vmem:[#allocation9 + $0xdc0] sm:$0xff]
          %v3175 = vld [vmem:[#allocation9 + $0xdc8] sm:$0xff]
          %v3176 = vld [vmem:[#allocation9 + $0xdd0] sm:$0xff]
          %v3177 = vld [vmem:[#allocation9 + $0xdd8] sm:$0xff]
          %v3178 = vld [vmem:[#allocation9 + $0xde0] sm:$0xff]
          %v3179 = vld [vmem:[#allocation9 + $0xde8] sm:$0xff]
          %v3180 = vld [vmem:[#allocation9 + $0xdf0] sm:$0xff]
          %v3181 = vld [vmem:[#allocation9 + $0xdf8] sm:$0xff]
          %v3182 = vld [vmem:[#allocation9 + $0xe00] sm:$0xff]
          %v3183 = vld [vmem:[#allocation9 + $0xe08] sm:$0xff]
          %v3184 = vld [vmem:[#allocation9 + $0xe10] sm:$0xff]
          %v3185 = vld [vmem:[#allocation9 + $0xe18] sm:$0xff]
          %v3186 = vld [vmem:[#allocation9 + $0xe20] sm:$0xff]
          %v3187 = vld [vmem:[#allocation9 + $0xe28] sm:$0xff]
          %v3188 = vld [vmem:[#allocation9 + $0xe30] sm:$0xff]
          %v3189 = vld [vmem:[#allocation9 + $0xe38] sm:$0xff]
          %v3190 = vld [vmem:[#allocation9 + $0xe40] sm:$0xff]
          %v3191 = vld [vmem:[#allocation9 + $0xe48] sm:$0xff]
          %v3192 = vld [vmem:[#allocation9 + $0xe50] sm:$0xff]
          %v3193 = vld [vmem:[#allocation9 + $0xe58] sm:$0xff]
          %v3194 = vld [vmem:[#allocation9 + $0xe60] sm:$0xff]
          %v3195 = vld [vmem:[#allocation9 + $0xe68] sm:$0xff]
          %v3196 = vld [vmem:[#allocation9 + $0xe70] sm:$0xff]
          %v3197 = vld [vmem:[#allocation9 + $0xe78] sm:$0xff]
          %v3198 = vld [vmem:[#allocation9 + $0xe80] sm:$0xff]
          %v3199 = vld [vmem:[#allocation9 + $0xe88] sm:$0xff]
          %v3200 = vld [vmem:[#allocation9 + $0xe90] sm:$0xff]
          %v3201 = vld [vmem:[#allocation9 + $0xe98] sm:$0xff]
          %v3202 = vld [vmem:[#allocation9 + $0xea0] sm:$0xff]
          %v3203 = vld [vmem:[#allocation9 + $0xea8] sm:$0xff]
          %v3204 = vld [vmem:[#allocation9 + $0xeb0] sm:$0xff]
          %v3205 = vld [vmem:[#allocation9 + $0xeb8] sm:$0xff]
          %v3206 = vld [vmem:[#allocation9 + $0xec0] sm:$0xff]
          %v3207 = vld [vmem:[#allocation9 + $0xec8] sm:$0xff]
          %v3208 = vld [vmem:[#allocation9 + $0xed0] sm:$0xff]
          %v3209 = vld [vmem:[#allocation9 + $0xed8] sm:$0xff]
          %v3210 = vld [vmem:[#allocation9 + $0xee0] sm:$0xff]
          %v3211 = vld [vmem:[#allocation9 + $0xee8] sm:$0xff]
          %v3212 = vld [vmem:[#allocation9 + $0xef0] sm:$0xff]
          %v3213 = vld [vmem:[#allocation9 + $0xef8] sm:$0xff]
          %v3214 = vld [vmem:[#allocation9 + $0xf00] sm:$0xff]
          %v3215 = vld [vmem:[#allocation9 + $0xf08] sm:$0xff]
          %v3216 = vld [vmem:[#allocation9 + $0xf10] sm:$0xff]
          %v3217 = vld [vmem:[#allocation9 + $0xf18] sm:$0xff]
          %v3218 = vld [vmem:[#allocation9 + $0xf20] sm:$0xff]
          %v3219 = vld [vmem:[#allocation9 + $0xf28] sm:$0xff]
          %v3220 = vld [vmem:[#allocation9 + $0xf30] sm:$0xff]
          %v3221 = vld [vmem:[#allocation9 + $0xf38] sm:$0xff]
          %v3222 = vld [vmem:[#allocation9 + $0xf40] sm:$0xff]
          %v3223 = vld [vmem:[#allocation9 + $0xf48] sm:$0xff]
          %v3224 = vld [vmem:[#allocation9 + $0xf50] sm:$0xff]
          %v3225 = vld [vmem:[#allocation9 + $0xf58] sm:$0xff]
          %v3226 = vld [vmem:[#allocation9 + $0xf60] sm:$0xff]
          %v3227 = vld [vmem:[#allocation9 + $0xf68] sm:$0xff]
          %v3228 = vld [vmem:[#allocation9 + $0xf70] sm:$0xff]
          %v3229 = vld [vmem:[#allocation9 + $0xf78] sm:$0xff]
          %v3230 = vld [vmem:[#allocation9 + $0xf80] sm:$0xff]
          %v3231 = vld [vmem:[#allocation9 + $0xf88] sm:$0xff]
          %v3232 = vld [vmem:[#allocation9 + $0xf90] sm:$0xff]
          %v3233 = vld [vmem:[#allocation9 + $0xf98] sm:$0xff]
          %v3234 = vld [vmem:[#allocation9 + $0xfa0] sm:$0xff]
          %v3235 = vld [vmem:[#allocation9 + $0xfa8] sm:$0xff]
          %v3236 = vld [vmem:[#allocation9 + $0xfb0] sm:$0xff]
          %v3237 = vld [vmem:[#allocation9 + $0xfb8] sm:$0xff]
          %v3238 = vld [vmem:[#allocation9 + $0xfc0] sm:$0xff]
          %v3239 = vld [vmem:[#allocation9 + $0xfc8] sm:$0xff]
          %v3240 = vld [vmem:[#allocation9 + $0xfd0] sm:$0xff]
          %v3241 = vld [vmem:[#allocation9 + $0xfd8] sm:$0xff]
          %v3242 = vld [vmem:[#allocation9 + $0xfe0] sm:$0xff]
          %v3243 = vld [vmem:[#allocation9 + $0xfe8] sm:$0xff]
          %v3244 = vld [vmem:[#allocation9 + $0xff0] sm:$0xff]
          %v3245 = vld [vmem:[#allocation9 + $0xff8] sm:$0xff]
          %v3246 = vld [vmem:[#allocation11] sm:$0xf]
          %v3248 = vlaneseq
          %v3249 = vshrl.u32 %v3248, 7
          %v3250 = vsub.s32 0, %v3249
          %v3251 = vrot.slane %v3246, %v3250
          %v3252 = vlaneseq
          %v3253 = vshrl.u32 %v3252, 7
          %v3254 = vsub.s32 1, %v3253
          %v3255 = vrot.slane %v3246, %v3254
          %v3256 = vlaneseq
          %v3257 = vshrl.u32 %v3256, 7
          %v3258 = vsub.s32 2, %v3257
          %v3259 = vrot.slane %v3246, %v3258
          %v3260 = vlaneseq
          %v3261 = vshrl.u32 %v3260, 7
          %v3262 = vsub.s32 3, %v3261
          %v3263 = vrot.slane %v3246, %v3262
          %v3270 = vcombine.high %v2732, %v2732
          %v3272 = vunpack.c.l.s4 1983009808
          %v3273 = vunpack.c.0.s8 %v3272
          %v3274 = vlaneseq
          %v3275 = vshrl.u32 %v3274, 7
          %v3276 = vsub.s32 %v3273, %v3275
          %v3277 = vrot.slane %v2732, %v3276
          %v3279 = vunpack.c.l.s4 1983009808
          %v3280 = vunpack.c.0.s8 %v3279
          %v3281 = vlaneseq
          %v3282 = vshrl.u32 %v3281, 7
          %v3283 = vsub.s32 %v3280, %v3282
          %v3284 = vrot.slane %v3270, %v3283
          %v3285 = vcombine.high %v3277, %v3277
          %v3286 = vcombine.high %v3284, %v3284
          %v3287 = vcombine.high %v2733, %v2733
          %v3289 = vunpack.c.l.s4 1983009808
          %v3290 = vunpack.c.0.s8 %v3289
          %v3291 = vlaneseq
          %v3292 = vshrl.u32 %v3291, 7
          %v3293 = vsub.s32 %v3290, %v3292
          %v3294 = vrot.slane %v2733, %v3293
          %v3296 = vunpack.c.l.s4 1983009808
          %v3297 = vunpack.c.0.s8 %v3296
          %v3298 = vlaneseq
          %v3299 = vshrl.u32 %v3298, 7
          %v3300 = vsub.s32 %v3297, %v3299
          %v3301 = vrot.slane %v3287, %v3300
          %v3302 = vcombine.high %v3294, %v3294
          %v3303 = vcombine.high %v3301, %v3301
          %3312 = vmatprep.subr.mxu0 %v2795
          %3313 = vmatpush1.msra.mxu0 %v2794
          %3314 = vmatprep.subr.mxu0 %v2791
          %3315 = vmatpush1.msra.mxu0 %v2790
          %3316 = vmatprep.subr.mxu0 %v2787
          %3317 = vmatpush1.msra.mxu0 %v2786
          %3318 = vmatprep.subr.mxu0 %v2783
          %3319 = vmatpush1.msra.mxu0 %v2782
          %3320 = vmatprep.subr.mxu0 %v2779
          %3321 = vmatpush1.msra.mxu0 %v2778
          %3322 = vmatprep.subr.mxu0 %v2775
          %3323 = vmatpush1.msra.mxu0 %v2774
          %3324 = vmatprep.subr.mxu0 %v2771
          %3325 = vmatpush1.msra.mxu0 %v2770
          %3326 = vmatprep.subr.mxu0 %v2767
          %3327 = vmatpush1.msra.mxu0 %v2766
          %3328 = vmatprep.subr.mxu0 %v2763
          %3329 = vmatpush1.msra.mxu0 %v2762
          %3330 = vmatprep.subr.mxu0 %v2759
          %3331 = vmatpush1.msra.mxu0 %v2758
          %3332 = vmatprep.subr.mxu0 %v2755
          %3333 = vmatpush1.msra.mxu0 %v2754
          %3334 = vmatprep.subr.mxu0 %v2751
          %3335 = vmatpush1.msra.mxu0 %v2750
          %3336 = vmatprep.subr.mxu0 %v2747
          %3337 = vmatpush1.msra.mxu0 %v2746
          %3338 = vmatprep.subr.mxu0 %v2743
          %3339 = vmatpush1.msra.mxu0 %v2742
          %3340 = vmatprep.subr.mxu0 %v2739
          %3341 = vmatpush1.msra.mxu0 %v2738
          %3342 = vmatprep.subr.mxu0 %v2735
          %3343 = vmatpush1.msra.mxu0 %v2734
          %3344 = vmatprep.subr.mxu0 %v2859
          %3345 = vmatpush2.msra.mxu0 %v2858
          %3346 = vmatprep.subr.mxu0 %v2855
          %3347 = vmatpush2.msra.mxu0 %v2854
          %3348 = vmatprep.subr.mxu0 %v2851
          %3349 = vmatpush2.msra.mxu0 %v2850
          %3350 = vmatprep.subr.mxu0 %v2847
          %3351 = vmatpush2.msra.mxu0 %v2846
          %3352 = vmatprep.subr.mxu0 %v2843
          %3353 = vmatpush2.msra.mxu0 %v2842
          %3354 = vmatprep.subr.mxu0 %v2839
          %3355 = vmatpush2.msra.mxu0 %v2838
          %3356 = vmatprep.subr.mxu0 %v2835
          %3357 = vmatpush2.msra.mxu0 %v2834
          %3358 = vmatprep.subr.mxu0 %v2831
          %3359 = vmatpush2.msra.mxu0 %v2830
          %3360 = vmatprep.subr.mxu0 %v2827
          %3361 = vmatpush2.msra.mxu0 %v2826
          %3362 = vmatprep.subr.mxu0 %v2823
          %3363 = vmatpush2.msra.mxu0 %v2822
          %3364 = vmatprep.subr.mxu0 %v2819
          %3365 = vmatpush2.msra.mxu0 %v2818
          %3366 = vmatprep.subr.mxu0 %v2815
          %3367 = vmatpush2.msra.mxu0 %v2814
          %3368 = vmatprep.subr.mxu0 %v2811
          %3369 = vmatpush2.msra.mxu0 %v2810
          %3370 = vmatprep.subr.mxu0 %v2807
          %3371 = vmatpush2.msra.mxu0 %v2806
          %3372 = vmatprep.subr.mxu0 %v2803
          %3373 = vmatpush2.msra.mxu0 %v2802
          %3374 = vmatprep.subr.mxu0 %v2799
          %3375 = vmatpush2.msra.mxu0 %v2798
          %3376 = vmatprep.mubr.f32.mxu0 %v3285
          %3377 = vmatmul.mubr.f32.gmra.mxu0 %v3277
          %v3378 = vpop.f32.mrf.mxu0
          %v3379 = vadd.f32 %v3251, %v3378
          %v3380 = vpop.f32.mrf.mxu0
          %v3381 = vadd.f32 %v3255, %v3380
          %3382 = vdwg.mxu0
          %3383 = vmatprep.subr.mxu0 %v2923
          %3384 = vmatpush1.msra.mxu0 %v2922
          %3385 = vmatprep.subr.mxu0 %v2919
          %3386 = vmatpush1.msra.mxu0 %v2918
          %3387 = vmatprep.subr.mxu0 %v2915
          %3388 = vmatpush1.msra.mxu0 %v2914
          %3389 = vmatprep.subr.mxu0 %v2911
          %3390 = vmatpush1.msra.mxu0 %v2910
          %3391 = vmatprep.subr.mxu0 %v2907
          %3392 = vmatpush1.msra.mxu0 %v2906
          %3393 = vmatprep.subr.mxu0 %v2903
          %3394 = vmatpush1.msra.mxu0 %v2902
          %3395 = vmatprep.subr.mxu0 %v2899
          %3396 = vmatpush1.msra.mxu0 %v2898
          %3397 = vmatprep.subr.mxu0 %v2895
          %3398 = vmatpush1.msra.mxu0 %v2894
          %3399 = vmatprep.subr.mxu0 %v2891
          %3400 = vmatpush1.msra.mxu0 %v2890
          %3401 = vmatprep.subr.mxu0 %v2887
          %3402 = vmatpush1.msra.mxu0 %v2886
          %3403 = vmatprep.subr.mxu0 %v2883
          %3404 = vmatpush1.msra.mxu0 %v2882
          %3405 = vmatprep.subr.mxu0 %v2879
          %3406 = vmatpush1.msra.mxu0 %v2878
          %3407 = vmatprep.subr.mxu0 %v2875
          %3408 = vmatpush1.msra.mxu0 %v2874
          %3409 = vmatprep.subr.mxu0 %v2871
          %3410 = vmatpush1.msra.mxu0 %v2870
          %3411 = vmatprep.subr.mxu0 %v2867
          %3412 = vmatpush1.msra.mxu0 %v2866
          %3413 = vmatprep.subr.mxu0 %v2863
          %3414 = vmatpush1.msra.mxu0 %v2862
          %3415 = vmatprep.subr.mxu0 %v2987
          %3416 = vmatpush2.msra.mxu0 %v2986
          %3417 = vmatprep.subr.mxu0 %v2983
          %3418 = vmatpush2.msra.mxu0 %v2982
          %3419 = vmatprep.subr.mxu0 %v2979
          %3420 = vmatpush2.msra.mxu0 %v2978
          %3421 = vmatprep.subr.mxu0 %v2975
          %3422 = vmatpush2.msra.mxu0 %v2974
          %3423 = vmatprep.subr.mxu0 %v2971
          %3424 = vmatpush2.msra.mxu0 %v2970
          %3425 = vmatprep.subr.mxu0 %v2967
          %3426 = vmatpush2.msra.mxu0 %v2966
          %3427 = vmatprep.subr.mxu0 %v2963
          %3428 = vmatpush2.msra.mxu0 %v2962
          %3429 = vmatprep.subr.mxu0 %v2959
          %3430 = vmatpush2.msra.mxu0 %v2958
          %3431 = vmatprep.subr.mxu0 %v2955
          %3432 = vmatpush2.msra.mxu0 %v2954
          %3433 = vmatprep.subr.mxu0 %v2951
          %3434 = vmatpush2.msra.mxu0 %v2950
          %3435 = vmatprep.subr.mxu0 %v2947
          %3436 = vmatpush2.msra.mxu0 %v2946
          %3437 = vmatprep.subr.mxu0 %v2943
          %3438 = vmatpush2.msra.mxu0 %v2942
          %3439 = vmatprep.subr.mxu0 %v2939
          %3440 = vmatpush2.msra.mxu0 %v2938
          %3441 = vmatprep.subr.mxu0 %v2935
          %3442 = vmatpush2.msra.mxu0 %v2934
          %3443 = vmatprep.subr.mxu0 %v2931
          %3444 = vmatpush2.msra.mxu0 %v2930
          %3445 = vmatprep.subr.mxu0 %v2927
          %3446 = vmatpush2.msra.mxu0 %v2926
          %3447 = vmatprep.mubr.f32.mxu0 %v3286
          %3448 = vmatmul.mubr.f32.gmra.mxu0 %v3284
          %v3449 = vpop.f32.mrf.mxu0
          %v3450 = vadd.f32 %v3379, %v3449
          %v3451 = vpop.f32.mrf.mxu0
          %v3452 = vadd.f32 %v3381, %v3451
          %3453 = vdwg.mxu0
          %3454 = vmatprep.subr.mxu0 %v3051
          %3455 = vmatpush1.msra.mxu0 %v3050
          %3456 = vmatprep.subr.mxu0 %v3047
          %3457 = vmatpush1.msra.mxu0 %v3046
          %3458 = vmatprep.subr.mxu0 %v3043
          %3459 = vmatpush1.msra.mxu0 %v3042
          %3460 = vmatprep.subr.mxu0 %v3039
          %3461 = vmatpush1.msra.mxu0 %v3038
          %3462 = vmatprep.subr.mxu0 %v3035
          %3463 = vmatpush1.msra.mxu0 %v3034
          %3464 = vmatprep.subr.mxu0 %v3031
          %3465 = vmatpush1.msra.mxu0 %v3030
          %3466 = vmatprep.subr.mxu0 %v3027
          %3467 = vmatpush1.msra.mxu0 %v3026
          %3468 = vmatprep.subr.mxu0 %v3023
          %3469 = vmatpush1.msra.mxu0 %v3022
          %3470 = vmatprep.subr.mxu0 %v3019
          %3471 = vmatpush1.msra.mxu0 %v3018
          %3472 = vmatprep.subr.mxu0 %v3015
          %3473 = vmatpush1.msra.mxu0 %v3014
          %3474 = vmatprep.subr.mxu0 %v3011
          %3475 = vmatpush1.msra.mxu0 %v3010
          %3476 = vmatprep.subr.mxu0 %v3007
          %3477 = vmatpush1.msra.mxu0 %v3006
          %3478 = vmatprep.subr.mxu0 %v3003
          %3479 = vmatpush1.msra.mxu0 %v3002
          %3480 = vmatprep.subr.mxu0 %v2999
          %3481 = vmatpush1.msra.mxu0 %v2998
          %3482 = vmatprep.subr.mxu0 %v2995
          %3483 = vmatpush1.msra.mxu0 %v2994
          %3484 = vmatprep.subr.mxu0 %v2991
          %3485 = vmatpush1.msra.mxu0 %v2990
          %3486 = vmatprep.subr.mxu0 %v3115
          %3487 = vmatpush2.msra.mxu0 %v3114
          %3488 = vmatprep.subr.mxu0 %v3111
          %3489 = vmatpush2.msra.mxu0 %v3110
          %3490 = vmatprep.subr.mxu0 %v3107
          %3491 = vmatpush2.msra.mxu0 %v3106
          %3492 = vmatprep.subr.mxu0 %v3103
          %3493 = vmatpush2.msra.mxu0 %v3102
          %3494 = vmatprep.subr.mxu0 %v3099
          %3495 = vmatpush2.msra.mxu0 %v3098
          %3496 = vmatprep.subr.mxu0 %v3095
          %3497 = vmatpush2.msra.mxu0 %v3094
          %3498 = vmatprep.subr.mxu0 %v3091
          %3499 = vmatpush2.msra.mxu0 %v3090
          %3500 = vmatprep.subr.mxu0 %v3087
          %3501 = vmatpush2.msra.mxu0 %v3086
          %3502 = vmatprep.subr.mxu0 %v3083
          %3503 = vmatpush2.msra.mxu0 %v3082
          %3504 = vmatprep.subr.mxu0 %v3079
          %3505 = vmatpush2.msra.mxu0 %v3078
          %3506 = vmatprep.subr.mxu0 %v3075
          %3507 = vmatpush2.msra.mxu0 %v3074
          %3508 = vmatprep.subr.mxu0 %v3071
          %3509 = vmatpush2.msra.mxu0 %v3070
          %3510 = vmatprep.subr.mxu0 %v3067
          %3511 = vmatpush2.msra.mxu0 %v3066
          %3512 = vmatprep.subr.mxu0 %v3063
          %3513 = vmatpush2.msra.mxu0 %v3062
          %3514 = vmatprep.subr.mxu0 %v3059
          %3515 = vmatpush2.msra.mxu0 %v3058
          %3516 = vmatprep.subr.mxu0 %v3055
          %3517 = vmatpush2.msra.mxu0 %v3054
          %3518 = vmatprep.mubr.f32.mxu0 %v3302
          %3519 = vmatmul.mubr.f32.gmra.mxu0 %v3294
          %v3520 = vpop.f32.mrf.mxu0
          %v3521 = vadd.f32 %v3450, %v3520
          %v3522 = vpop.f32.mrf.mxu0
          %v3523 = vadd.f32 %v3452, %v3522
          %3524 = vdwg.mxu0
          %3525 = vmatprep.subr.mxu0 %v3179
          %3526 = vmatpush1.msra.mxu0 %v3178
          %3527 = vmatprep.subr.mxu0 %v3175
          %3528 = vmatpush1.msra.mxu0 %v3174
          %3529 = vmatprep.subr.mxu0 %v3171
          %3530 = vmatpush1.msra.mxu0 %v3170
          %3531 = vmatprep.subr.mxu0 %v3167
          %3532 = vmatpush1.msra.mxu0 %v3166
          %3533 = vmatprep.subr.mxu0 %v3163
          %3534 = vmatpush1.msra.mxu0 %v3162
          %3535 = vmatprep.subr.mxu0 %v3159
          %3536 = vmatpush1.msra.mxu0 %v3158
          %3537 = vmatprep.subr.mxu0 %v3155
          %3538 = vmatpush1.msra.mxu0 %v3154
          %3539 = vmatprep.subr.mxu0 %v3151
          %3540 = vmatpush1.msra.mxu0 %v3150
          %3541 = vmatprep.subr.mxu0 %v3147
          %3542 = vmatpush1.msra.mxu0 %v3146
          %3543 = vmatprep.subr.mxu0 %v3143
          %3544 = vmatpush1.msra.mxu0 %v3142
          %3545 = vmatprep.subr.mxu0 %v3139
          %3546 = vmatpush1.msra.mxu0 %v3138
          %3547 = vmatprep.subr.mxu0 %v3135
          %3548 = vmatpush1.msra.mxu0 %v3134
          %3549 = vmatprep.subr.mxu0 %v3131
          %3550 = vmatpush1.msra.mxu0 %v3130
          %3551 = vmatprep.subr.mxu0 %v3127
          %3552 = vmatpush1.msra.mxu0 %v3126
          %3553 = vmatprep.subr.mxu0 %v3123
          %3554 = vmatpush1.msra.mxu0 %v3122
          %3555 = vmatprep.subr.mxu0 %v3119
          %3556 = vmatpush1.msra.mxu0 %v3118
          %3557 = vmatprep.subr.mxu0 %v3243
          %3558 = vmatpush2.msra.mxu0 %v3242
          %3559 = vmatprep.subr.mxu0 %v3239
          %3560 = vmatpush2.msra.mxu0 %v3238
          %3561 = vmatprep.subr.mxu0 %v3235
          %3562 = vmatpush2.msra.mxu0 %v3234
          %3563 = vmatprep.subr.mxu0 %v3231
          %3564 = vmatpush2.msra.mxu0 %v3230
          %3565 = vmatprep.subr.mxu0 %v3227
          %3566 = vmatpush2.msra.mxu0 %v3226
          %3567 = vmatprep.subr.mxu0 %v3223
          %3568 = vmatpush2.msra.mxu0 %v3222
          %3569 = vmatprep.subr.mxu0 %v3219
          %3570 = vmatpush2.msra.mxu0 %v3218
          %3571 = vmatprep.subr.mxu0 %v3215
          %3572 = vmatpush2.msra.mxu0 %v3214
          %3573 = vmatprep.subr.mxu0 %v3211
          %3574 = vmatpush2.msra.mxu0 %v3210
          %3575 = vmatprep.subr.mxu0 %v3207
          %3576 = vmatpush2.msra.mxu0 %v3206
          %3577 = vmatprep.subr.mxu0 %v3203
          %3578 = vmatpush2.msra.mxu0 %v3202
          %3579 = vmatprep.subr.mxu0 %v3199
          %3580 = vmatpush2.msra.mxu0 %v3198
          %3581 = vmatprep.subr.mxu0 %v3195
          %3582 = vmatpush2.msra.mxu0 %v3194
          %3583 = vmatprep.subr.mxu0 %v3191
          %3584 = vmatpush2.msra.mxu0 %v3190
          %3585 = vmatprep.subr.mxu0 %v3187
          %3586 = vmatpush2.msra.mxu0 %v3186
          %3587 = vmatprep.subr.mxu0 %v3183
          %3588 = vmatpush2.msra.mxu0 %v3182
          %3589 = vmatprep.mubr.f32.mxu0 %v3303
          %3590 = vmatmul.mubr.f32.gmra.mxu0 %v3301
          %v3591 = vpop.f32.mrf.mxu0
          %v3592 = vadd.f32 %v3521, %v3591
          %v3593 = vpop.f32.mrf.mxu0
          %v3594 = vadd.f32 %v3523, %v3593
          %3595 = vdwg.mxu0
          %3596 = vmatprep.subr.mxu0 %v2797
          %3597 = vmatpush1.msra.mxu0 %v2796
          %3598 = vmatprep.subr.mxu0 %v2793
          %3599 = vmatpush1.msra.mxu0 %v2792
          %3600 = vmatprep.subr.mxu0 %v2789
          %3601 = vmatpush1.msra.mxu0 %v2788
          %3602 = vmatprep.subr.mxu0 %v2785
          %3603 = vmatpush1.msra.mxu0 %v2784
          %3604 = vmatprep.subr.mxu0 %v2781
          %3605 = vmatpush1.msra.mxu0 %v2780
          %3606 = vmatprep.subr.mxu0 %v2777
          %3607 = vmatpush1.msra.mxu0 %v2776
          %3608 = vmatprep.subr.mxu0 %v2773
          %3609 = vmatpush1.msra.mxu0 %v2772
          %3610 = vmatprep.subr.mxu0 %v2769
          %3611 = vmatpush1.msra.mxu0 %v2768
          %3612 = vmatprep.subr.mxu0 %v2765
          %3613 = vmatpush1.msra.mxu0 %v2764
          %3614 = vmatprep.subr.mxu0 %v2761
          %3615 = vmatpush1.msra.mxu0 %v2760
          %3616 = vmatprep.subr.mxu0 %v2757
          %3617 = vmatpush1.msra.mxu0 %v2756
          %3618 = vmatprep.subr.mxu0 %v2753
          %3619 = vmatpush1.msra.mxu0 %v2752
          %3620 = vmatprep.subr.mxu0 %v2749
          %3621 = vmatpush1.msra.mxu0 %v2748
          %3622 = vmatprep.subr.mxu0 %v2745
          %3623 = vmatpush1.msra.mxu0 %v2744
          %3624 = vmatprep.subr.mxu0 %v2741
          %3625 = vmatpush1.msra.mxu0 %v2740
          %3626 = vmatprep.subr.mxu0 %v2737
          %3627 = vmatpush1.msra.mxu0 %v2736
          %3628 = vmatprep.subr.mxu0 %v2861
          %3629 = vmatpush2.msra.mxu0 %v2860
          %3630 = vmatprep.subr.mxu0 %v2857
          %3631 = vmatpush2.msra.mxu0 %v2856
          %3632 = vmatprep.subr.mxu0 %v2853
          %3633 = vmatpush2.msra.mxu0 %v2852
          %3634 = vmatprep.subr.mxu0 %v2849
          %3635 = vmatpush2.msra.mxu0 %v2848
          %3636 = vmatprep.subr.mxu0 %v2845
          %3637 = vmatpush2.msra.mxu0 %v2844
          %3638 = vmatprep.subr.mxu0 %v2841
          %3639 = vmatpush2.msra.mxu0 %v2840
          %3640 = vmatprep.subr.mxu0 %v2837
          %3641 = vmatpush2.msra.mxu0 %v2836
          %3642 = vmatprep.subr.mxu0 %v2833
          %3643 = vmatpush2.msra.mxu0 %v2832
          %3644 = vmatprep.subr.mxu0 %v2829
          %3645 = vmatpush2.msra.mxu0 %v2828
          %3646 = vmatprep.subr.mxu0 %v2825
          %3647 = vmatpush2.msra.mxu0 %v2824
          %3648 = vmatprep.subr.mxu0 %v2821
          %3649 = vmatpush2.msra.mxu0 %v2820
          %3650 = vmatprep.subr.mxu0 %v2817
          %3651 = vmatpush2.msra.mxu0 %v2816
          %3652 = vmatprep.subr.mxu0 %v2813
          %3653 = vmatpush2.msra.mxu0 %v2812
          %3654 = vmatprep.subr.mxu0 %v2809
          %3655 = vmatpush2.msra.mxu0 %v2808
          %3656 = vmatprep.subr.mxu0 %v2805
          %3657 = vmatpush2.msra.mxu0 %v2804
          %3658 = vmatprep.subr.mxu0 %v2801
          %3659 = vmatpush2.msra.mxu0 %v2800
          %3660 = vmatprep.mubr.f32.mxu0 %v3285
          %3661 = vmatmul.mubr.f32.gmra.mxu0 %v3277
          %v3662 = vpop.f32.mrf.mxu0
          %v3663 = vadd.f32 %v3259, %v3662
          %v3664 = vpop.f32.mrf.mxu0
          %v3665 = vadd.f32 %v3263, %v3664
          %3666 = vdwg.mxu0
          %3667 = vmatprep.subr.mxu0 %v2925
          %3668 = vmatpush1.msra.mxu0 %v2924
          %3669 = vmatprep.subr.mxu0 %v2921
          %3670 = vmatpush1.msra.mxu0 %v2920
          %3671 = vmatprep.subr.mxu0 %v2917
          %3672 = vmatpush1.msra.mxu0 %v2916
          %3673 = vmatprep.subr.mxu0 %v2913
          %3674 = vmatpush1.msra.mxu0 %v2912
          %3675 = vmatprep.subr.mxu0 %v2909
          %3676 = vmatpush1.msra.mxu0 %v2908
          %3677 = vmatprep.subr.mxu0 %v2905
          %3678 = vmatpush1.msra.mxu0 %v2904
          %3679 = vmatprep.subr.mxu0 %v2901
          %3680 = vmatpush1.msra.mxu0 %v2900
          %3681 = vmatprep.subr.mxu0 %v2897
          %3682 = vmatpush1.msra.mxu0 %v2896
          %3683 = vmatprep.subr.mxu0 %v2893
          %3684 = vmatpush1.msra.mxu0 %v2892
          %3685 = vmatprep.subr.mxu0 %v2889
          %3686 = vmatpush1.msra.mxu0 %v2888
          %3687 = vmatprep.subr.mxu0 %v2885
          %3688 = vmatpush1.msra.mxu0 %v2884
          %3689 = vmatprep.subr.mxu0 %v2881
          %3690 = vmatpush1.msra.mxu0 %v2880
          %3691 = vmatprep.subr.mxu0 %v2877
          %3692 = vmatpush1.msra.mxu0 %v2876
          %3693 = vmatprep.subr.mxu0 %v2873
          %3694 = vmatpush1.msra.mxu0 %v2872
          %3695 = vmatprep.subr.mxu0 %v2869
          %3696 = vmatpush1.msra.mxu0 %v2868
          %3697 = vmatprep.subr.mxu0 %v2865
          %3698 = vmatpush1.msra.mxu0 %v2864
          %3699 = vmatprep.subr.mxu0 %v2989
          %3700 = vmatpush2.msra.mxu0 %v2988
          %3701 = vmatprep.subr.mxu0 %v2985
          %3702 = vmatpush2.msra.mxu0 %v2984
          %3703 = vmatprep.subr.mxu0 %v2981
          %3704 = vmatpush2.msra.mxu0 %v2980
          %3705 = vmatprep.subr.mxu0 %v2977
          %3706 = vmatpush2.msra.mxu0 %v2976
          %3707 = vmatprep.subr.mxu0 %v2973
          %3708 = vmatpush2.msra.mxu0 %v2972
          %3709 = vmatprep.subr.mxu0 %v2969
          %3710 = vmatpush2.msra.mxu0 %v2968
          %3711 = vmatprep.subr.mxu0 %v2965
          %3712 = vmatpush2.msra.mxu0 %v2964
          %3713 = vmatprep.subr.mxu0 %v2961
          %3714 = vmatpush2.msra.mxu0 %v2960
          %3715 = vmatprep.subr.mxu0 %v2957
          %3716 = vmatpush2.msra.mxu0 %v2956
          %3717 = vmatprep.subr.mxu0 %v2953
          %3718 = vmatpush2.msra.mxu0 %v2952
          %3719 = vmatprep.subr.mxu0 %v2949
          %3720 = vmatpush2.msra.mxu0 %v2948
          %3721 = vmatprep.subr.mxu0 %v2945
          %3722 = vmatpush2.msra.mxu0 %v2944
          %3723 = vmatprep.subr.mxu0 %v2941
          %3724 = vmatpush2.msra.mxu0 %v2940
          %3725 = vmatprep.subr.mxu0 %v2937
          %3726 = vmatpush2.msra.mxu0 %v2936
          %3727 = vmatprep.subr.mxu0 %v2933
          %3728 = vmatpush2.msra.mxu0 %v2932
          %3729 = vmatprep.subr.mxu0 %v2929
          %3730 = vmatpush2.msra.mxu0 %v2928
          %3731 = vmatprep.mubr.f32.mxu0 %v3286
          %3732 = vmatmul.mubr.f32.gmra.mxu0 %v3284
          %v3733 = vpop.f32.mrf.mxu0
          %v3734 = vadd.f32 %v3663, %v3733
          %v3735 = vpop.f32.mrf.mxu0
          %v3736 = vadd.f32 %v3665, %v3735
          %3737 = vdwg.mxu0
          %3738 = vmatprep.subr.mxu0 %v3053
          %3739 = vmatpush1.msra.mxu0 %v3052
          %3740 = vmatprep.subr.mxu0 %v3049
          %3741 = vmatpush1.msra.mxu0 %v3048
          %3742 = vmatprep.subr.mxu0 %v3045
          %3743 = vmatpush1.msra.mxu0 %v3044
          %3744 = vmatprep.subr.mxu0 %v3041
          %3745 = vmatpush1.msra.mxu0 %v3040
          %3746 = vmatprep.subr.mxu0 %v3037
          %3747 = vmatpush1.msra.mxu0 %v3036
          %3748 = vmatprep.subr.mxu0 %v3033
          %3749 = vmatpush1.msra.mxu0 %v3032
          %3750 = vmatprep.subr.mxu0 %v3029
          %3751 = vmatpush1.msra.mxu0 %v3028
          %3752 = vmatprep.subr.mxu0 %v3025
          %3753 = vmatpush1.msra.mxu0 %v3024
          %3754 = vmatprep.subr.mxu0 %v3021
          %3755 = vmatpush1.msra.mxu0 %v3020
          %3756 = vmatprep.subr.mxu0 %v3017
          %3757 = vmatpush1.msra.mxu0 %v3016
          %3758 = vmatprep.subr.mxu0 %v3013
          %3759 = vmatpush1.msra.mxu0 %v3012
          %3760 = vmatprep.subr.mxu0 %v3009
          %3761 = vmatpush1.msra.mxu0 %v3008
          %3762 = vmatprep.subr.mxu0 %v3005
          %3763 = vmatpush1.msra.mxu0 %v3004
          %3764 = vmatprep.subr.mxu0 %v3001
          %3765 = vmatpush1.msra.mxu0 %v3000
          %3766 = vmatprep.subr.mxu0 %v2997
          %3767 = vmatpush1.msra.mxu0 %v2996
          %3768 = vmatprep.subr.mxu0 %v2993
          %3769 = vmatpush1.msra.mxu0 %v2992
          %3770 = vmatprep.subr.mxu0 %v3117
          %3771 = vmatpush2.msra.mxu0 %v3116
          %3772 = vmatprep.subr.mxu0 %v3113
          %3773 = vmatpush2.msra.mxu0 %v3112
          %3774 = vmatprep.subr.mxu0 %v3109
          %3775 = vmatpush2.msra.mxu0 %v3108
          %3776 = vmatprep.subr.mxu0 %v3105
          %3777 = vmatpush2.msra.mxu0 %v3104
          %3778 = vmatprep.subr.mxu0 %v3101
          %3779 = vmatpush2.msra.mxu0 %v3100
          %3780 = vmatprep.subr.mxu0 %v3097
          %3781 = vmatpush2.msra.mxu0 %v3096
          %3782 = vmatprep.subr.mxu0 %v3093
          %3783 = vmatpush2.msra.mxu0 %v3092
          %3784 = vmatprep.subr.mxu0 %v3089
          %3785 = vmatpush2.msra.mxu0 %v3088
          %3786 = vmatprep.subr.mxu0 %v3085
          %3787 = vmatpush2.msra.mxu0 %v3084
          %3788 = vmatprep.subr.mxu0 %v3081
          %3789 = vmatpush2.msra.mxu0 %v3080
          %3790 = vmatprep.subr.mxu0 %v3077
          %3791 = vmatpush2.msra.mxu0 %v3076
          %3792 = vmatprep.subr.mxu0 %v3073
          %3793 = vmatpush2.msra.mxu0 %v3072
          %3794 = vmatprep.subr.mxu0 %v3069
          %3795 = vmatpush2.msra.mxu0 %v3068
          %3796 = vmatprep.subr.mxu0 %v3065
          %3797 = vmatpush2.msra.mxu0 %v3064
          %3798 = vmatprep.subr.mxu0 %v3061
          %3799 = vmatpush2.msra.mxu0 %v3060
          %3800 = vmatprep.subr.mxu0 %v3057
          %3801 = vmatpush2.msra.mxu0 %v3056
          %3802 = vmatprep.mubr.f32.mxu0 %v3302
          %3803 = vmatmul.mubr.f32.gmra.mxu0 %v3294
          %v3804 = vpop.f32.mrf.mxu0
          %v3805 = vadd.f32 %v3734, %v3804
          %v3806 = vpop.f32.mrf.mxu0
          %v3807 = vadd.f32 %v3736, %v3806
          %3808 = vdwg.mxu0
          %3809 = vmatprep.subr.mxu0 %v3181
          %3810 = vmatpush1.msra.mxu0 %v3180
          %3811 = vmatprep.subr.mxu0 %v3177
          %3812 = vmatpush1.msra.mxu0 %v3176
          %3813 = vmatprep.subr.mxu0 %v3173
          %3814 = vmatpush1.msra.mxu0 %v3172
          %3815 = vmatprep.subr.mxu0 %v3169
          %3816 = vmatpush1.msra.mxu0 %v3168
          %3817 = vmatprep.subr.mxu0 %v3165
          %3818 = vmatpush1.msra.mxu0 %v3164
          %3819 = vmatprep.subr.mxu0 %v3161
          %3820 = vmatpush1.msra.mxu0 %v3160
          %3821 = vmatprep.subr.mxu0 %v3157
          %3822 = vmatpush1.msra.mxu0 %v3156
          %3823 = vmatprep.subr.mxu0 %v3153
          %3824 = vmatpush1.msra.mxu0 %v3152
          %3825 = vmatprep.subr.mxu0 %v3149
          %3826 = vmatpush1.msra.mxu0 %v3148
          %3827 = vmatprep.subr.mxu0 %v3145
          %3828 = vmatpush1.msra.mxu0 %v3144
          %3829 = vmatprep.subr.mxu0 %v3141
          %3830 = vmatpush1.msra.mxu0 %v3140
          %3831 = vmatprep.subr.mxu0 %v3137
          %3832 = vmatpush1.msra.mxu0 %v3136
          %3833 = vmatprep.subr.mxu0 %v3133
          %3834 = vmatpush1.msra.mxu0 %v3132
          %3835 = vmatprep.subr.mxu0 %v3129
          %3836 = vmatpush1.msra.mxu0 %v3128
          %3837 = vmatprep.subr.mxu0 %v3125
          %3838 = vmatpush1.msra.mxu0 %v3124
          %3839 = vmatprep.subr.mxu0 %v3121
          %3840 = vmatpush1.msra.mxu0 %v3120
          %3841 = vmatprep.subr.mxu0 %v3245
          %3842 = vmatpush2.msra.mxu0 %v3244
          %3843 = vmatprep.subr.mxu0 %v3241
          %3844 = vmatpush2.msra.mxu0 %v3240
          %3845 = vmatprep.subr.mxu0 %v3237
          %3846 = vmatpush2.msra.mxu0 %v3236
          %3847 = vmatprep.subr.mxu0 %v3233
          %3848 = vmatpush2.msra.mxu0 %v3232
          %3849 = vmatprep.subr.mxu0 %v3229
          %3850 = vmatpush2.msra.mxu0 %v3228
          %3851 = vmatprep.subr.mxu0 %v3225
          %3852 = vmatpush2.msra.mxu0 %v3224
          %3853 = vmatprep.subr.mxu0 %v3221
          %3854 = vmatpush2.msra.mxu0 %v3220
          %3855 = vmatprep.subr.mxu0 %v3217
          %3856 = vmatpush2.msra.mxu0 %v3216
          %3857 = vmatprep.subr.mxu0 %v3213
          %3858 = vmatpush2.msra.mxu0 %v3212
          %3859 = vmatprep.subr.mxu0 %v3209
          %3860 = vmatpush2.msra.mxu0 %v3208
          %3861 = vmatprep.subr.mxu0 %v3205
          %3862 = vmatpush2.msra.mxu0 %v3204
          %3863 = vmatprep.subr.mxu0 %v3201
          %3864 = vmatpush2.msra.mxu0 %v3200
          %3865 = vmatprep.subr.mxu0 %v3197
          %3866 = vmatpush2.msra.mxu0 %v3196
          %3867 = vmatprep.subr.mxu0 %v3193
          %3868 = vmatpush2.msra.mxu0 %v3192
          %3869 = vmatprep.subr.mxu0 %v3189
          %3870 = vmatpush2.msra.mxu0 %v3188
          %3871 = vmatprep.subr.mxu0 %v3185
          %3872 = vmatpush2.msra.mxu0 %v3184
          %3873 = vmatprep.mubr.f32.mxu0 %v3303
          %3874 = vmatmul.mubr.f32.gmra.mxu0 %v3301
          %v3875 = vpop.f32.mrf.mxu0
          %v3876 = vadd.f32 %v3805, %v3875
          %v3877 = vpop.f32.mrf.mxu0
          %v3878 = vadd.f32 %v3807, %v3877
          %3879 = vdwg.mxu0
          %v3880 = vmax.f32 %v3592, 0.0
          %v3881 = vmax.f32 %v3594, 0.0
          %v3882 = vmax.f32 %v3876, 0.0
          %v3883 = vmax.f32 %v3878, 0.0
          %v3884 = vld [vmem:[#allocation12] sm:$0xff]
          %v3885 = vld [vmem:[#allocation12 + $0x8] sm:$0xff]
          %v3886 = vld [vmem:[#allocation12 + $0x10] sm:$0xff]
          %v3887 = vld [vmem:[#allocation12 + $0x18] sm:$0xff]
          %v3888 = vld [vmem:[#allocation12 + $0x20] sm:$0xff]
          %v3889 = vld [vmem:[#allocation12 + $0x28] sm:$0xff]
          %v3890 = vld [vmem:[#allocation12 + $0x30] sm:$0xff]
          %v3891 = vld [vmem:[#allocation12 + $0x38] sm:$0xff]
          %v3892 = vld [vmem:[#allocation12 + $0x40] sm:$0xff]
          %v3893 = vld [vmem:[#allocation12 + $0x48] sm:$0xff]
          %v3894 = vld [vmem:[#allocation12 + $0x50] sm:$0xff]
          %v3895 = vld [vmem:[#allocation12 + $0x58] sm:$0xff]
          %v3896 = vld [vmem:[#allocation12 + $0x60] sm:$0xff]
          %v3897 = vld [vmem:[#allocation12 + $0x68] sm:$0xff]
          %v3898 = vld [vmem:[#allocation12 + $0x70] sm:$0xff]
          %v3899 = vld [vmem:[#allocation12 + $0x78] sm:$0xff]
          %v3900 = vld [vmem:[#allocation12 + $0x80] sm:$0xff]
          %v3901 = vld [vmem:[#allocation12 + $0x88] sm:$0xff]
          %v3902 = vld [vmem:[#allocation12 + $0x90] sm:$0xff]
          %v3903 = vld [vmem:[#allocation12 + $0x98] sm:$0xff]
          %v3904 = vld [vmem:[#allocation12 + $0xa0] sm:$0xff]
          %v3905 = vld [vmem:[#allocation12 + $0xa8] sm:$0xff]
          %v3906 = vld [vmem:[#allocation12 + $0xb0] sm:$0xff]
          %v3907 = vld [vmem:[#allocation12 + $0xb8] sm:$0xff]
          %v3908 = vld [vmem:[#allocation12 + $0xc0] sm:$0xff]
          %v3909 = vld [vmem:[#allocation12 + $0xc8] sm:$0xff]
          %v3910 = vld [vmem:[#allocation12 + $0xd0] sm:$0xff]
          %v3911 = vld [vmem:[#allocation12 + $0xd8] sm:$0xff]
          %v3912 = vld [vmem:[#allocation12 + $0xe0] sm:$0xff]
          %v3913 = vld [vmem:[#allocation12 + $0xe8] sm:$0xff]
          %v3914 = vld [vmem:[#allocation12 + $0xf0] sm:$0xff]
          %v3915 = vld [vmem:[#allocation12 + $0xf8] sm:$0xff]
          %v3916 = vld [vmem:[#allocation12 + $0x100] sm:$0xff]
          %v3917 = vld [vmem:[#allocation12 + $0x108] sm:$0xff]
          %v3918 = vld [vmem:[#allocation12 + $0x110] sm:$0xff]
          %v3919 = vld [vmem:[#allocation12 + $0x118] sm:$0xff]
          %v3920 = vld [vmem:[#allocation12 + $0x120] sm:$0xff]
          %v3921 = vld [vmem:[#allocation12 + $0x128] sm:$0xff]
          %v3922 = vld [vmem:[#allocation12 + $0x130] sm:$0xff]
          %v3923 = vld [vmem:[#allocation12 + $0x138] sm:$0xff]
          %v3924 = vld [vmem:[#allocation12 + $0x140] sm:$0xff]
          %v3925 = vld [vmem:[#allocation12 + $0x148] sm:$0xff]
          %v3926 = vld [vmem:[#allocation12 + $0x150] sm:$0xff]
          %v3927 = vld [vmem:[#allocation12 + $0x158] sm:$0xff]
          %v3928 = vld [vmem:[#allocation12 + $0x160] sm:$0xff]
          %v3929 = vld [vmem:[#allocation12 + $0x168] sm:$0xff]
          %v3930 = vld [vmem:[#allocation12 + $0x170] sm:$0xff]
          %v3931 = vld [vmem:[#allocation12 + $0x178] sm:$0xff]
          %v3932 = vld [vmem:[#allocation12 + $0x180] sm:$0xff]
          %v3933 = vld [vmem:[#allocation12 + $0x188] sm:$0xff]
          %v3934 = vld [vmem:[#allocation12 + $0x190] sm:$0xff]
          %v3935 = vld [vmem:[#allocation12 + $0x198] sm:$0xff]
          %v3936 = vld [vmem:[#allocation12 + $0x1a0] sm:$0xff]
          %v3937 = vld [vmem:[#allocation12 + $0x1a8] sm:$0xff]
          %v3938 = vld [vmem:[#allocation12 + $0x1b0] sm:$0xff]
          %v3939 = vld [vmem:[#allocation12 + $0x1b8] sm:$0xff]
          %v3940 = vld [vmem:[#allocation12 + $0x1c0] sm:$0xff]
          %v3941 = vld [vmem:[#allocation12 + $0x1c8] sm:$0xff]
          %v3942 = vld [vmem:[#allocation12 + $0x1d0] sm:$0xff]
          %v3943 = vld [vmem:[#allocation12 + $0x1d8] sm:$0xff]
          %v3944 = vld [vmem:[#allocation12 + $0x1e0] sm:$0xff]
          %v3945 = vld [vmem:[#allocation12 + $0x1e8] sm:$0xff]
          %v3946 = vld [vmem:[#allocation12 + $0x1f0] sm:$0xff]
          %v3947 = vld [vmem:[#allocation12 + $0x1f8] sm:$0xff]
          %v3948 = vld [vmem:[#allocation14] sm:$0x1]
          %v3950 = vlaneseq
          %v3951 = vshrl.u32 %v3950, 7
          %v3952 = vsub.s32 0, %v3951
          %v3953 = vrot.slane %v3948, %v3952
          %3955 = vmatprep.subr.mxu0 0.0
          %3956 = vmatpush1.msra.mxu0 %v3899
          %3957 = vmatprep.subr.mxu0 0.0
          %3958 = vmatpush1.msra.mxu0 %v3898
          %3959 = vmatprep.subr.mxu0 0.0
          %3960 = vmatpush1.msra.mxu0 %v3897
          %3961 = vmatprep.subr.mxu0 0.0
          %3962 = vmatpush1.msra.mxu0 %v3896
          %3963 = vmatprep.subr.mxu0 0.0
          %3964 = vmatpush1.msra.mxu0 %v3895
          %3965 = vmatprep.subr.mxu0 0.0
          %3966 = vmatpush1.msra.mxu0 %v3894
          %3967 = vmatprep.subr.mxu0 0.0
          %3968 = vmatpush1.msra.mxu0 %v3893
          %3969 = vmatprep.subr.mxu0 0.0
          %3970 = vmatpush1.msra.mxu0 %v3892
          %3971 = vmatprep.subr.mxu0 0.0
          %3972 = vmatpush1.msra.mxu0 %v3891
          %3973 = vmatprep.subr.mxu0 0.0
          %3974 = vmatpush1.msra.mxu0 %v3890
          %3975 = vmatprep.subr.mxu0 0.0
          %3976 = vmatpush1.msra.mxu0 %v3889
          %3977 = vmatprep.subr.mxu0 0.0
          %3978 = vmatpush1.msra.mxu0 %v3888
          %3979 = vmatprep.subr.mxu0 0.0
          %3980 = vmatpush1.msra.mxu0 %v3887
          %3981 = vmatprep.subr.mxu0 0.0
          %3982 = vmatpush1.msra.mxu0 %v3886
          %3983 = vmatprep.subr.mxu0 0.0
          %3984 = vmatpush1.msra.mxu0 %v3885
          %3985 = vmatprep.subr.mxu0 0.0
          %3986 = vmatpush1.msra.mxu0 %v3884
          %3987 = vmatprep.subr.mxu0 0.0
          %3988 = vmatpush2.msra.mxu0 %v3915
          %3989 = vmatprep.subr.mxu0 0.0
          %3990 = vmatpush2.msra.mxu0 %v3914
          %3991 = vmatprep.subr.mxu0 0.0
          %3992 = vmatpush2.msra.mxu0 %v3913
          %3993 = vmatprep.subr.mxu0 0.0
          %3994 = vmatpush2.msra.mxu0 %v3912
          %3995 = vmatprep.subr.mxu0 0.0
          %3996 = vmatpush2.msra.mxu0 %v3911
          %3997 = vmatprep.subr.mxu0 0.0
          %3998 = vmatpush2.msra.mxu0 %v3910
          %3999 = vmatprep.subr.mxu0 0.0
          %4000 = vmatpush2.msra.mxu0 %v3909
          %4001 = vmatprep.subr.mxu0 0.0
          %4002 = vmatpush2.msra.mxu0 %v3908
          %4003 = vmatprep.subr.mxu0 0.0
          %4004 = vmatpush2.msra.mxu0 %v3907
          %4005 = vmatprep.subr.mxu0 0.0
          %4006 = vmatpush2.msra.mxu0 %v3906
          %4007 = vmatprep.subr.mxu0 0.0
          %4008 = vmatpush2.msra.mxu0 %v3905
          %4009 = vmatprep.subr.mxu0 0.0
          %4010 = vmatpush2.msra.mxu0 %v3904
          %4011 = vmatprep.subr.mxu0 0.0
          %4012 = vmatpush2.msra.mxu0 %v3903
          %4013 = vmatprep.subr.mxu0 0.0
          %4014 = vmatpush2.msra.mxu0 %v3902
          %4015 = vmatprep.subr.mxu0 0.0
          %4016 = vmatpush2.msra.mxu0 %v3901
          %4017 = vmatprep.subr.mxu0 0.0
          %4018 = vmatpush2.msra.mxu0 %v3900
          %4019 = vmatprep.mubr.f32.mxu0 %v3881
          %4020 = vmatmul.mubr.f32.gmra.mxu0 %v3880
          %v4021 = vpop.f32.mrf.mxu0
          %v4022 = vadd.f32 %v3953, %v4021
          %v4023 = vpop.f32.mrf.mxu0
          %4024 = vdwg.mxu0
          %4025 = vmatprep.subr.mxu0 0.0
          %4026 = vmatpush1.msra.mxu0 %v3931
          %4027 = vmatprep.subr.mxu0 0.0
          %4028 = vmatpush1.msra.mxu0 %v3930
          %4029 = vmatprep.subr.mxu0 0.0
          %4030 = vmatpush1.msra.mxu0 %v3929
          %4031 = vmatprep.subr.mxu0 0.0
          %4032 = vmatpush1.msra.mxu0 %v3928
          %4033 = vmatprep.subr.mxu0 0.0
          %4034 = vmatpush1.msra.mxu0 %v3927
          %4035 = vmatprep.subr.mxu0 0.0
          %4036 = vmatpush1.msra.mxu0 %v3926
          %4037 = vmatprep.subr.mxu0 0.0
          %4038 = vmatpush1.msra.mxu0 %v3925
          %4039 = vmatprep.subr.mxu0 0.0
          %4040 = vmatpush1.msra.mxu0 %v3924
          %4041 = vmatprep.subr.mxu0 0.0
          %4042 = vmatpush1.msra.mxu0 %v3923
          %4043 = vmatprep.subr.mxu0 0.0
          %4044 = vmatpush1.msra.mxu0 %v3922
          %4045 = vmatprep.subr.mxu0 0.0
          %4046 = vmatpush1.msra.mxu0 %v3921
          %4047 = vmatprep.subr.mxu0 0.0
          %4048 = vmatpush1.msra.mxu0 %v3920
          %4049 = vmatprep.subr.mxu0 0.0
          %4050 = vmatpush1.msra.mxu0 %v3919
          %4051 = vmatprep.subr.mxu0 0.0
          %4052 = vmatpush1.msra.mxu0 %v3918
          %4053 = vmatprep.subr.mxu0 0.0
          %4054 = vmatpush1.msra.mxu0 %v3917
          %4055 = vmatprep.subr.mxu0 0.0
          %4056 = vmatpush1.msra.mxu0 %v3916
          %4057 = vmatprep.subr.mxu0 0.0
          %4058 = vmatpush2.msra.mxu0 %v3947
          %4059 = vmatprep.subr.mxu0 0.0
          %4060 = vmatpush2.msra.mxu0 %v3946
          %4061 = vmatprep.subr.mxu0 0.0
          %4062 = vmatpush2.msra.mxu0 %v3945
          %4063 = vmatprep.subr.mxu0 0.0
          %4064 = vmatpush2.msra.mxu0 %v3944
          %4065 = vmatprep.subr.mxu0 0.0
          %4066 = vmatpush2.msra.mxu0 %v3943
          %4067 = vmatprep.subr.mxu0 0.0
          %4068 = vmatpush2.msra.mxu0 %v3942
          %4069 = vmatprep.subr.mxu0 0.0
          %4070 = vmatpush2.msra.mxu0 %v3941
          %4071 = vmatprep.subr.mxu0 0.0
          %4072 = vmatpush2.msra.mxu0 %v3940
          %4073 = vmatprep.subr.mxu0 0.0
          %4074 = vmatpush2.msra.mxu0 %v3939
          %4075 = vmatprep.subr.mxu0 0.0
          %4076 = vmatpush2.msra.mxu0 %v3938
          %4077 = vmatprep.subr.mxu0 0.0
          %4078 = vmatpush2.msra.mxu0 %v3937
          %4079 = vmatprep.subr.mxu0 0.0
          %4080 = vmatpush2.msra.mxu0 %v3936
          %4081 = vmatprep.subr.mxu0 0.0
          %4082 = vmatpush2.msra.mxu0 %v3935
          %4083 = vmatprep.subr.mxu0 0.0
          %4084 = vmatpush2.msra.mxu0 %v3934
          %4085 = vmatprep.subr.mxu0 0.0
          %4086 = vmatpush2.msra.mxu0 %v3933
          %4087 = vmatprep.subr.mxu0 0.0
          %4088 = vmatpush2.msra.mxu0 %v3932
          %4089 = vmatprep.mubr.f32.mxu0 %v3883
          %4090 = vmatmul.mubr.f32.gmra.mxu0 %v3882
          %v4091 = vpop.f32.mrf.mxu0
          %v4092 = vadd.f32 %v4022, %v4091
          %v4093 = vpop.f32.mrf.mxu0
          %4094 = vdwg.mxu0
          %4095 = vst [vmem:[#allocation15] sm:$0x3] %v4092
        $region84: #{tpu_custom_call.1} parent=47 // pred_fallthru
          _
        // Predicated region
        $region85: #{tpu_custom_call.1} parent=47 // pred_check
          %p4096 = pneg %p197
        $region86: #{tpu_custom_call.1} parent=47 // pred_check_branch
          %4098 = sbr.rel (%p4096) target = $region88
        $region87: #{tpu_custom_call.1} parent=47 // pred_region
          %s4100 = ssub.s32 32, 32
          %4101 = vsyncadd [#allocation5], %s4100
          %s4103 = sshll.u32 [#allocation15], 4
          %s4104 = int_to_ptr.vmem [resolvable:$true] %s4103
          %4106 = dma.vmem_to_hbm [thread:$0]  %s4104, 32, %s7, [#allocation5]
        $region88: #{tpu_custom_call.1} parent=47 // pred_fallthru
          _
        // Predicated region
        $region89: #{tpu_custom_call.1} parent=47 // pred_check
          %p4107 = pneg %p197
        $region90: #{tpu_custom_call.1} parent=47 // pred_check_branch
          %4109 = sbr.rel (%p4107) target = $region92
        $region91: #{tpu_custom_call.1} parent=47 // pred_region
          %4110 = dma.done [#allocation5], 32
        $region92: #{tpu_custom_call.1} parent=47 // pred_fallthru
          _
      $region48: #{tpu_custom_call.1} parent=5 // pred_fallthru
        _
      %p4111 = scmp.le.s32.totalorder 2, %s22
      // Predicated region
      $region93: #{tpu_custom_call.1} parent=5 // pred_check
        %p4112 = pneg %p4111
      $region94: #{tpu_custom_call.1} parent=5 // pred_check_branch
        %4114 = sbr.rel (%p4112) target = $region96
      $region95: #{tpu_custom_call.1} parent=5 // pred_region
        %s4115 = ssub.s32 %s22, 2
      $region96: #{tpu_custom_call.1} parent=5 // pred_fallthru
        _
    $region6: #{tpu_custom_call.1} parent=1 // loop_footer
      %s26 = sadd.s32 1, %s22
    $region7: #{tpu_custom_call.1} parent=1 // loop_footer_branch
      %21 = sbr.rel target = $region3
    $region8: #{tpu_custom_call.1} parent=1 // loop_exit
      _
    %4116 = vsyncpa [#allocation4], 1
    %s4117 = scalar_lea.sflag [#allocation4], 1
    %4118 = vsyncpa %s4117, 1
    %4119 = vsyncpa [#allocation7], 1
    %s4120 = scalar_lea.sflag [#allocation7], 1
    %4121 = vsyncpa %s4120, 1
    %4122 = vsyncpa [#allocation10], 1
    %4123 = vsyncpa [#allocation13], 1
    %4124 = vsyncpa [#allocation5], 1
    %s4125 = scalar_lea.sflag [#allocation5], 1
    %4126 = vsyncpa %s4125, 1

</llo_original>
